<compile_context>
chip_gen: v7x
topology: tpu7x:2x2x1
jax: 0.10.0
libtpu: 0.0.40
codegen_flags: <defaults>
</compile_context>

<pallas_src>
import functools

import jax
import jax.numpy as jnp
from jax.experimental import pallas as pl
from jax.experimental.pallas import tpu as pltpu


def _layernorm(x, gamma, beta, eps):
    """Row-wise LayerNorm (PyTorch semantics, biased variance), f32 math."""
    mu = jnp.mean(x, axis=-1, keepdims=True)
    var = jnp.mean(jnp.square(x - mu), axis=-1, keepdims=True)
    return (x - mu) * jax.lax.rsqrt(var + eps) * gamma + beta


# ------------------- fused encoder layer (MHA + FFN) kernel ------------------ #

def _encoder_layer_kernel(x_ref, wq_ref, wk_ref, wv_ref, fc_ref, ag_ref, ab_ref,
                          w1_ref, b1_ref, lng_ref, lnb_ref, w2_ref, b2_ref,
                          fg_ref, fb_ref, o_ref, act_ref,
                          *, n_head, eps, matmul_dtype):
    layer = pl.program_id(1)

    # Load the input activation only on the first layer; afterwards the
    # activation is carried layer-to-layer in the f32 VMEM scratch.
    @pl.when(layer == 0)
    def _():
        act_ref[...] = x_ref[0].astype(jnp.float32)

    x = act_ref[...]                                    # (n, d_model) f32
    n, d_model = x.shape

    # ---------------------- multi-head self-attention ----------------------- #
    # Head-major weights -> batched einsums only (no unaligned lane slices).
    xc = x.astype(matmul_dtype)
    xb = jnp.broadcast_to(xc, (n_head, n, d_model))     # hoisted, reused 3x
    wq = wq_ref[0]                                      # (h, d_model, d_k), /T folded in
    wk = wk_ref[0]                                      # (h, d_model, d_k)
    wv = wv_ref[0]                                      # (h, d_model, d_v)
    q = jnp.einsum('hnd,hdk->hnk', xb, wq, preferred_element_type=jnp.float32)
    k = jnp.einsum('hnd,hdk->hnk', xb, wk, preferred_element_type=jnp.float32)
    v = jnp.einsum('hnd,hdv->hnv', xb, wv, preferred_element_type=jnp.float32)

    s = jnp.einsum('hnk,hmk->hnm', q.astype(matmul_dtype), k.astype(matmul_dtype),
                   preferred_element_type=jnp.float32)  # (h, n, n)
    s = s - jnp.max(s, axis=-1, keepdims=True)
    p = jnp.exp(s)
    p = p / jnp.sum(p, axis=-1, keepdims=True)          # exact softmax

    ctx = jnp.einsum('hnm,hmv->hnv', p.astype(matmul_dtype), v.astype(matmul_dtype),
                     preferred_element_type=jnp.float32)      # (h, n, d_v)
    # Output projection: one batched matmul, then sum over heads
    # (mathematically identical to concat over heads followed by fc).
    proj = jnp.einsum('hnv,hvd->hnd', ctx.astype(matmul_dtype), fc_ref[0],
                      preferred_element_type=jnp.float32)     # (h, n, d_model)
    attn = jnp.maximum(jnp.sum(proj, axis=0), 0.0) + x        # ReLU -> residual
    attn = _layernorm(attn, ag_ref[0], ab_ref[0], eps)        # (n, d_model) f32

    # --------------------- position-wise feed-forward ----------------------- #
    # TODO(synk): TaskMoE top-2 routing approximated by its dense expert w_1/w_2.
    h1 = jnp.dot(attn.astype(matmul_dtype), w1_ref[0],
                 preferred_element_type=jnp.float32) + b1_ref[0]   # (n, d_inner)
    # The four group LayerNorms (ln1..ln4 over contiguous seq/4 row blocks)
    # are exactly a row-wise LN with a per-row affine table.
    h1 = _layernorm(h1, lng_ref[0], lnb_ref[0], eps)
    h1 = jnp.maximum(h1, 0.0)                                       # ReLU
    y = jnp.dot(h1.astype(matmul_dtype), w2_ref[0],
                preferred_element_type=jnp.float32) + b2_ref[0]     # (n, d_model)
    y = _layernorm(y + attn, fg_ref[0], fb_ref[0], eps)             # residual + LN

    act_ref[...] = y                                    # carry to next layer

    @pl.when(layer == pl.num_programs(1) - 1)
    def _():
        o_ref[0] = y.astype(o_ref.dtype)                # single lane-dense store


# --------------------------------- wrapper ----------------------------------- #

def encoder_forward(src_seq, params, *, n_head, matmul_dtype=jnp.float32, eps=1e-6):
    b, n, d_model = src_seq.shape
    wq = params['wq'].astype(matmul_dtype)
    wk = params['wk'].astype(matmul_dtype)
    wv = params['wv'].astype(matmul_dtype)
    fc = params['fc'].astype(matmul_dtype)
    w1 = params['w1_w'].astype(matmul_dtype)
    w2 = params['w2_w'].astype(matmul_dtype)

    n_layers, _, _, d_k = wq.shape
    d_v = wv.shape[-1]
    d_inner = w1.shape[-1]
    n_groups = params['group_ln_g'].shape[1]
    assert n % n_groups == 0, "seq length must be divisible by the 4 FFN groups"

    # Per-row affine tables for the 4 group LayerNorms (built once; free).
    rep = n // n_groups
    lng = jnp.repeat(params['group_ln_g'], rep, axis=1)   # (L, n, d_inner)
    lnb = jnp.repeat(params['group_ln_b'], rep, axis=1)

    def xmap(i, l):
        return (i, 0, 0)

    def wmap(i, l):
        return (l, 0, 0)

    def wmap4(i, l):
        return (l, 0, 0, 0)

    kern = functools.partial(_encoder_layer_kernel, n_head=n_head, eps=eps,
                             matmul_dtype=matmul_dtype)

    return pl.pallas_call(
        kern,
        out_shape=jax.ShapeDtypeStruct((b, n, d_model), src_seq.dtype),
        grid=(b, n_layers),
        in_specs=[
            pl.BlockSpec((1, n, d_model), xmap),                 # x (per batch)
            pl.BlockSpec((1, n_head, d_model, d_k), wmap4),      # wq (per layer)
            pl.BlockSpec((1, n_head, d_model, d_k), wmap4),      # wk
            pl.BlockSpec((1, n_head, d_model, d_v), wmap4),      # wv
            pl.BlockSpec((1, n_head, d_v, d_model), wmap4),      # fc
            pl.BlockSpec((1, 1, d_model), wmap),                 # attn LN gamma
            pl.BlockSpec((1, 1, d_model), wmap),                 # attn LN beta
            pl.BlockSpec((1, d_model, d_inner), wmap),           # w1
            pl.BlockSpec((1, 1, d_inner), wmap),                 # b1
            pl.BlockSpec((1, n, d_inner), wmap),                 # group LN gamma table
            pl.BlockSpec((1, n, d_inner), wmap),                 # group LN beta table
            pl.BlockSpec((1, d_inner, d_model), wmap),           # w2
            pl.BlockSpec((1, 1, d_model), wmap),                 # b2
            pl.BlockSpec((1, 1, d_model), wmap),                 # ffn LN gamma
            pl.BlockSpec((1, 1, d_model), wmap),                 # ffn LN beta
        ],
        out_specs=pl.BlockSpec((1, n, d_model), xmap),
        scratch_shapes=[pltpu.VMEM((n, d_model), jnp.float32)],  # carried activation
        compiler_params=pltpu.CompilerParams(
            dimension_semantics=("parallel", "arbitrary")),
    )(src_seq, wq, wk, wv, fc,
      params['attn_ln_g'], params['attn_ln_b'],
      w1, params['w1_b'], lng, lnb, w2, params['w2_b'],
      params['ffn_ln_g'], params['ffn_ln_b'])


# ----------------------------- parameter creation ---------------------------- #

def init_encoder_params(key, *, n_layers, n_head, d_k, d_v, d_model, d_inner,
                        n_groups=4):
    def uniform(k, shape, fan_in):
        bound = 1.0 / (float(fan_in) ** 0.5)
        return jax.random.uniform(k, shape, jnp.float32, -bound, bound)

    temperature = float(d_k) ** 0.5
    key, *ks = jax.random.split(key, 9)
    L = n_layers
    return {
        # Head-major projections; 1/temperature folded into Q at init
        # (zero runtime cost, identical math to q / T).
        'wq': uniform(ks[0], (L, n_head, d_model, d_k), d_model) / temperature,
        'wk': uniform(ks[1], (L, n_head, d_model, d_k), d_model),
        'wv': uniform(ks[2], (L, n_head, d_model, d_v), d_model),
        'fc': uniform(ks[3], (L, n_head, d_v, d_model), n_head * d_v),
        'attn_ln_g': jnp.ones((L, 1, d_model), jnp.float32),
        'attn_ln_b': jnp.zeros((L, 1, d_model), jnp.float32),
        # PositionwiseFeedForward experts (Linear with bias)
        'w1_w': uniform(ks[4], (L, d_model, d_inner), d_model),
        'w1_b': uniform(ks[5], (L, 1, d_inner), d_model),
        'w2_w': uniform(ks[6], (L, d_inner, d_model), d_inner),
        'w2_b': uniform(ks[7], (L, 1, d_model), d_inner),
        # ln1..ln4 (one per seq/4 group)
        'group_ln_g': jnp.ones((L, n_groups, d_inner), jnp.float32),
        'group_ln_b': jnp.zeros((L, n_groups, d_inner), jnp.float32),
        'ffn_ln_g': jnp.ones((L, 1, d_model), jnp.float32),
        'ffn_ln_b': jnp.zeros((L, 1, d_model), jnp.float32),
    }


# ------------------------------------ main ------------------------------------ #

if __name__ == "__main__":
    # Module constraints: seq divisible by 4 (FFN group split).  Dims chosen
    # lane-dense (d_model = d_inner = 128) per the perf review so every store /
    # LN reduction uses full 128-lane vregs, while staying small.
    n_layers, n_head, d_k, d_v = 2, 4, 32, 32
    d_model, d_inner = 128, 128
    batch, seq = 2, 32

    key = jax.random.PRNGKey(0)
    key, pkey, xkey = jax.random.split(key, 3)

    params = init_encoder_params(pkey, n_layers=n_layers, n_head=n_head,
                                 d_k=d_k, d_v=d_v, d_model=d_model,
                                 d_inner=d_inner)
    src_seq = jax.random.normal(xkey, (batch, seq, d_model), jnp.float32)

    # For v6e/v7x production shapes pass matmul_dtype=jnp.bfloat16 (bf16 MXU
    # path, half the weight DMA); f32 here keeps exact reference parity.
    fwd = jax.jit(functools.partial(encoder_forward, n_head=n_head,
                                    matmul_dtype=jnp.float32))
    out = jax.block_until_ready(fwd(src_seq, params))

    assert out.shape == (batch, seq, d_model)
    assert out.dtype == jnp.float32
    assert bool(jnp.all(jnp.isfinite(out)))
    print("KERNEL_OK")
</pallas_src>

<mosaic_0001>
module attributes {stable_mosaic.version = 11 : i64} {
  func.func @_encoder_layer_kernel(%arg0: i32, %arg1: i32, %arg2: memref<1x32x128xf32, #tpu.memory_space<vmem>>, %arg3: memref<1x4x128x32xf32, #tpu.memory_space<vmem>>, %arg4: memref<1x4x128x32xf32, #tpu.memory_space<vmem>>, %arg5: memref<1x4x128x32xf32, #tpu.memory_space<vmem>>, %arg6: memref<1x4x32x128xf32, #tpu.memory_space<vmem>>, %arg7: memref<1x1x128xf32, #tpu.memory_space<vmem>>, %arg8: memref<1x1x128xf32, #tpu.memory_space<vmem>>, %arg9: memref<1x128x128xf32, #tpu.memory_space<vmem>>, %arg10: memref<1x1x128xf32, #tpu.memory_space<vmem>>, %arg11: memref<1x32x128xf32, #tpu.memory_space<vmem>>, %arg12: memref<1x32x128xf32, #tpu.memory_space<vmem>>, %arg13: memref<1x128x128xf32, #tpu.memory_space<vmem>>, %arg14: memref<1x1x128xf32, #tpu.memory_space<vmem>>, %arg15: memref<1x1x128xf32, #tpu.memory_space<vmem>>, %arg16: memref<1x1x128xf32, #tpu.memory_space<vmem>>, %arg17: memref<1x32x128xf32, #tpu.memory_space<vmem>>, %arg18: memref<32x128xf32, #tpu.memory_space<vmem>>) attributes {dimension_semantics = [#tpu.dimension_semantics<parallel>, #tpu.dimension_semantics<arbitrary>], iteration_bounds = array<i64: 2, 2>, scalar_prefetch = 0 : i64, scratch_operands = 1 : i64, tpu.core_type = #tpu.core_type<tc>, window_params = [{transform_indices = @transform_0, window_bounds = array<i64: 1, 32, 128>}, {transform_indices = @transform_1, window_bounds = array<i64: 1, 4, 128, 32>}, {transform_indices = @transform_2, window_bounds = array<i64: 1, 4, 128, 32>}, {transform_indices = @transform_3, window_bounds = array<i64: 1, 4, 128, 32>}, {transform_indices = @transform_4, window_bounds = array<i64: 1, 4, 32, 128>}, {transform_indices = @transform_5, window_bounds = array<i64: 1, 1, 128>}, {transform_indices = @transform_6, window_bounds = array<i64: 1, 1, 128>}, {transform_indices = @transform_7, window_bounds = array<i64: 1, 128, 128>}, {transform_indices = @transform_8, window_bounds = array<i64: 1, 1, 128>}, {transform_indices = @transform_9, window_bounds = array<i64: 1, 32, 128>}, {transform_indices = @transform_10, window_bounds = array<i64: 1, 32, 128>}, {transform_indices = @transform_11, window_bounds = array<i64: 1, 128, 128>}, {transform_indices = @transform_12, window_bounds = array<i64: 1, 1, 128>}, {transform_indices = @transform_13, window_bounds = array<i64: 1, 1, 128>}, {transform_indices = @transform_14, window_bounds = array<i64: 1, 1, 128>}, {transform_indices = @transform_15, window_bounds = array<i64: 1, 32, 128>}]} {
    %c0_i32 = arith.constant 0 : i32
    %0 = arith.cmpi eq, %arg1, %c0_i32 : i32
    %1 = arith.extui %0 : i1 to i32
    %c0_i32_0 = arith.constant 0 : i32
    %2 = arith.cmpi ne, %1, %c0_i32_0 : i32
    scf.if %2 {
      %c0_78 = arith.constant 0 : index
      %c0_79 = arith.constant 0 : index
      %c0_80 = arith.constant 0 : index
      %130 = vector.load %arg2[%c0_78, %c0_79, %c0_80] : memref<1x32x128xf32, #tpu.memory_space<vmem>>, vector<1x32x128xf32>
      %131 = vector.shape_cast %130 : vector<1x32x128xf32> to vector<32x128xf32>
      %c0_81 = arith.constant 0 : index
      %c0_82 = arith.constant 0 : index
      %132 = vector.load %arg18[%c0_81, %c0_82] : memref<32x128xf32, #tpu.memory_space<vmem>>, vector<32x128xf32>
      tpu.vector_store %arg18[%c0_81, %c0_82], %131 {strides = array<i32>} : memref<32x128xf32, #tpu.memory_space<vmem>>, vector<32x128xf32>,
    } else {
    }
    %c0 = arith.constant 0 : index
    %c0_1 = arith.constant 0 : index
    %3 = vector.load %arg18[%c0, %c0_1] : memref<32x128xf32, #tpu.memory_space<vmem>>, vector<32x128xf32>
    %4 = vector.shape_cast %3 : vector<32x128xf32> to vector<1x32x128xf32>
    %5 = vector.broadcast %4 : vector<1x32x128xf32> to vector<4x32x128xf32>
    %c0_2 = arith.constant 0 : index
    %c0_3 = arith.constant 0 : index
    %c0_4 = arith.constant 0 : index
    %c0_5 = arith.constant 0 : index
    %6 = vector.load %arg3[%c0_2, %c0_3, %c0_4, %c0_5] : memref<1x4x128x32xf32, #tpu.memory_space<vmem>>, vector<1x4x128x32xf32>
    %7 = vector.shape_cast %6 : vector<1x4x128x32xf32> to vector<4x128x32xf32>
    %c0_6 = arith.constant 0 : index
    %c0_7 = arith.constant 0 : index
    %c0_8 = arith.constant 0 : index
    %c0_9 = arith.constant 0 : index
    %8 = vector.load %arg4[%c0_6, %c0_7, %c0_8, %c0_9] : memref<1x4x128x32xf32, #tpu.memory_space<vmem>>, vector<1x4x128x32xf32>
    %9 = vector.shape_cast %8 : vector<1x4x128x32xf32> to vector<4x128x32xf32>
    %c0_10 = arith.constant 0 : index
    %c0_11 = arith.constant 0 : index
    %c0_12 = arith.constant 0 : index
    %c0_13 = arith.constant 0 : index
    %10 = vector.load %arg5[%c0_10, %c0_11, %c0_12, %c0_13] : memref<1x4x128x32xf32, #tpu.memory_space<vmem>>, vector<1x4x128x32xf32>
    %11 = vector.shape_cast %10 : vector<1x4x128x32xf32> to vector<4x128x32xf32>
    "tpu.trace_start"() <{level = 10 : i32, message = "hnd,hdk->hnk"}> : () -> ()
    %cst = arith.constant dense<0.000000e+00> : vector<4x32x32xf32>
    %12 = tpu.matmul %5, %7, %cst {dimension_numbers = #tpu.dot_dimension_numbers<[2], [1], [1], [2], [0, 0, 0, 1, 1, 2], [0], [0]>} : vector<4x32x128xf32>, vector<4x128x32xf32>, vector<4x32x32xf32> -> vector<4x32x32xf32>
    %cst_14 = arith.constant dense<0.000000e+00> : vector<4x32x32xf32>
    %13 = tpu.matmul %5, %9, %cst_14 {dimension_numbers = #tpu.dot_dimension_numbers<[2], [1], [1], [2], [0, 0, 0, 1, 1, 2], [0], [0]>} : vector<4x32x128xf32>, vector<4x128x32xf32>, vector<4x32x32xf32> -> vector<4x32x32xf32>
    "tpu.trace_stop"() : () -> ()
    "tpu.trace_start"() <{level = 10 : i32, message = "hnd,hdv->hnv"}> : () -> ()
    %cst_15 = arith.constant dense<0.000000e+00> : vector<4x32x32xf32>
    %14 = tpu.matmul %5, %11, %cst_15 {dimension_numbers = #tpu.dot_dimension_numbers<[2], [1], [1], [2], [0, 0, 0, 1, 1, 2], [0], [0]>} : vector<4x32x128xf32>, vector<4x128x32xf32>, vector<4x32x32xf32> -> vector<4x32x32xf32>
    "tpu.trace_stop"() : () -> ()
    "tpu.trace_start"() <{level = 10 : i32, message = "hnk,hmk->hnm"}> : () -> ()
    %cst_16 = arith.constant dense<0.000000e+00> : vector<4x32x32xf32>
    %15 = tpu.matmul %12, %13, %cst_16 {dimension_numbers = #tpu.dot_dimension_numbers<[2], [2], [1], [1], [0, 0, 0, 1, 1, 1], [0], [0]>} : vector<4x32x32xf32>, vector<4x32x32xf32>, vector<4x32x32xf32> -> vector<4x32x32xf32>
    "tpu.trace_stop"() : () -> ()
    %cst_17 = arith.constant dense<0xFF800000> : vector<4x32xf32>
    %16 = vector.multi_reduction <maximumf>, %15, %cst_17 [2] : vector<4x32x32xf32> to vector<4x32xf32>
    %17 = vector.shape_cast %16 : vector<4x32xf32> to vector<4x32x1xf32>
    %18 = vector.broadcast %17 : vector<4x32x1xf32> to vector<4x32x32xf32>
    %19 = arith.subf %15, %18 : vector<4x32x32xf32>
    %20 = math.exp %19 : vector<4x32x32xf32>
    %cst_18 = arith.constant dense<0.000000e+00> : vector<4x32xf32>
    %21 = vector.multi_reduction <add>, %20, %cst_18 [2] : vector<4x32x32xf32> to vector<4x32xf32>
    %22 = vector.shape_cast %21 : vector<4x32xf32> to vector<4x32x1xf32>
    %23 = vector.broadcast %22 : vector<4x32x1xf32> to vector<4x32x32xf32>
    %24 = arith.divf %20, %23 : vector<4x32x32xf32>
    "tpu.trace_start"() <{level = 10 : i32, message = "hnm,hmv->hnv"}> : () -> ()
    %cst_19 = arith.constant dense<0.000000e+00> : vector<4x32x32xf32>
    %25 = tpu.matmul %24, %14, %cst_19 {dimension_numbers = #tpu.dot_dimension_numbers<[2], [1], [1], [2], [0, 0, 0, 1, 1, 2], [0], [0]>} : vector<4x32x32xf32>, vector<4x32x32xf32>, vector<4x32x32xf32> -> vector<4x32x32xf32>
    "tpu.trace_stop"() : () -> ()
    %c0_20 = arith.constant 0 : index
    %c0_21 = arith.constant 0 : index
    %c0_22 = arith.constant 0 : index
    %c0_23 = arith.constant 0 : index
    %26 = vector.load %arg6[%c0_20, %c0_21, %c0_22, %c0_23] : memref<1x4x32x128xf32, #tpu.memory_space<vmem>>, vector<1x4x32x128xf32>
    %27 = vector.shape_cast %26 : vector<1x4x32x128xf32> to vector<4x32x128xf32>
    "tpu.trace_start"() <{level = 10 : i32, message = "hnv,hvd->hnd"}> : () -> ()
    %cst_24 = arith.constant dense<0.000000e+00> : vector<4x32x128xf32>
    %28 = tpu.matmul %25, %27, %cst_24 {dimension_numbers = #tpu.dot_dimension_numbers<[2], [1], [1], [2], [0, 0, 0, 1, 1, 2], [0], [0]>} : vector<4x32x32xf32>, vector<4x32x128xf32>, vector<4x32x128xf32> -> vector<4x32x128xf32>
    "tpu.trace_stop"() : () -> ()
    %cst_25 = arith.constant dense<0.000000e+00> : vector<32x128xf32>
    %29 = vector.multi_reduction <add>, %28, %cst_25 [0] : vector<4x32x128xf32> to vector<32x128xf32>
    %cst_26 = arith.constant 0.000000e+00 : f32
    %30 = vector.broadcast %cst_26 : f32 to vector<32x128xf32>
    %31 = arith.maximumf %29, %30 : vector<32x128xf32>
    %32 = arith.addf %31, %3 : vector<32x128xf32>
    %c0_27 = arith.constant 0 : index
    %c0_28 = arith.constant 0 : index
    %c0_29 = arith.constant 0 : index
    %33 = vector.load %arg7[%c0_27, %c0_28, %c0_29] : memref<1x1x128xf32, #tpu.memory_space<vmem>>, vector<1x1x128xf32>
    %34 = vector.shape_cast %33 : vector<1x1x128xf32> to vector<1x128xf32>
    %c0_30 = arith.constant 0 : index
    %c0_31 = arith.constant 0 : index
    %c0_32 = arith.constant 0 : index
    %35 = vector.load %arg8[%c0_30, %c0_31, %c0_32] : memref<1x1x128xf32, #tpu.memory_space<vmem>>, vector<1x1x128xf32>
    %36 = vector.shape_cast %35 : vector<1x1x128xf32> to vector<1x128xf32>
    %cst_33 = arith.constant dense<0.000000e+00> : vector<32xf32>
    %37 = vector.multi_reduction <add>, %32, %cst_33 [1] : vector<32x128xf32> to vector<32xf32>
    %38 = vector.shape_cast %37 : vector<32xf32> to vector<32x1xf32>
    %cst_34 = arith.constant 1.280000e+02 : f32
    %39 = vector.broadcast %cst_34 : f32 to vector<32x1xf32>
    %40 = arith.divf %38, %39 : vector<32x1xf32>
    %41 = vector.broadcast %40 : vector<32x1xf32> to vector<32x128xf32>
    %42 = arith.subf %32, %41 : vector<32x128xf32>
    %43 = arith.mulf %42, %42 : vector<32x128xf32>
    %cst_35 = arith.constant dense<0.000000e+00> : vector<32xf32>
    %44 = vector.multi_reduction <add>, %43, %cst_35 [1] : vector<32x128xf32> to vector<32xf32>
    %45 = vector.shape_cast %44 : vector<32xf32> to vector<32x1xf32>
    %cst_36 = arith.constant 1.280000e+02 : f32
    %46 = vector.broadcast %cst_36 : f32 to vector<32x1xf32>
    %47 = arith.divf %45, %46 : vector<32x1xf32>
    %48 = vector.broadcast %40 : vector<32x1xf32> to vector<32x128xf32>
    %49 = arith.subf %32, %48 : vector<32x128xf32>
    %cst_37 = arith.constant 9.99999997E-7 : f32
    %50 = vector.broadcast %cst_37 : f32 to vector<32x1xf32>
    %51 = arith.addf %47, %50 : vector<32x1xf32>
    %52 = math.rsqrt %51 : vector<32x1xf32>
    %53 = vector.broadcast %52 : vector<32x1xf32> to vector<32x128xf32>
    %54 = arith.mulf %49, %53 : vector<32x128xf32>
    %55 = vector.broadcast %34 : vector<1x128xf32> to vector<32x128xf32>
    %56 = arith.mulf %54, %55 : vector<32x128xf32>
    %57 = vector.broadcast %36 : vector<1x128xf32> to vector<32x128xf32>
    %58 = arith.addf %56, %57 : vector<32x128xf32>
    %c0_38 = arith.constant 0 : index
    %c0_39 = arith.constant 0 : index
    %c0_40 = arith.constant 0 : index
    %59 = vector.load %arg9[%c0_38, %c0_39, %c0_40] : memref<1x128x128xf32, #tpu.memory_space<vmem>>, vector<1x128x128xf32>
    %60 = vector.shape_cast %59 : vector<1x128x128xf32> to vector<128x128xf32>
    %cst_41 = arith.constant dense<0.000000e+00> : vector<32x128xf32>
    %61 = tpu.matmul %58, %60, %cst_41 {dimension_numbers = #tpu.dot_dimension_numbers<[1], [0], [0], [1], [0, 0, 1, 1], [], []>} : vector<32x128xf32>, vector<128x128xf32>, vector<32x128xf32> -> vector<32x128xf32>
    %c0_42 = arith.constant 0 : index
    %c0_43 = arith.constant 0 : index
    %c0_44 = arith.constant 0 : index
    %62 = vector.load %arg10[%c0_42, %c0_43, %c0_44] : memref<1x1x128xf32, #tpu.memory_space<vmem>>, vector<1x1x128xf32>
    %63 = vector.shape_cast %62 : vector<1x1x128xf32> to vector<1x128xf32>
    %64 = vector.broadcast %63 : vector<1x128xf32> to vector<32x128xf32>
    %65 = arith.addf %61, %64 : vector<32x128xf32>
    %c0_45 = arith.constant 0 : index
    %c0_46 = arith.constant 0 : index
    %c0_47 = arith.constant 0 : index
    %66 = vector.load %arg11[%c0_45, %c0_46, %c0_47] : memref<1x32x128xf32, #tpu.memory_space<vmem>>, vector<1x32x128xf32>
    %67 = vector.shape_cast %66 : vector<1x32x128xf32> to vector<32x128xf32>
    %c0_48 = arith.constant 0 : index
    %c0_49 = arith.constant 0 : index
    %c0_50 = arith.constant 0 : index
    %68 = vector.load %arg12[%c0_48, %c0_49, %c0_50] : memref<1x32x128xf32, #tpu.memory_space<vmem>>, vector<1x32x128xf32>
    %69 = vector.shape_cast %68 : vector<1x32x128xf32> to vector<32x128xf32>
    %cst_51 = arith.constant dense<0.000000e+00> : vector<32xf32>
    %70 = vector.multi_reduction <add>, %65, %cst_51 [1] : vector<32x128xf32> to vector<32xf32>
    %71 = vector.shape_cast %70 : vector<32xf32> to vector<32x1xf32>
    %cst_52 = arith.constant 1.280000e+02 : f32
    %72 = vector.broadcast %cst_52 : f32 to vector<32x1xf32>
    %73 = arith.divf %71, %72 : vector<32x1xf32>
    %74 = vector.broadcast %73 : vector<32x1xf32> to vector<32x128xf32>
    %75 = arith.subf %65, %74 : vector<32x128xf32>
    %76 = arith.mulf %75, %75 : vector<32x128xf32>
    %cst_53 = arith.constant dense<0.000000e+00> : vector<32xf32>
    %77 = vector.multi_reduction <add>, %76, %cst_53 [1] : vector<32x128xf32> to vector<32xf32>
    %78 = vector.shape_cast %77 : vector<32xf32> to vector<32x1xf32>
    %cst_54 = arith.constant 1.280000e+02 : f32
    %79 = vector.broadcast %cst_54 : f32 to vector<32x1xf32>
    %80 = arith.divf %78, %79 : vector<32x1xf32>
    %81 = vector.broadcast %73 : vector<32x1xf32> to vector<32x128xf32>
    %82 = arith.subf %65, %81 : vector<32x128xf32>
    %cst_55 = arith.constant 9.99999997E-7 : f32
    %83 = vector.broadcast %cst_55 : f32 to vector<32x1xf32>
    %84 = arith.addf %80, %83 : vector<32x1xf32>
    %85 = math.rsqrt %84 : vector<32x1xf32>
    %86 = vector.broadcast %85 : vector<32x1xf32> to vector<32x128xf32>
    %87 = arith.mulf %82, %86 : vector<32x128xf32>
    %88 = arith.mulf %87, %67 : vector<32x128xf32>
    %89 = arith.addf %88, %69 : vector<32x128xf32>
    %cst_56 = arith.constant 0.000000e+00 : f32
    %90 = vector.broadcast %cst_56 : f32 to vector<32x128xf32>
    %91 = arith.maximumf %89, %90 : vector<32x128xf32>
    %c0_57 = arith.constant 0 : index
    %c0_58 = arith.constant 0 : index
    %c0_59 = arith.constant 0 : index
    %92 = vector.load %arg13[%c0_57, %c0_58, %c0_59] : memref<1x128x128xf32, #tpu.memory_space<vmem>>, vector<1x128x128xf32>
    %93 = vector.shape_cast %92 : vector<1x128x128xf32> to vector<128x128xf32>
    %cst_60 = arith.constant dense<0.000000e+00> : vector<32x128xf32>
    %94 = tpu.matmul %91, %93, %cst_60 {dimension_numbers = #tpu.dot_dimension_numbers<[1], [0], [0], [1], [0, 0, 1, 1], [], []>} : vector<32x128xf32>, vector<128x128xf32>, vector<32x128xf32> -> vector<32x128xf32>
    %c0_61 = arith.constant 0 : index
    %c0_62 = arith.constant 0 : index
    %c0_63 = arith.constant 0 : index
    %95 = vector.load %arg14[%c0_61, %c0_62, %c0_63] : memref<1x1x128xf32, #tpu.memory_space<vmem>>, vector<1x1x128xf32>
    %96 = vector.shape_cast %95 : vector<1x1x128xf32> to vector<1x128xf32>
    %97 = vector.broadcast %96 : vector<1x128xf32> to vector<32x128xf32>
    %98 = arith.addf %94, %97 : vector<32x128xf32>
    %99 = arith.addf %98, %58 : vector<32x128xf32>
    %c0_64 = arith.constant 0 : index
    %c0_65 = arith.constant 0 : index
    %c0_66 = arith.constant 0 : index
    %100 = vector.load %arg15[%c0_64, %c0_65, %c0_66] : memref<1x1x128xf32, #tpu.memory_space<vmem>>, vector<1x1x128xf32>
    %101 = vector.shape_cast %100 : vector<1x1x128xf32> to vector<1x128xf32>
    %c0_67 = arith.constant 0 : index
    %c0_68 = arith.constant 0 : index
    %c0_69 = arith.constant 0 : index
    %102 = vector.load %arg16[%c0_67, %c0_68, %c0_69] : memref<1x1x128xf32, #tpu.memory_space<vmem>>, vector<1x1x128xf32>
    %103 = vector.shape_cast %102 : vector<1x1x128xf32> to vector<1x128xf32>
    %cst_70 = arith.constant dense<0.000000e+00> : vector<32xf32>
    %104 = vector.multi_reduction <add>, %99, %cst_70 [1] : vector<32x128xf32> to vector<32xf32>
    %105 = vector.shape_cast %104 : vector<32xf32> to vector<32x1xf32>
    %cst_71 = arith.constant 1.280000e+02 : f32
    %106 = vector.broadcast %cst_71 : f32 to vector<32x1xf32>
    %107 = arith.divf %105, %106 : vector<32x1xf32>
    %108 = vector.broadcast %107 : vector<32x1xf32> to vector<32x128xf32>
    %109 = arith.subf %99, %108 : vector<32x128xf32>
    %110 = arith.mulf %109, %109 : vector<32x128xf32>
    %cst_72 = arith.constant dense<0.000000e+00> : vector<32xf32>
    %111 = vector.multi_reduction <add>, %110, %cst_72 [1] : vector<32x128xf32> to vector<32xf32>
    %112 = vector.shape_cast %111 : vector<32xf32> to vector<32x1xf32>
    %cst_73 = arith.constant 1.280000e+02 : f32
    %113 = vector.broadcast %cst_73 : f32 to vector<32x1xf32>
    %114 = arith.divf %112, %113 : vector<32x1xf32>
    %115 = vector.broadcast %107 : vector<32x1xf32> to vector<32x128xf32>
    %116 = arith.subf %99, %115 : vector<32x128xf32>
    %cst_74 = arith.constant 9.99999997E-7 : f32
    %117 = vector.broadcast %cst_74 : f32 to vector<32x1xf32>
    %118 = arith.addf %114, %117 : vector<32x1xf32>
    %119 = math.rsqrt %118 : vector<32x1xf32>
    %120 = vector.broadcast %119 : vector<32x1xf32> to vector<32x128xf32>
    %121 = arith.mulf %116, %120 : vector<32x128xf32>
    %122 = vector.broadcast %101 : vector<1x128xf32> to vector<32x128xf32>
    %123 = arith.mulf %121, %122 : vector<32x128xf32>
    %124 = vector.broadcast %103 : vector<1x128xf32> to vector<32x128xf32>
    %125 = arith.addf %123, %124 : vector<32x128xf32>
    %c0_75 = arith.constant 0 : index
    %c0_76 = arith.constant 0 : index
    %126 = vector.load %arg18[%c0_75, %c0_76] : memref<32x128xf32, #tpu.memory_space<vmem>>, vector<32x128xf32>
    tpu.vector_store %arg18[%c0_75, %c0_76], %125 {strides = array<i32>} : memref<32x128xf32, #tpu.memory_space<vmem>>, vector<32x128xf32>,
    %c1_i32 = arith.constant 1 : i32
    %127 = arith.cmpi eq, %arg1, %c1_i32 : i32
    %128 = arith.extui %127 : i1 to i32
    %c0_i32_77 = arith.constant 0 : i32
    %129 = arith.cmpi ne, %128, %c0_i32_77 : i32
    scf.if %129 {
      %c0_78 = arith.constant 0 : index
      %c0_79 = arith.constant 0 : index
      %c0_80 = arith.constant 0 : index
      %130 = vector.load %arg17[%c0_78, %c0_79, %c0_80] : memref<1x32x128xf32, #tpu.memory_space<vmem>>, vector<1x32x128xf32>
      %131 = vector.shape_cast %130 : vector<1x32x128xf32> to vector<32x128xf32>
      %132 = vector.shape_cast %125 : vector<32x128xf32> to vector<1x32x128xf32>
      tpu.vector_store %arg17[%c0_78, %c0_79, %c0_80], %132 {strides = array<i32>} : memref<1x32x128xf32, #tpu.memory_space<vmem>>, vector<1x32x128xf32>,
    } else {
    }
    return
  }
  func.func @transform_0(%arg0: i32, %arg1: i32) -> (i32, i32, i32) {
    %c0_i32 = arith.constant 0 : i32
    %c0_i32_0 = arith.constant 0 : i32
    %c0_i32_1 = arith.constant 0 : i32
    return %arg0, %c0_i32, %c0_i32_0 : i32, i32, i32
  }
  func.func @transform_1(%arg0: i32, %arg1: i32) -> (i32, i32, i32, i32) {
    %c0_i32 = arith.constant 0 : i32
    %c0_i32_0 = arith.constant 0 : i32
    %c0_i32_1 = arith.constant 0 : i32
    %c0_i32_2 = arith.constant 0 : i32
    return %arg1, %c0_i32, %c0_i32_0, %c0_i32_1 : i32, i32, i32, i32
  }
  func.func @transform_2(%arg0: i32, %arg1: i32) -> (i32, i32, i32, i32) {
    %c0_i32 = arith.constant 0 : i32
    %c0_i32_0 = arith.constant 0 : i32
    %c0_i32_1 = arith.constant 0 : i32
    %c0_i32_2 = arith.constant 0 : i32
    return %arg1, %c0_i32, %c0_i32_0, %c0_i32_1 : i32, i32, i32, i32
  }
  func.func @transform_3(%arg0: i32, %arg1: i32) -> (i32, i32, i32, i32) {
    %c0_i32 = arith.constant 0 : i32
    %c0_i32_0 = arith.constant 0 : i32
    %c0_i32_1 = arith.constant 0 : i32
    %c0_i32_2 = arith.constant 0 : i32
    return %arg1, %c0_i32, %c0_i32_0, %c0_i32_1 : i32, i32, i32, i32
  }
  func.func @transform_4(%arg0: i32, %arg1: i32) -> (i32, i32, i32, i32) {
    %c0_i32 = arith.constant 0 : i32
    %c0_i32_0 = arith.constant 0 : i32
    %c0_i32_1 = arith.constant 0 : i32
    %c0_i32_2 = arith.constant 0 : i32
    return %arg1, %c0_i32, %c0_i32_0, %c0_i32_1 : i32, i32, i32, i32
  }
  func.func @transform_5(%arg0: i32, %arg1: i32) -> (i32, i32, i32) {
    %c0_i32 = arith.constant 0 : i32
    %c0_i32_0 = arith.constant 0 : i32
    %c0_i32_1 = arith.constant 0 : i32
    return %arg1, %c0_i32, %c0_i32_0 : i32, i32, i32
  }
  func.func @transform_6(%arg0: i32, %arg1: i32) -> (i32, i32, i32) {
    %c0_i32 = arith.constant 0 : i32
    %c0_i32_0 = arith.constant 0 : i32
    %c0_i32_1 = arith.constant 0 : i32
    return %arg1, %c0_i32, %c0_i32_0 : i32, i32, i32
  }
  func.func @transform_7(%arg0: i32, %arg1: i32) -> (i32, i32, i32) {
    %c0_i32 = arith.constant 0 : i32
    %c0_i32_0 = arith.constant 0 : i32
    %c0_i32_1 = arith.constant 0 : i32
    return %arg1, %c0_i32, %c0_i32_0 : i32, i32, i32
  }
  func.func @transform_8(%arg0: i32, %arg1: i32) -> (i32, i32, i32) {
    %c0_i32 = arith.constant 0 : i32
    %c0_i32_0 = arith.constant 0 : i32
    %c0_i32_1 = arith.constant 0 : i32
    return %arg1, %c0_i32, %c0_i32_0 : i32, i32, i32
  }
  func.func @transform_9(%arg0: i32, %arg1: i32) -> (i32, i32, i32) {
    %c0_i32 = arith.constant 0 : i32
    %c0_i32_0 = arith.constant 0 : i32
    %c0_i32_1 = arith.constant 0 : i32
    return %arg1, %c0_i32, %c0_i32_0 : i32, i32, i32
  }
  func.func @transform_10(%arg0: i32, %arg1: i32) -> (i32, i32, i32) {
    %c0_i32 = arith.constant 0 : i32
    %c0_i32_0 = arith.constant 0 : i32
    %c0_i32_1 = arith.constant 0 : i32
    return %arg1, %c0_i32, %c0_i32_0 : i32, i32, i32
  }
  func.func @transform_11(%arg0: i32, %arg1: i32) -> (i32, i32, i32) {
    %c0_i32 = arith.constant 0 : i32
    %c0_i32_0 = arith.constant 0 : i32
    %c0_i32_1 = arith.constant 0 : i32
    return %arg1, %c0_i32, %c0_i32_0 : i32, i32, i32
  }
  func.func @transform_12(%arg0: i32, %arg1: i32) -> (i32, i32, i32) {
    %c0_i32 = arith.constant 0 : i32
    %c0_i32_0 = arith.constant 0 : i32
    %c0_i32_1 = arith.constant 0 : i32
    return %arg1, %c0_i32, %c0_i32_0 : i32, i32, i32
  }
  func.func @transform_13(%arg0: i32, %arg1: i32) -> (i32, i32, i32) {
    %c0_i32 = arith.constant 0 : i32
    %c0_i32_0 = arith.constant 0 : i32
    %c0_i32_1 = arith.constant 0 : i32
    return %arg1, %c0_i32, %c0_i32_0 : i32, i32, i32
  }
  func.func @transform_14(%arg0: i32, %arg1: i32) -> (i32, i32, i32) {
    %c0_i32 = arith.constant 0 : i32
    %c0_i32_0 = arith.constant 0 : i32
    %c0_i32_1 = arith.constant 0 : i32
    return %arg1, %c0_i32, %c0_i32_0 : i32, i32, i32
  }
  func.func @transform_15(%arg0: i32, %arg1: i32) -> (i32, i32, i32) {
    %c0_i32 = arith.constant 0 : i32
    %c0_i32_0 = arith.constant 0 : i32
    %c0_i32_1 = arith.constant 0 : i32
    return %arg0, %c0_i32, %c0_i32_0 : i32, i32, i32
  }
}

</mosaic_0001>

<llo_original>
// kernel: encoder_forward.1
$region0: #{encoder_forward.1}
  #allocation0 [shape = 'u32[]', space=smem, size = 0x4, offset = 0x4, fixed_abs, tag = 'smem constant byte address 0x4 - core index']
  #allocation1 [shape = 'u32[144,128]{1,0:T(1,128)}', space=vmem, size = 0x12000, scoped, tag = 'internal scratch']
  #allocation2 [shape = 'f32[32,128]{1,0:T(8,128)}', space=vmem, size = 0x4000, scoped, tag = 'scratch operand']
  %s0 = inlined_call_operand.vmem [shape: f32[2,32,128], index: 0, kind: input, shape index: {}]
  %s1 = inlined_call_operand.vmem [shape: f32[2,4,128,32], index: 1, kind: input, shape index: {}]
  %s2 = inlined_call_operand.vmem [shape: f32[2,4,128,32], index: 2, kind: input, shape index: {}]
  %s3 = inlined_call_operand.vmem [shape: f32[2,4,128,32], index: 3, kind: input, shape index: {}]
  %s4 = inlined_call_operand.vmem [shape: f32[2,4,32,128], index: 4, kind: input, shape index: {}]
  %s5 = inlined_call_operand.vmem [shape: f32[2,1,128], index: 5, kind: input, shape index: {}]
  %s6 = inlined_call_operand.vmem [shape: f32[2,1,128], index: 6, kind: input, shape index: {}]
  %s7 = inlined_call_operand.vmem [shape: f32[2,128,128], index: 7, kind: input, shape index: {}]
  %s8 = inlined_call_operand.vmem [shape: f32[2,1,128], index: 8, kind: input, shape index: {}]
  %s9 = inlined_call_operand.vmem [shape: f32[2,32,128], index: 9, kind: input, shape index: {}]
  %s10 = inlined_call_operand.vmem [shape: f32[2,32,128], index: 10, kind: input, shape index: {}]
  %s11 = inlined_call_operand.vmem [shape: f32[2,128,128], index: 11, kind: input, shape index: {}]
  %s12 = inlined_call_operand.vmem [shape: f32[2,1,128], index: 12, kind: input, shape index: {}]
  %s13 = inlined_call_operand.vmem [shape: f32[2,1,128], index: 13, kind: input, shape index: {}]
  %s14 = inlined_call_operand.vmem [shape: f32[2,1,128], index: 14, kind: input, shape index: {}]
  %s15 = inlined_call_operand.hbm [shape: f32[2,32,128], index: 15, kind: output, shape index: {}]
  %s16 = sld [smem:[#allocation0]]
  $region101: #{encoder_forward.1} parent=0
    _
  %s18 = ssub.s32 1, %s16
  %s19 = scalar_select 0, %s18, %s16
  $region1: #{encoder_forward.1} parent=0
    #allocation3 [shape = 'u8[32768]{0}', space=vmem, size = 0x8000, scoped, tag = 'output window, operand 0']
    #allocation4 [shape = 's32[2]{0}', space=sflag, size = 0x8, scoped, tag = 'scoped memory for encoder_forward.1']
    %20 = vsyncpa [#allocation4], 0
    %s21 = scalar_lea.sflag [#allocation4], 1
    %22 = vsyncpa %s21, 0
    loop: start=0, step=1, limit=6
    $region2: #{encoder_forward.1} parent=1 // loop_pre_header
      _
    $region3: #{encoder_forward.1} parent=1 // loop_header
      %s24 = sphi 0, %s28
      %p25 = scmp.ge.s32.totalorder %s24, 6
      %s31 = sphi 0, %s43
      %s32 = sphi 0, %s39
      %s33 = sphi 0, %s31
      %s34 = sphi 0, %s32
      %s35 = sphi 0, %s33
      %s36 = sphi 0, %s34
      %s46 = sphi 0, %s48
      %s49 = sphi 0, %s46
      %s50 = sphi 0, %s49
      %s66 = sphi 0, %s50
      %s72 = sphi 0, %s74
      %s75 = sphi 0, %s72
      %s76 = sphi 0, %s75
      %s92 = sphi 0, %s76
      %s98 = sphi 0, %s100
      %s101 = sphi 0, %s98
      %s102 = sphi 0, %s101
      %s118 = sphi 0, %s102
      %s124 = sphi 0, %s126
      %s127 = sphi 0, %s124
      %s128 = sphi 0, %s127
      %s144 = sphi 0, %s128
      %s150 = sphi 0, %s152
      %s153 = sphi 0, %s150
      %s154 = sphi 0, %s153
      %s170 = sphi 0, %s154
      %s176 = sphi 0, %s178
      %s179 = sphi 0, %s176
      %s180 = sphi 0, %s179
      %s196 = sphi 0, %s180
      %s202 = sphi 0, %s204
      %s205 = sphi 0, %s202
      %s206 = sphi 0, %s205
      %s222 = sphi 0, %s206
      %s228 = sphi 0, %s230
      %s231 = sphi 0, %s228
      %s232 = sphi 0, %s231
      %s248 = sphi 0, %s232
      %s254 = sphi 0, %s256
      %s257 = sphi 0, %s254
      %s258 = sphi 0, %s257
      %s274 = sphi 0, %s258
      %s280 = sphi 0, %s282
      %s283 = sphi 0, %s280
      %s284 = sphi 0, %s283
      %s300 = sphi 0, %s284
      %s306 = sphi 0, %s308
      %s309 = sphi 0, %s306
      %s310 = sphi 0, %s309
      %s326 = sphi 0, %s310
      %s332 = sphi 0, %s334
      %s335 = sphi 0, %s332
      %s336 = sphi 0, %s335
      %s352 = sphi 0, %s336
      %s358 = sphi 0, %s360
      %s361 = sphi 0, %s358
      %s362 = sphi 0, %s361
      %s378 = sphi 0, %s362
      %s384 = sphi 0, %s386
      %s387 = sphi 0, %s384
      %s388 = sphi 0, %s387
      %s404 = sphi 0, %s388
      %s410 = sphi 0, %s412
      %s413 = sphi 0, %s410
      %s414 = sphi 0, %s413
      %s430 = sphi 0, %s414
      %s436 = sphi 0, %s438
      %s439 = sphi 0, %s436
      %s440 = sphi 0, %s439
      %s456 = sphi 0, %s440
    $region4: #{encoder_forward.1} parent=1 // loop_header_branch
      %27 = sbr.rel (%p25) target = $region8
    $region5: #{encoder_forward.1} parent=1 // loop_body
      %s29 = ssub.s32 %s24, 1
      %s30 = ssub.s32 %s24, 2
      %s37 = sadd.s32 1, %s32
      %p38 = scmp.ge.s32.totalorder %s37, 2
      %s39 = scalar_select %p38, 0, %s37
      %s40 = sadd.s32 1, %s31
      %s41 = scalar_select %p38, %s40, %s31
      %p42 = scmp.ge.s32.totalorder %s41, 2
      %s43 = scalar_select %p42, 0, %s41
      %s44 = ssub.s32 %s31, %s43
      %p45 = scmp.eq.s32.totalorder %s44, 0
      %s47 = sadd.s32 %s46, 1
      %s48 = scalar_select %p45, %s46, %s47
      %p51 = pneg %p45
      %p52 = scmp.eq.s32.totalorder %s24, 3
      %p53 = por %p51, %p52
      %p54 = scmp.ne.s32.totalorder %s46, %s49
      %p55 = scmp.eq.s32.totalorder %s24, 0
      %p56 = por %p54, %p55
      %p57 = scmp.ne.s32.totalorder %s46, %s49
      %p58 = scmp.eq.s32.totalorder %s29, 3
      %p59 = por %p57, %p58
      %p60 = scmp.ne.s32.totalorder %s49, %s50
      %p61 = scmp.eq.s32.totalorder %s29, 0
      %p62 = por %p60, %p61
      %p63 = scmp.ne.s32.totalorder %s49, %s50
      %p64 = scmp.eq.s32.totalorder %s30, 3
      %p65 = por %p63, %p64
      %p67 = scmp.ne.s32.totalorder %s50, %s66
      %p68 = scmp.eq.s32.totalorder %s30, 0
      %p69 = por %p67, %p68
      %s70 = ssub.s32 %s32, %s39
      %p71 = scmp.eq.s32.totalorder %s70, 0
      %s73 = sadd.s32 %s72, 1
      %s74 = scalar_select %p71, %s72, %s73
      %p77 = pneg %p71
      %p78 = scmp.eq.s32.totalorder %s24, 3
      %p79 = por %p77, %p78
      %p80 = scmp.ne.s32.totalorder %s72, %s75
      %p81 = scmp.eq.s32.totalorder %s24, 0
      %p82 = por %p80, %p81
      %p83 = scmp.ne.s32.totalorder %s72, %s75
      %p84 = scmp.eq.s32.totalorder %s29, 3
      %p85 = por %p83, %p84
      %p86 = scmp.ne.s32.totalorder %s75, %s76
      %p87 = scmp.eq.s32.totalorder %s29, 0
      %p88 = por %p86, %p87
      %p89 = scmp.ne.s32.totalorder %s75, %s76
      %p90 = scmp.eq.s32.totalorder %s30, 3
      %p91 = por %p89, %p90
      %p93 = scmp.ne.s32.totalorder %s76, %s92
      %p94 = scmp.eq.s32.totalorder %s30, 0
      %p95 = por %p93, %p94
      %s96 = ssub.s32 %s32, %s39
      %p97 = scmp.eq.s32.totalorder %s96, 0
      %s99 = sadd.s32 %s98, 1
      %s100 = scalar_select %p97, %s98, %s99
      %p103 = pneg %p97
      %p104 = scmp.eq.s32.totalorder %s24, 3
      %p105 = por %p103, %p104
      %p106 = scmp.ne.s32.totalorder %s98, %s101
      %p107 = scmp.eq.s32.totalorder %s24, 0
      %p108 = por %p106, %p107
      %p109 = scmp.ne.s32.totalorder %s98, %s101
      %p110 = scmp.eq.s32.totalorder %s29, 3
      %p111 = por %p109, %p110
      %p112 = scmp.ne.s32.totalorder %s101, %s102
      %p113 = scmp.eq.s32.totalorder %s29, 0
      %p114 = por %p112, %p113
      %p115 = scmp.ne.s32.totalorder %s101, %s102
      %p116 = scmp.eq.s32.totalorder %s30, 3
      %p117 = por %p115, %p116
      %p119 = scmp.ne.s32.totalorder %s102, %s118
      %p120 = scmp.eq.s32.totalorder %s30, 0
      %p121 = por %p119, %p120
      %s122 = ssub.s32 %s32, %s39
      %p123 = scmp.eq.s32.totalorder %s122, 0
      %s125 = sadd.s32 %s124, 1
      %s126 = scalar_select %p123, %s124, %s125
      %p129 = pneg %p123
      %p130 = scmp.eq.s32.totalorder %s24, 3
      %p131 = por %p129, %p130
      %p132 = scmp.ne.s32.totalorder %s124, %s127
      %p133 = scmp.eq.s32.totalorder %s24, 0
      %p134 = por %p132, %p133
      %p135 = scmp.ne.s32.totalorder %s124, %s127
      %p136 = scmp.eq.s32.totalorder %s29, 3
      %p137 = por %p135, %p136
      %p138 = scmp.ne.s32.totalorder %s127, %s128
      %p139 = scmp.eq.s32.totalorder %s29, 0
      %p140 = por %p138, %p139
      %p141 = scmp.ne.s32.totalorder %s127, %s128
      %p142 = scmp.eq.s32.totalorder %s30, 3
      %p143 = por %p141, %p142
      %p145 = scmp.ne.s32.totalorder %s128, %s144
      %p146 = scmp.eq.s32.totalorder %s30, 0
      %p147 = por %p145, %p146
      %s148 = ssub.s32 %s32, %s39
      %p149 = scmp.eq.s32.totalorder %s148, 0
      %s151 = sadd.s32 %s150, 1
      %s152 = scalar_select %p149, %s150, %s151
      %p155 = pneg %p149
      %p156 = scmp.eq.s32.totalorder %s24, 3
      %p157 = por %p155, %p156
      %p158 = scmp.ne.s32.totalorder %s150, %s153
      %p159 = scmp.eq.s32.totalorder %s24, 0
      %p160 = por %p158, %p159
      %p161 = scmp.ne.s32.totalorder %s150, %s153
      %p162 = scmp.eq.s32.totalorder %s29, 3
      %p163 = por %p161, %p162
      %p164 = scmp.ne.s32.totalorder %s153, %s154
      %p165 = scmp.eq.s32.totalorder %s29, 0
      %p166 = por %p164, %p165
      %p167 = scmp.ne.s32.totalorder %s153, %s154
      %p168 = scmp.eq.s32.totalorder %s30, 3
      %p169 = por %p167, %p168
      %p171 = scmp.ne.s32.totalorder %s154, %s170
      %p172 = scmp.eq.s32.totalorder %s30, 0
      %p173 = por %p171, %p172
      %s174 = ssub.s32 %s32, %s39
      %p175 = scmp.eq.s32.totalorder %s174, 0
      %s177 = sadd.s32 %s176, 1
      %s178 = scalar_select %p175, %s176, %s177
      %p181 = pneg %p175
      %p182 = scmp.eq.s32.totalorder %s24, 3
      %p183 = por %p181, %p182
      %p184 = scmp.ne.s32.totalorder %s176, %s179
      %p185 = scmp.eq.s32.totalorder %s24, 0
      %p186 = por %p184, %p185
      %p187 = scmp.ne.s32.totalorder %s176, %s179
      %p188 = scmp.eq.s32.totalorder %s29, 3
      %p189 = por %p187, %p188
      %p190 = scmp.ne.s32.totalorder %s179, %s180
      %p191 = scmp.eq.s32.totalorder %s29, 0
      %p192 = por %p190, %p191
      %p193 = scmp.ne.s32.totalorder %s179, %s180
      %p194 = scmp.eq.s32.totalorder %s30, 3
      %p195 = por %p193, %p194
      %p197 = scmp.ne.s32.totalorder %s180, %s196
      %p198 = scmp.eq.s32.totalorder %s30, 0
      %p199 = por %p197, %p198
      %s200 = ssub.s32 %s32, %s39
      %p201 = scmp.eq.s32.totalorder %s200, 0
      %s203 = sadd.s32 %s202, 1
      %s204 = scalar_select %p201, %s202, %s203
      %p207 = pneg %p201
      %p208 = scmp.eq.s32.totalorder %s24, 3
      %p209 = por %p207, %p208
      %p210 = scmp.ne.s32.totalorder %s202, %s205
      %p211 = scmp.eq.s32.totalorder %s24, 0
      %p212 = por %p210, %p211
      %p213 = scmp.ne.s32.totalorder %s202, %s205
      %p214 = scmp.eq.s32.totalorder %s29, 3
      %p215 = por %p213, %p214
      %p216 = scmp.ne.s32.totalorder %s205, %s206
      %p217 = scmp.eq.s32.totalorder %s29, 0
      %p218 = por %p216, %p217
      %p219 = scmp.ne.s32.totalorder %s205, %s206
      %p220 = scmp.eq.s32.totalorder %s30, 3
      %p221 = por %p219, %p220
      %p223 = scmp.ne.s32.totalorder %s206, %s222
      %p224 = scmp.eq.s32.totalorder %s30, 0
      %p225 = por %p223, %p224
      %s226 = ssub.s32 %s32, %s39
      %p227 = scmp.eq.s32.totalorder %s226, 0
      %s229 = sadd.s32 %s228, 1
      %s230 = scalar_select %p227, %s228, %s229
      %p233 = pneg %p227
      %p234 = scmp.eq.s32.totalorder %s24, 3
      %p235 = por %p233, %p234
      %p236 = scmp.ne.s32.totalorder %s228, %s231
      %p237 = scmp.eq.s32.totalorder %s24, 0
      %p238 = por %p236, %p237
      %p239 = scmp.ne.s32.totalorder %s228, %s231
      %p240 = scmp.eq.s32.totalorder %s29, 3
      %p241 = por %p239, %p240
      %p242 = scmp.ne.s32.totalorder %s231, %s232
      %p243 = scmp.eq.s32.totalorder %s29, 0
      %p244 = por %p242, %p243
      %p245 = scmp.ne.s32.totalorder %s231, %s232
      %p246 = scmp.eq.s32.totalorder %s30, 3
      %p247 = por %p245, %p246
      %p249 = scmp.ne.s32.totalorder %s232, %s248
      %p250 = scmp.eq.s32.totalorder %s30, 0
      %p251 = por %p249, %p250
      %s252 = ssub.s32 %s32, %s39
      %p253 = scmp.eq.s32.totalorder %s252, 0
      %s255 = sadd.s32 %s254, 1
      %s256 = scalar_select %p253, %s254, %s255
      %p259 = pneg %p253
      %p260 = scmp.eq.s32.totalorder %s24, 3
      %p261 = por %p259, %p260
      %p262 = scmp.ne.s32.totalorder %s254, %s257
      %p263 = scmp.eq.s32.totalorder %s24, 0
      %p264 = por %p262, %p263
      %p265 = scmp.ne.s32.totalorder %s254, %s257
      %p266 = scmp.eq.s32.totalorder %s29, 3
      %p267 = por %p265, %p266
      %p268 = scmp.ne.s32.totalorder %s257, %s258
      %p269 = scmp.eq.s32.totalorder %s29, 0
      %p270 = por %p268, %p269
      %p271 = scmp.ne.s32.totalorder %s257, %s258
      %p272 = scmp.eq.s32.totalorder %s30, 3
      %p273 = por %p271, %p272
      %p275 = scmp.ne.s32.totalorder %s258, %s274
      %p276 = scmp.eq.s32.totalorder %s30, 0
      %p277 = por %p275, %p276
      %s278 = ssub.s32 %s32, %s39
      %p279 = scmp.eq.s32.totalorder %s278, 0
      %s281 = sadd.s32 %s280, 1
      %s282 = scalar_select %p279, %s280, %s281
      %p285 = pneg %p279
      %p286 = scmp.eq.s32.totalorder %s24, 3
      %p287 = por %p285, %p286
      %p288 = scmp.ne.s32.totalorder %s280, %s283
      %p289 = scmp.eq.s32.totalorder %s24, 0
      %p290 = por %p288, %p289
      %p291 = scmp.ne.s32.totalorder %s280, %s283
      %p292 = scmp.eq.s32.totalorder %s29, 3
      %p293 = por %p291, %p292
      %p294 = scmp.ne.s32.totalorder %s283, %s284
      %p295 = scmp.eq.s32.totalorder %s29, 0
      %p296 = por %p294, %p295
      %p297 = scmp.ne.s32.totalorder %s283, %s284
      %p298 = scmp.eq.s32.totalorder %s30, 3
      %p299 = por %p297, %p298
      %p301 = scmp.ne.s32.totalorder %s284, %s300
      %p302 = scmp.eq.s32.totalorder %s30, 0
      %p303 = por %p301, %p302
      %s304 = ssub.s32 %s32, %s39
      %p305 = scmp.eq.s32.totalorder %s304, 0
      %s307 = sadd.s32 %s306, 1
      %s308 = scalar_select %p305, %s306, %s307
      %p311 = pneg %p305
      %p312 = scmp.eq.s32.totalorder %s24, 3
      %p313 = por %p311, %p312
      %p314 = scmp.ne.s32.totalorder %s306, %s309
      %p315 = scmp.eq.s32.totalorder %s24, 0
      %p316 = por %p314, %p315
      %p317 = scmp.ne.s32.totalorder %s306, %s309
      %p318 = scmp.eq.s32.totalorder %s29, 3
      %p319 = por %p317, %p318
      %p320 = scmp.ne.s32.totalorder %s309, %s310
      %p321 = scmp.eq.s32.totalorder %s29, 0
      %p322 = por %p320, %p321
      %p323 = scmp.ne.s32.totalorder %s309, %s310
      %p324 = scmp.eq.s32.totalorder %s30, 3
      %p325 = por %p323, %p324
      %p327 = scmp.ne.s32.totalorder %s310, %s326
      %p328 = scmp.eq.s32.totalorder %s30, 0
      %p329 = por %p327, %p328
      %s330 = ssub.s32 %s32, %s39
      %p331 = scmp.eq.s32.totalorder %s330, 0
      %s333 = sadd.s32 %s332, 1
      %s334 = scalar_select %p331, %s332, %s333
      %p337 = pneg %p331
      %p338 = scmp.eq.s32.totalorder %s24, 3
      %p339 = por %p337, %p338
      %p340 = scmp.ne.s32.totalorder %s332, %s335
      %p341 = scmp.eq.s32.totalorder %s24, 0
      %p342 = por %p340, %p341
      %p343 = scmp.ne.s32.totalorder %s332, %s335
      %p344 = scmp.eq.s32.totalorder %s29, 3
      %p345 = por %p343, %p344
      %p346 = scmp.ne.s32.totalorder %s335, %s336
      %p347 = scmp.eq.s32.totalorder %s29, 0
      %p348 = por %p346, %p347
      %p349 = scmp.ne.s32.totalorder %s335, %s336
      %p350 = scmp.eq.s32.totalorder %s30, 3
      %p351 = por %p349, %p350
      %p353 = scmp.ne.s32.totalorder %s336, %s352
      %p354 = scmp.eq.s32.totalorder %s30, 0
      %p355 = por %p353, %p354
      %s356 = ssub.s32 %s32, %s39
      %p357 = scmp.eq.s32.totalorder %s356, 0
      %s359 = sadd.s32 %s358, 1
      %s360 = scalar_select %p357, %s358, %s359
      %p363 = pneg %p357
      %p364 = scmp.eq.s32.totalorder %s24, 3
      %p365 = por %p363, %p364
      %p366 = scmp.ne.s32.totalorder %s358, %s361
      %p367 = scmp.eq.s32.totalorder %s24, 0
      %p368 = por %p366, %p367
      %p369 = scmp.ne.s32.totalorder %s358, %s361
      %p370 = scmp.eq.s32.totalorder %s29, 3
      %p371 = por %p369, %p370
      %p372 = scmp.ne.s32.totalorder %s361, %s362
      %p373 = scmp.eq.s32.totalorder %s29, 0
      %p374 = por %p372, %p373
      %p375 = scmp.ne.s32.totalorder %s361, %s362
      %p376 = scmp.eq.s32.totalorder %s30, 3
      %p377 = por %p375, %p376
      %p379 = scmp.ne.s32.totalorder %s362, %s378
      %p380 = scmp.eq.s32.totalorder %s30, 0
      %p381 = por %p379, %p380
      %s382 = ssub.s32 %s32, %s39
      %p383 = scmp.eq.s32.totalorder %s382, 0
      %s385 = sadd.s32 %s384, 1
      %s386 = scalar_select %p383, %s384, %s385
      %p389 = pneg %p383
      %p390 = scmp.eq.s32.totalorder %s24, 3
      %p391 = por %p389, %p390
      %p392 = scmp.ne.s32.totalorder %s384, %s387
      %p393 = scmp.eq.s32.totalorder %s24, 0
      %p394 = por %p392, %p393
      %p395 = scmp.ne.s32.totalorder %s384, %s387
      %p396 = scmp.eq.s32.totalorder %s29, 3
      %p397 = por %p395, %p396
      %p398 = scmp.ne.s32.totalorder %s387, %s388
      %p399 = scmp.eq.s32.totalorder %s29, 0
      %p400 = por %p398, %p399
      %p401 = scmp.ne.s32.totalorder %s387, %s388
      %p402 = scmp.eq.s32.totalorder %s30, 3
      %p403 = por %p401, %p402
      %p405 = scmp.ne.s32.totalorder %s388, %s404
      %p406 = scmp.eq.s32.totalorder %s30, 0
      %p407 = por %p405, %p406
      %s408 = ssub.s32 %s32, %s39
      %p409 = scmp.eq.s32.totalorder %s408, 0
      %s411 = sadd.s32 %s410, 1
      %s412 = scalar_select %p409, %s410, %s411
      %p415 = pneg %p409
      %p416 = scmp.eq.s32.totalorder %s24, 3
      %p417 = por %p415, %p416
      %p418 = scmp.ne.s32.totalorder %s410, %s413
      %p419 = scmp.eq.s32.totalorder %s24, 0
      %p420 = por %p418, %p419
      %p421 = scmp.ne.s32.totalorder %s410, %s413
      %p422 = scmp.eq.s32.totalorder %s29, 3
      %p423 = por %p421, %p422
      %p424 = scmp.ne.s32.totalorder %s413, %s414
      %p425 = scmp.eq.s32.totalorder %s29, 0
      %p426 = por %p424, %p425
      %p427 = scmp.ne.s32.totalorder %s413, %s414
      %p428 = scmp.eq.s32.totalorder %s30, 3
      %p429 = por %p427, %p428
      %p431 = scmp.ne.s32.totalorder %s414, %s430
      %p432 = scmp.eq.s32.totalorder %s30, 0
      %p433 = por %p431, %p432
      %s434 = ssub.s32 %s31, %s43
      %p435 = scmp.eq.s32.totalorder %s434, 0
      %s437 = sadd.s32 %s436, 1
      %s438 = scalar_select %p435, %s436, %s437
      %p441 = pneg %p435
      %p442 = scmp.eq.s32.totalorder %s24, 3
      %p443 = por %p441, %p442
      %p444 = scmp.ne.s32.totalorder %s436, %s439
      %p445 = scmp.eq.s32.totalorder %s24, 0
      %p446 = por %p444, %p445
      %p447 = scmp.ne.s32.totalorder %s436, %s439
      %p448 = scmp.eq.s32.totalorder %s29, 3
      %p449 = por %p447, %p448
      %p450 = scmp.ne.s32.totalorder %s439, %s440
      %p451 = scmp.eq.s32.totalorder %s29, 0
      %p452 = por %p450, %p451
      %p453 = scmp.ne.s32.totalorder %s439, %s440
      %p454 = scmp.eq.s32.totalorder %s30, 3
      %p455 = por %p453, %p454
      %p457 = scmp.ne.s32.totalorder %s440, %s456
      %p458 = scmp.eq.s32.totalorder %s30, 0
      %p459 = por %p457, %p458
      %p460 = scmp.le.s32.totalorder 1, %s24
      %p461 = scmp.lt.s32.totalorder %s24, 5
      %p462 = pnand %p460, %p461
      %p463 = pneg %p462
      // Predicated region
      $region9: #{encoder_forward.1} parent=5 // pred_check
        _
      $region10: #{encoder_forward.1} parent=5 // pred_check_branch
        %465 = sbr.rel (%p462) target = $region12
      $region11: #{encoder_forward.1} parent=5 // pred_region
        %s466 = ssub.s32 %s24, 1
      $region12: #{encoder_forward.1} parent=5 // pred_fallthru
        _
      %p467 = scmp.lt.s32.totalorder %s24, 4
      // Predicated region
      $region13: #{encoder_forward.1} parent=5 // pred_check
        %p468 = pneg %p467
      $region14: #{encoder_forward.1} parent=5 // pred_check_branch
        %470 = sbr.rel (%p468) target = $region16
      $region15: #{encoder_forward.1} parent=5 // pred_region
        // Predicated region
        $region17: #{encoder_forward.1} parent=15 // pred_check
          %p471 = pneg %p56
        $region18: #{encoder_forward.1} parent=15 // pred_check_branch
          %473 = sbr.rel (%p471) target = $region20
        $region19: #{encoder_forward.1} parent=15 // pred_region
          %p474 = scmp.lt.s32.totalorder %s31, 1
          %s475 = scalar_select %p474, %s31, 1
          %s476 = smul.addr %s475, 4
          %s477 = smul.addr %s476, 8
          %s478 = scalar_lea.vmem %s0, %s477
        $region20: #{encoder_forward.1} parent=15 // pred_fallthru
          _
        // Predicated region
        $region21: #{encoder_forward.1} parent=15 // pred_check
          %p479 = pneg %p82
        $region22: #{encoder_forward.1} parent=15 // pred_check_branch
          %481 = sbr.rel (%p479) target = $region24
        $region23: #{encoder_forward.1} parent=15 // pred_region
          %p482 = scmp.lt.s32.totalorder %s32, 1
          %s483 = scalar_select %p482, %s32, 1
          %s484 = smul.addr %s483, 64
          %s485 = smul.addr %s484, 8
          %s486 = scalar_lea.vmem %s1, %s485
        $region24: #{encoder_forward.1} parent=15 // pred_fallthru
          _
        // Predicated region
        $region25: #{encoder_forward.1} parent=15 // pred_check
          %p487 = pneg %p108
        $region26: #{encoder_forward.1} parent=15 // pred_check_branch
          %489 = sbr.rel (%p487) target = $region28
        $region27: #{encoder_forward.1} parent=15 // pred_region
          %p490 = scmp.lt.s32.totalorder %s32, 1
          %s491 = scalar_select %p490, %s32, 1
          %s492 = smul.addr %s491, 64
          %s493 = smul.addr %s492, 8
          %s494 = scalar_lea.vmem %s2, %s493
        $region28: #{encoder_forward.1} parent=15 // pred_fallthru
          _
        // Predicated region
        $region29: #{encoder_forward.1} parent=15 // pred_check
          %p495 = pneg %p134
        $region30: #{encoder_forward.1} parent=15 // pred_check_branch
          %497 = sbr.rel (%p495) target = $region32
        $region31: #{encoder_forward.1} parent=15 // pred_region
          %p498 = scmp.lt.s32.totalorder %s32, 1
          %s499 = scalar_select %p498, %s32, 1
          %s500 = smul.addr %s499, 64
          %s501 = smul.addr %s500, 8
          %s502 = scalar_lea.vmem %s3, %s501
        $region32: #{encoder_forward.1} parent=15 // pred_fallthru
          _
        // Predicated region
        $region33: #{encoder_forward.1} parent=15 // pred_check
          %p503 = pneg %p160
        $region34: #{encoder_forward.1} parent=15 // pred_check_branch
          %505 = sbr.rel (%p503) target = $region36
        $region35: #{encoder_forward.1} parent=15 // pred_region
          %p506 = scmp.lt.s32.totalorder %s32, 1
          %s507 = scalar_select %p506, %s32, 1
          %s508 = smul.addr %s507, 16
          %s509 = smul.addr %s508, 8
          %s510 = scalar_lea.vmem %s4, %s509
        $region36: #{encoder_forward.1} parent=15 // pred_fallthru
          _
        // Predicated region
        $region37: #{encoder_forward.1} parent=15 // pred_check
          %p511 = pneg %p186
        $region38: #{encoder_forward.1} parent=15 // pred_check_branch
          %513 = sbr.rel (%p511) target = $region40
        $region39: #{encoder_forward.1} parent=15 // pred_region
          %p514 = scmp.lt.s32.totalorder %s32, 1
          %s515 = scalar_select %p514, %s32, 1
          %s516 = scalar_lea.vmem %s5, %s515
        $region40: #{encoder_forward.1} parent=15 // pred_fallthru
          _
        // Predicated region
        $region41: #{encoder_forward.1} parent=15 // pred_check
          %p517 = pneg %p212
        $region42: #{encoder_forward.1} parent=15 // pred_check_branch
          %519 = sbr.rel (%p517) target = $region44
        $region43: #{encoder_forward.1} parent=15 // pred_region
          %p520 = scmp.lt.s32.totalorder %s32, 1
          %s521 = scalar_select %p520, %s32, 1
          %s522 = scalar_lea.vmem %s6, %s521
        $region44: #{encoder_forward.1} parent=15 // pred_fallthru
          _
        // Predicated region
        $region45: #{encoder_forward.1} parent=15 // pred_check
          %p523 = pneg %p238
        $region46: #{encoder_forward.1} parent=15 // pred_check_branch
          %525 = sbr.rel (%p523) target = $region48
        $region47: #{encoder_forward.1} parent=15 // pred_region
          %p526 = scmp.lt.s32.totalorder %s32, 1
          %s527 = scalar_select %p526, %s32, 1
          %s528 = smul.addr %s527, 16
          %s529 = smul.addr %s528, 8
          %s530 = scalar_lea.vmem %s7, %s529
        $region48: #{encoder_forward.1} parent=15 // pred_fallthru
          _
        // Predicated region
        $region49: #{encoder_forward.1} parent=15 // pred_check
          %p531 = pneg %p264
        $region50: #{encoder_forward.1} parent=15 // pred_check_branch
          %533 = sbr.rel (%p531) target = $region52
        $region51: #{encoder_forward.1} parent=15 // pred_region
          %p534 = scmp.lt.s32.totalorder %s32, 1
          %s535 = scalar_select %p534, %s32, 1
          %s536 = scalar_lea.vmem %s8, %s535
        $region52: #{encoder_forward.1} parent=15 // pred_fallthru
          _
        // Predicated region
        $region53: #{encoder_forward.1} parent=15 // pred_check
          %p537 = pneg %p290
        $region54: #{encoder_forward.1} parent=15 // pred_check_branch
          %539 = sbr.rel (%p537) target = $region56
        $region55: #{encoder_forward.1} parent=15 // pred_region
          %p540 = scmp.lt.s32.totalorder %s32, 1
          %s541 = scalar_select %p540, %s32, 1
          %s542 = smul.addr %s541, 4
          %s543 = smul.addr %s542, 8
          %s544 = scalar_lea.vmem %s9, %s543
        $region56: #{encoder_forward.1} parent=15 // pred_fallthru
          _
        // Predicated region
        $region57: #{encoder_forward.1} parent=15 // pred_check
          %p545 = pneg %p316
        $region58: #{encoder_forward.1} parent=15 // pred_check_branch
          %547 = sbr.rel (%p545) target = $region60
        $region59: #{encoder_forward.1} parent=15 // pred_region
          %p548 = scmp.lt.s32.totalorder %s32, 1
          %s549 = scalar_select %p548, %s32, 1
          %s550 = smul.addr %s549, 4
          %s551 = smul.addr %s550, 8
          %s552 = scalar_lea.vmem %s10, %s551
        $region60: #{encoder_forward.1} parent=15 // pred_fallthru
          _
        // Predicated region
        $region61: #{encoder_forward.1} parent=15 // pred_check
          %p553 = pneg %p342
        $region62: #{encoder_forward.1} parent=15 // pred_check_branch
          %555 = sbr.rel (%p553) target = $region64
        $region63: #{encoder_forward.1} parent=15 // pred_region
          %p556 = scmp.lt.s32.totalorder %s32, 1
          %s557 = scalar_select %p556, %s32, 1
          %s558 = smul.addr %s557, 16
          %s559 = smul.addr %s558, 8
          %s560 = scalar_lea.vmem %s11, %s559
        $region64: #{encoder_forward.1} parent=15 // pred_fallthru
          _
        // Predicated region
        $region65: #{encoder_forward.1} parent=15 // pred_check
          %p561 = pneg %p368
        $region66: #{encoder_forward.1} parent=15 // pred_check_branch
          %563 = sbr.rel (%p561) target = $region68
        $region67: #{encoder_forward.1} parent=15 // pred_region
          %p564 = scmp.lt.s32.totalorder %s32, 1
          %s565 = scalar_select %p564, %s32, 1
          %s566 = scalar_lea.vmem %s12, %s565
        $region68: #{encoder_forward.1} parent=15 // pred_fallthru
          _
        // Predicated region
        $region69: #{encoder_forward.1} parent=15 // pred_check
          %p567 = pneg %p394
        $region70: #{encoder_forward.1} parent=15 // pred_check_branch
          %569 = sbr.rel (%p567) target = $region72
        $region71: #{encoder_forward.1} parent=15 // pred_region
          %p570 = scmp.lt.s32.totalorder %s32, 1
          %s571 = scalar_select %p570, %s32, 1
          %s572 = scalar_lea.vmem %s13, %s571
        $region72: #{encoder_forward.1} parent=15 // pred_fallthru
          _
        // Predicated region
        $region73: #{encoder_forward.1} parent=15 // pred_check
          %p573 = pneg %p420
        $region74: #{encoder_forward.1} parent=15 // pred_check_branch
          %575 = sbr.rel (%p573) target = $region76
        $region75: #{encoder_forward.1} parent=15 // pred_region
          %p576 = scmp.lt.s32.totalorder %s32, 1
          %s577 = scalar_select %p576, %s32, 1
          %s578 = scalar_lea.vmem %s14, %s577
        $region76: #{encoder_forward.1} parent=15 // pred_fallthru
          _
      $region16: #{encoder_forward.1} parent=5 // pred_fallthru
        _
      %p579 = scmp.le.s32.totalorder 1, %s24
      %p580 = scmp.lt.s32.totalorder %s24, 5
      %p581 = pnand %p579, %p580
      %p582 = pneg %p581
      // Predicated region
      $region77: #{encoder_forward.1} parent=5 // pred_check
        _
      $region78: #{encoder_forward.1} parent=5 // pred_check_branch
        %584 = sbr.rel (%p581) target = $region80
      $region79: #{encoder_forward.1} parent=5 // pred_region
        %s585 = ssub.s32 %s24, 1
        %p586 = scmp.lt.s32.totalorder %s33, 1
        %s587 = scalar_select %p586, %s33, 1
        %s588 = smul.addr %s587, 4
        %s589 = smul.addr %s588, 8
        %s590 = scalar_lea.vmem %s0, %s589
        %p591 = pneg %p62
        %p592 = pneg %p59
        %p593 = scmp.lt.s32.totalorder %s34, 1
        %s594 = scalar_select %p593, %s34, 1
        %s595 = smul.addr %s594, 64
        %s596 = smul.addr %s595, 8
        %s597 = scalar_lea.vmem %s1, %s596
        %p598 = pneg %p88
        %p599 = pneg %p85
        %p600 = scmp.lt.s32.totalorder %s34, 1
        %s601 = scalar_select %p600, %s34, 1
        %s602 = smul.addr %s601, 64
        %s603 = smul.addr %s602, 8
        %s604 = scalar_lea.vmem %s2, %s603
        %p605 = pneg %p114
        %p606 = pneg %p111
        %p607 = scmp.lt.s32.totalorder %s34, 1
        %s608 = scalar_select %p607, %s34, 1
        %s609 = smul.addr %s608, 64
        %s610 = smul.addr %s609, 8
        %s611 = scalar_lea.vmem %s3, %s610
        %p612 = pneg %p140
        %p613 = pneg %p137
        %p614 = scmp.lt.s32.totalorder %s34, 1
        %s615 = scalar_select %p614, %s34, 1
        %s616 = smul.addr %s615, 16
        %s617 = smul.addr %s616, 8
        %s618 = scalar_lea.vmem %s4, %s617
        %p619 = pneg %p166
        %p620 = pneg %p163
        %p621 = scmp.lt.s32.totalorder %s34, 1
        %s622 = scalar_select %p621, %s34, 1
        %s623 = scalar_lea.vmem %s5, %s622
        %p624 = pneg %p192
        %p625 = pneg %p189
        %p626 = scmp.lt.s32.totalorder %s34, 1
        %s627 = scalar_select %p626, %s34, 1
        %s628 = scalar_lea.vmem %s6, %s627
        %p629 = pneg %p218
        %p630 = pneg %p215
        %p631 = scmp.lt.s32.totalorder %s34, 1
        %s632 = scalar_select %p631, %s34, 1
        %s633 = smul.addr %s632, 16
        %s634 = smul.addr %s633, 8
        %s635 = scalar_lea.vmem %s7, %s634
        %p636 = pneg %p244
        %p637 = pneg %p241
        %p638 = scmp.lt.s32.totalorder %s34, 1
        %s639 = scalar_select %p638, %s34, 1
        %s640 = scalar_lea.vmem %s8, %s639
        %p641 = pneg %p270
        %p642 = pneg %p267
        %p643 = scmp.lt.s32.totalorder %s34, 1
        %s644 = scalar_select %p643, %s34, 1
        %s645 = smul.addr %s644, 4
        %s646 = smul.addr %s645, 8
        %s647 = scalar_lea.vmem %s9, %s646
        %p648 = pneg %p296
        %p649 = pneg %p293
        %p650 = scmp.lt.s32.totalorder %s34, 1
        %s651 = scalar_select %p650, %s34, 1
        %s652 = smul.addr %s651, 4
        %s653 = smul.addr %s652, 8
        %s654 = scalar_lea.vmem %s10, %s653
        %p655 = pneg %p322
        %p656 = pneg %p319
        %p657 = scmp.lt.s32.totalorder %s34, 1
        %s658 = scalar_select %p657, %s34, 1
        %s659 = smul.addr %s658, 16
        %s660 = smul.addr %s659, 8
        %s661 = scalar_lea.vmem %s11, %s660
        %p662 = pneg %p348
        %p663 = pneg %p345
        %p664 = scmp.lt.s32.totalorder %s34, 1
        %s665 = scalar_select %p664, %s34, 1
        %s666 = scalar_lea.vmem %s12, %s665
        %p667 = pneg %p374
        %p668 = pneg %p371
        %p669 = scmp.lt.s32.totalorder %s34, 1
        %s670 = scalar_select %p669, %s34, 1
        %s671 = scalar_lea.vmem %s13, %s670
        %p672 = pneg %p400
        %p673 = pneg %p397
        %p674 = scmp.lt.s32.totalorder %s34, 1
        %s675 = scalar_select %p674, %s34, 1
        %s676 = scalar_lea.vmem %s14, %s675
        %p677 = pneg %p426
        %p678 = pneg %p423
        %p679 = pneg %p452
        %p680 = pneg %p449
        %s681 = sand.u32 %s439, 1
        %s682 = scalar_lea.sflag [#allocation4], %s681
        %s683 = sand.u32 %s439, 1
        %s684 = smul.addr %s683, 32
        %s685 = scalar_lea.vmem [#allocation3], %s684
        %p686 = scmp.lt.s32.totalorder %s33, 1
        %s687 = scalar_select %p686, %s33, 1
        %s688 = smul.addr %s687, 4
        %s689 = smul.addr %s688, 8
        %s690 = scalar_lea.vmem %s0, %s689
        %p691 = scmp.lt.s32.totalorder %s34, 1
        %s692 = scalar_select %p691, %s34, 1
        %s693 = smul.addr %s692, 64
        %s694 = smul.addr %s693, 8
        %s695 = scalar_lea.vmem %s1, %s694
        %p696 = scmp.lt.s32.totalorder %s34, 1
        %s697 = scalar_select %p696, %s34, 1
        %s698 = smul.addr %s697, 64
        %s699 = smul.addr %s698, 8
        %s700 = scalar_lea.vmem %s2, %s699
        %p701 = scmp.lt.s32.totalorder %s34, 1
        %s702 = scalar_select %p701, %s34, 1
        %s703 = smul.addr %s702, 64
        %s704 = smul.addr %s703, 8
        %s705 = scalar_lea.vmem %s3, %s704
        %p706 = scmp.lt.s32.totalorder %s34, 1
        %s707 = scalar_select %p706, %s34, 1
        %s708 = smul.addr %s707, 16
        %s709 = smul.addr %s708, 8
        %s710 = scalar_lea.vmem %s4, %s709
        %p711 = scmp.lt.s32.totalorder %s34, 1
        %s712 = scalar_select %p711, %s34, 1
        %s713 = scalar_lea.vmem %s5, %s712
        %p714 = scmp.lt.s32.totalorder %s34, 1
        %s715 = scalar_select %p714, %s34, 1
        %s716 = scalar_lea.vmem %s6, %s715
        %p717 = scmp.lt.s32.totalorder %s34, 1
        %s718 = scalar_select %p717, %s34, 1
        %s719 = smul.addr %s718, 16
        %s720 = smul.addr %s719, 8
        %s721 = scalar_lea.vmem %s7, %s720
        %p722 = scmp.lt.s32.totalorder %s34, 1
        %s723 = scalar_select %p722, %s34, 1
        %s724 = scalar_lea.vmem %s8, %s723
        %p725 = scmp.lt.s32.totalorder %s34, 1
        %s726 = scalar_select %p725, %s34, 1
        %s727 = smul.addr %s726, 4
        %s728 = smul.addr %s727, 8
        %s729 = scalar_lea.vmem %s9, %s728
        %p730 = scmp.lt.s32.totalorder %s34, 1
        %s731 = scalar_select %p730, %s34, 1
        %s732 = smul.addr %s731, 4
        %s733 = smul.addr %s732, 8
        %s734 = scalar_lea.vmem %s10, %s733
        %p735 = scmp.lt.s32.totalorder %s34, 1
        %s736 = scalar_select %p735, %s34, 1
        %s737 = smul.addr %s736, 16
        %s738 = smul.addr %s737, 8
        %s739 = scalar_lea.vmem %s11, %s738
        %p740 = scmp.lt.s32.totalorder %s34, 1
        %s741 = scalar_select %p740, %s34, 1
        %s742 = scalar_lea.vmem %s12, %s741
        %p743 = scmp.lt.s32.totalorder %s34, 1
        %s744 = scalar_select %p743, %s34, 1
        %s745 = scalar_lea.vmem %s13, %s744
        %p746 = scmp.lt.s32.totalorder %s34, 1
        %s747 = scalar_select %p746, %s34, 1
        %s748 = scalar_lea.vmem %s14, %s747
        %p749 = scmp.eq.s32.totalorder %s34, 0
        // Predicated region
        $region81: #{encoder_forward.1} parent=79 // pred_check
          %p750 = pneg %p749
        $region82: #{encoder_forward.1} parent=79 // pred_check_branch
          %752 = sbr.rel (%p750) target = $region84
        $region83: #{encoder_forward.1} parent=79 // pred_region
          %v753 = vld [vmem:[%s690] sm:$0xff]
          %v754 = vld [vmem:[%s690 + $0x8] sm:$0xff]
          %v755 = vld [vmem:[%s690 + $0x10] sm:$0xff]
          %v756 = vld [vmem:[%s690 + $0x18] sm:$0xff]
          %757 = vst [vmem:[#allocation2] sm:$0xff] %v753
          %758 = vst [vmem:[#allocation2 + $0x8] sm:$0xff] %v754
          %759 = vst [vmem:[#allocation2 + $0x10] sm:$0xff] %v755
          %760 = vst [vmem:[#allocation2 + $0x18] sm:$0xff] %v756
        $region84: #{encoder_forward.1} parent=79 // pred_fallthru
          _
        %v761 = vld [vmem:[#allocation2] sm:$0xff]
        %v762 = vld [vmem:[#allocation2 + $0x8] sm:$0xff]
        %v763 = vld [vmem:[#allocation2 + $0x10] sm:$0xff]
        %v764 = vld [vmem:[#allocation2 + $0x18] sm:$0xff]
        %v765 = vld [vmem:[%s695] sm:$0xff]
        %v766 = vld [vmem:[%s695 + $0x8] sm:$0xff]
        %v767 = vld [vmem:[%s695 + $0x10] sm:$0xff]
        %v768 = vld [vmem:[%s695 + $0x18] sm:$0xff]
        %v769 = vld [vmem:[%s695 + $0x20] sm:$0xff]
        %v770 = vld [vmem:[%s695 + $0x28] sm:$0xff]
        %v771 = vld [vmem:[%s695 + $0x30] sm:$0xff]
        %v772 = vld [vmem:[%s695 + $0x38] sm:$0xff]
        %v773 = vld [vmem:[%s695 + $0x40] sm:$0xff]
        %v774 = vld [vmem:[%s695 + $0x48] sm:$0xff]
        %v775 = vld [vmem:[%s695 + $0x50] sm:$0xff]
        %v776 = vld [vmem:[%s695 + $0x58] sm:$0xff]
        %v777 = vld [vmem:[%s695 + $0x60] sm:$0xff]
        %v778 = vld [vmem:[%s695 + $0x68] sm:$0xff]
        %v779 = vld [vmem:[%s695 + $0x70] sm:$0xff]
        %v780 = vld [vmem:[%s695 + $0x78] sm:$0xff]
        %v781 = vld [vmem:[%s695 + $0x80] sm:$0xff]
        %v782 = vld [vmem:[%s695 + $0x88] sm:$0xff]
        %v783 = vld [vmem:[%s695 + $0x90] sm:$0xff]
        %v784 = vld [vmem:[%s695 + $0x98] sm:$0xff]
        %v785 = vld [vmem:[%s695 + $0xa0] sm:$0xff]
        %v786 = vld [vmem:[%s695 + $0xa8] sm:$0xff]
        %v787 = vld [vmem:[%s695 + $0xb0] sm:$0xff]
        %v788 = vld [vmem:[%s695 + $0xb8] sm:$0xff]
        %v789 = vld [vmem:[%s695 + $0xc0] sm:$0xff]
        %v790 = vld [vmem:[%s695 + $0xc8] sm:$0xff]
        %v791 = vld [vmem:[%s695 + $0xd0] sm:$0xff]
        %v792 = vld [vmem:[%s695 + $0xd8] sm:$0xff]
        %v793 = vld [vmem:[%s695 + $0xe0] sm:$0xff]
        %v794 = vld [vmem:[%s695 + $0xe8] sm:$0xff]
        %v795 = vld [vmem:[%s695 + $0xf0] sm:$0xff]
        %v796 = vld [vmem:[%s695 + $0xf8] sm:$0xff]
        %v797 = vld [vmem:[%s695 + $0x100] sm:$0xff]
        %v798 = vld [vmem:[%s695 + $0x108] sm:$0xff]
        %v799 = vld [vmem:[%s695 + $0x110] sm:$0xff]
        %v800 = vld [vmem:[%s695 + $0x118] sm:$0xff]
        %v801 = vld [vmem:[%s695 + $0x120] sm:$0xff]
        %v802 = vld [vmem:[%s695 + $0x128] sm:$0xff]
        %v803 = vld [vmem:[%s695 + $0x130] sm:$0xff]
        %v804 = vld [vmem:[%s695 + $0x138] sm:$0xff]
        %v805 = vld [vmem:[%s695 + $0x140] sm:$0xff]
        %v806 = vld [vmem:[%s695 + $0x148] sm:$0xff]
        %v807 = vld [vmem:[%s695 + $0x150] sm:$0xff]
        %v808 = vld [vmem:[%s695 + $0x158] sm:$0xff]
        %v809 = vld [vmem:[%s695 + $0x160] sm:$0xff]
        %v810 = vld [vmem:[%s695 + $0x168] sm:$0xff]
        %v811 = vld [vmem:[%s695 + $0x170] sm:$0xff]
        %v812 = vld [vmem:[%s695 + $0x178] sm:$0xff]
        %v813 = vld [vmem:[%s695 + $0x180] sm:$0xff]
        %v814 = vld [vmem:[%s695 + $0x188] sm:$0xff]
        %v815 = vld [vmem:[%s695 + $0x190] sm:$0xff]
        %v816 = vld [vmem:[%s695 + $0x198] sm:$0xff]
        %v817 = vld [vmem:[%s695 + $0x1a0] sm:$0xff]
        %v818 = vld [vmem:[%s695 + $0x1a8] sm:$0xff]
        %v819 = vld [vmem:[%s695 + $0x1b0] sm:$0xff]
        %v820 = vld [vmem:[%s695 + $0x1b8] sm:$0xff]
        %v821 = vld [vmem:[%s695 + $0x1c0] sm:$0xff]
        %v822 = vld [vmem:[%s695 + $0x1c8] sm:$0xff]
        %v823 = vld [vmem:[%s695 + $0x1d0] sm:$0xff]
        %v824 = vld [vmem:[%s695 + $0x1d8] sm:$0xff]
        %v825 = vld [vmem:[%s695 + $0x1e0] sm:$0xff]
        %v826 = vld [vmem:[%s695 + $0x1e8] sm:$0xff]
        %v827 = vld [vmem:[%s695 + $0x1f0] sm:$0xff]
        %v828 = vld [vmem:[%s695 + $0x1f8] sm:$0xff]
        %v829 = vld [vmem:[%s700] sm:$0xff]
        %v830 = vld [vmem:[%s700 + $0x8] sm:$0xff]
        %v831 = vld [vmem:[%s700 + $0x10] sm:$0xff]
        %v832 = vld [vmem:[%s700 + $0x18] sm:$0xff]
        %v833 = vld [vmem:[%s700 + $0x20] sm:$0xff]
        %v834 = vld [vmem:[%s700 + $0x28] sm:$0xff]
        %v835 = vld [vmem:[%s700 + $0x30] sm:$0xff]
        %v836 = vld [vmem:[%s700 + $0x38] sm:$0xff]
        %v837 = vld [vmem:[%s700 + $0x40] sm:$0xff]
        %v838 = vld [vmem:[%s700 + $0x48] sm:$0xff]
        %v839 = vld [vmem:[%s700 + $0x50] sm:$0xff]
        %v840 = vld [vmem:[%s700 + $0x58] sm:$0xff]
        %v841 = vld [vmem:[%s700 + $0x60] sm:$0xff]
        %v842 = vld [vmem:[%s700 + $0x68] sm:$0xff]
        %v843 = vld [vmem:[%s700 + $0x70] sm:$0xff]
        %v844 = vld [vmem:[%s700 + $0x78] sm:$0xff]
        %v845 = vld [vmem:[%s700 + $0x80] sm:$0xff]
        %v846 = vld [vmem:[%s700 + $0x88] sm:$0xff]
        %v847 = vld [vmem:[%s700 + $0x90] sm:$0xff]
        %v848 = vld [vmem:[%s700 + $0x98] sm:$0xff]
        %v849 = vld [vmem:[%s700 + $0xa0] sm:$0xff]
        %v850 = vld [vmem:[%s700 + $0xa8] sm:$0xff]
        %v851 = vld [vmem:[%s700 + $0xb0] sm:$0xff]
        %v852 = vld [vmem:[%s700 + $0xb8] sm:$0xff]
        %v853 = vld [vmem:[%s700 + $0xc0] sm:$0xff]
        %v854 = vld [vmem:[%s700 + $0xc8] sm:$0xff]
        %v855 = vld [vmem:[%s700 + $0xd0] sm:$0xff]
        %v856 = vld [vmem:[%s700 + $0xd8] sm:$0xff]
        %v857 = vld [vmem:[%s700 + $0xe0] sm:$0xff]
        %v858 = vld [vmem:[%s700 + $0xe8] sm:$0xff]
        %v859 = vld [vmem:[%s700 + $0xf0] sm:$0xff]
        %v860 = vld [vmem:[%s700 + $0xf8] sm:$0xff]
        %v861 = vld [vmem:[%s700 + $0x100] sm:$0xff]
        %v862 = vld [vmem:[%s700 + $0x108] sm:$0xff]
        %v863 = vld [vmem:[%s700 + $0x110] sm:$0xff]
        %v864 = vld [vmem:[%s700 + $0x118] sm:$0xff]
        %v865 = vld [vmem:[%s700 + $0x120] sm:$0xff]
        %v866 = vld [vmem:[%s700 + $0x128] sm:$0xff]
        %v867 = vld [vmem:[%s700 + $0x130] sm:$0xff]
        %v868 = vld [vmem:[%s700 + $0x138] sm:$0xff]
        %v869 = vld [vmem:[%s700 + $0x140] sm:$0xff]
        %v870 = vld [vmem:[%s700 + $0x148] sm:$0xff]
        %v871 = vld [vmem:[%s700 + $0x150] sm:$0xff]
        %v872 = vld [vmem:[%s700 + $0x158] sm:$0xff]
        %v873 = vld [vmem:[%s700 + $0x160] sm:$0xff]
        %v874 = vld [vmem:[%s700 + $0x168] sm:$0xff]
        %v875 = vld [vmem:[%s700 + $0x170] sm:$0xff]
        %v876 = vld [vmem:[%s700 + $0x178] sm:$0xff]
        %v877 = vld [vmem:[%s700 + $0x180] sm:$0xff]
        %v878 = vld [vmem:[%s700 + $0x188] sm:$0xff]
        %v879 = vld [vmem:[%s700 + $0x190] sm:$0xff]
        %v880 = vld [vmem:[%s700 + $0x198] sm:$0xff]
        %v881 = vld [vmem:[%s700 + $0x1a0] sm:$0xff]
        %v882 = vld [vmem:[%s700 + $0x1a8] sm:$0xff]
        %v883 = vld [vmem:[%s700 + $0x1b0] sm:$0xff]
        %v884 = vld [vmem:[%s700 + $0x1b8] sm:$0xff]
        %v885 = vld [vmem:[%s700 + $0x1c0] sm:$0xff]
        %v886 = vld [vmem:[%s700 + $0x1c8] sm:$0xff]
        %v887 = vld [vmem:[%s700 + $0x1d0] sm:$0xff]
        %v888 = vld [vmem:[%s700 + $0x1d8] sm:$0xff]
        %v889 = vld [vmem:[%s700 + $0x1e0] sm:$0xff]
        %v890 = vld [vmem:[%s700 + $0x1e8] sm:$0xff]
        %v891 = vld [vmem:[%s700 + $0x1f0] sm:$0xff]
        %v892 = vld [vmem:[%s700 + $0x1f8] sm:$0xff]
        %v893 = vld [vmem:[%s705] sm:$0xff]
        %v894 = vld [vmem:[%s705 + $0x8] sm:$0xff]
        %v895 = vld [vmem:[%s705 + $0x10] sm:$0xff]
        %v896 = vld [vmem:[%s705 + $0x18] sm:$0xff]
        %v897 = vld [vmem:[%s705 + $0x20] sm:$0xff]
        %v898 = vld [vmem:[%s705 + $0x28] sm:$0xff]
        %v899 = vld [vmem:[%s705 + $0x30] sm:$0xff]
        %v900 = vld [vmem:[%s705 + $0x38] sm:$0xff]
        %v901 = vld [vmem:[%s705 + $0x40] sm:$0xff]
        %v902 = vld [vmem:[%s705 + $0x48] sm:$0xff]
        %v903 = vld [vmem:[%s705 + $0x50] sm:$0xff]
        %v904 = vld [vmem:[%s705 + $0x58] sm:$0xff]
        %v905 = vld [vmem:[%s705 + $0x60] sm:$0xff]
        %v906 = vld [vmem:[%s705 + $0x68] sm:$0xff]
        %v907 = vld [vmem:[%s705 + $0x70] sm:$0xff]
        %v908 = vld [vmem:[%s705 + $0x78] sm:$0xff]
        %v909 = vld [vmem:[%s705 + $0x80] sm:$0xff]
        %v910 = vld [vmem:[%s705 + $0x88] sm:$0xff]
        %v911 = vld [vmem:[%s705 + $0x90] sm:$0xff]
        %v912 = vld [vmem:[%s705 + $0x98] sm:$0xff]
        %v913 = vld [vmem:[%s705 + $0xa0] sm:$0xff]
        %v914 = vld [vmem:[%s705 + $0xa8] sm:$0xff]
        %v915 = vld [vmem:[%s705 + $0xb0] sm:$0xff]
        %v916 = vld [vmem:[%s705 + $0xb8] sm:$0xff]
        %v917 = vld [vmem:[%s705 + $0xc0] sm:$0xff]
        %v918 = vld [vmem:[%s705 + $0xc8] sm:$0xff]
        %v919 = vld [vmem:[%s705 + $0xd0] sm:$0xff]
        %v920 = vld [vmem:[%s705 + $0xd8] sm:$0xff]
        %v921 = vld [vmem:[%s705 + $0xe0] sm:$0xff]
        %v922 = vld [vmem:[%s705 + $0xe8] sm:$0xff]
        %v923 = vld [vmem:[%s705 + $0xf0] sm:$0xff]
        %v924 = vld [vmem:[%s705 + $0xf8] sm:$0xff]
        %v925 = vld [vmem:[%s705 + $0x100] sm:$0xff]
        %v926 = vld [vmem:[%s705 + $0x108] sm:$0xff]
        %v927 = vld [vmem:[%s705 + $0x110] sm:$0xff]
        %v928 = vld [vmem:[%s705 + $0x118] sm:$0xff]
        %v929 = vld [vmem:[%s705 + $0x120] sm:$0xff]
        %v930 = vld [vmem:[%s705 + $0x128] sm:$0xff]
        %v931 = vld [vmem:[%s705 + $0x130] sm:$0xff]
        %v932 = vld [vmem:[%s705 + $0x138] sm:$0xff]
        %v933 = vld [vmem:[%s705 + $0x140] sm:$0xff]
        %v934 = vld [vmem:[%s705 + $0x148] sm:$0xff]
        %v935 = vld [vmem:[%s705 + $0x150] sm:$0xff]
        %v936 = vld [vmem:[%s705 + $0x158] sm:$0xff]
        %v937 = vld [vmem:[%s705 + $0x160] sm:$0xff]
        %v938 = vld [vmem:[%s705 + $0x168] sm:$0xff]
        %v939 = vld [vmem:[%s705 + $0x170] sm:$0xff]
        %v940 = vld [vmem:[%s705 + $0x178] sm:$0xff]
        %v941 = vld [vmem:[%s705 + $0x180] sm:$0xff]
        %v942 = vld [vmem:[%s705 + $0x188] sm:$0xff]
        %v943 = vld [vmem:[%s705 + $0x190] sm:$0xff]
        %v944 = vld [vmem:[%s705 + $0x198] sm:$0xff]
        %v945 = vld [vmem:[%s705 + $0x1a0] sm:$0xff]
        %v946 = vld [vmem:[%s705 + $0x1a8] sm:$0xff]
        %v947 = vld [vmem:[%s705 + $0x1b0] sm:$0xff]
        %v948 = vld [vmem:[%s705 + $0x1b8] sm:$0xff]
        %v949 = vld [vmem:[%s705 + $0x1c0] sm:$0xff]
        %v950 = vld [vmem:[%s705 + $0x1c8] sm:$0xff]
        %v951 = vld [vmem:[%s705 + $0x1d0] sm:$0xff]
        %v952 = vld [vmem:[%s705 + $0x1d8] sm:$0xff]
        %v953 = vld [vmem:[%s705 + $0x1e0] sm:$0xff]
        %v954 = vld [vmem:[%s705 + $0x1e8] sm:$0xff]
        %v955 = vld [vmem:[%s705 + $0x1f0] sm:$0xff]
        %v956 = vld [vmem:[%s705 + $0x1f8] sm:$0xff]
        %957 = vmatprep.subr.mxu0 0.0
        %958 = vmatpush1.msra.mxu0 %v765
        %959 = vmatprep.subr.mxu0 0.0
        %960 = vmatpush1.msra.mxu0 %v766
        %961 = vmatprep.subr.mxu0 0.0
        %962 = vmatpush1.msra.mxu0 %v767
        %963 = vmatprep.subr.mxu0 0.0
        %964 = vmatpush1.msra.mxu0 %v768
        %965 = vmatprep.subr.mxu0 0.0
        %966 = vmatpush1.msra.mxu0 %v769
        %967 = vmatprep.subr.mxu0 0.0
        %968 = vmatpush1.msra.mxu0 %v770
        %969 = vmatprep.subr.mxu0 0.0
        %970 = vmatpush1.msra.mxu0 %v771
        %971 = vmatprep.subr.mxu0 0.0
        %972 = vmatpush1.msra.mxu0 %v772
        %973 = vmatprep.subr.mxu0 0.0
        %974 = vmatpush1.msra.mxu0 %v773
        %975 = vmatprep.subr.mxu0 0.0
        %976 = vmatpush1.msra.mxu0 %v774
        %977 = vmatprep.subr.mxu0 0.0
        %978 = vmatpush1.msra.mxu0 %v775
        %979 = vmatprep.subr.mxu0 0.0
        %980 = vmatpush1.msra.mxu0 %v776
        %981 = vmatprep.subr.mxu0 0.0
        %982 = vmatpush1.msra.mxu0 %v777
        %983 = vmatprep.subr.mxu0 0.0
        %984 = vmatpush1.msra.mxu0 %v778
        %985 = vmatprep.subr.mxu0 0.0
        %986 = vmatpush1.msra.mxu0 %v779
        %987 = vmatprep.subr.mxu0 0.0
        %988 = vmatpush1.msra.mxu0 %v780
        %989 = vmatprep.subr.mxu0 0.0
        %990 = vmatpush1.msra.mxu0 0.0
        %991 = vmatprep.subr.mxu0 0.0
        %992 = vmatpush1.msra.mxu0 0.0
        %993 = vmatprep.subr.mxu0 0.0
        %994 = vmatpush1.msra.mxu0 0.0
        %995 = vmatprep.subr.mxu0 0.0
        %996 = vmatpush1.msra.mxu0 0.0
        %997 = vmatprep.subr.mxu0 0.0
        %998 = vmatpush1.msra.mxu0 0.0
        %999 = vmatprep.subr.mxu0 0.0
        %1000 = vmatpush1.msra.mxu0 0.0
        %1001 = vmatprep.subr.mxu0 0.0
        %1002 = vmatpush1.msra.mxu0 0.0
        %1003 = vmatprep.subr.mxu0 0.0
        %1004 = vmatpush1.msra.mxu0 0.0
        %1005 = vmatprep.subr.mxu0 0.0
        %1006 = vmatpush1.msra.mxu0 0.0
        %1007 = vmatprep.subr.mxu0 0.0
        %1008 = vmatpush1.msra.mxu0 0.0
        %1009 = vmatprep.subr.mxu0 0.0
        %1010 = vmatpush1.msra.mxu0 0.0
        %1011 = vmatprep.subr.mxu0 0.0
        %1012 = vmatpush1.msra.mxu0 0.0
        %1013 = vmatprep.subr.mxu0 0.0
        %1014 = vmatpush1.msra.mxu0 0.0
        %1015 = vmatprep.subr.mxu0 0.0
        %1016 = vmatpush1.msra.mxu0 0.0
        %1017 = vmatprep.subr.mxu0 0.0
        %1018 = vmatpush1.msra.mxu0 0.0
        %1019 = vmatprep.subr.mxu0 0.0
        %1020 = vmatpush1.msra.mxu0 0.0
        %1021 = vmatprep.mubr.f32.mxu0 0.0
        %1022 = vmatmul.mubr.f32.gmra.mrb[0].mxu0 %v761
        %v1023 = vpop.f32.mrb[0].mxu0
        %v1024 = vadd.f32 0.0, %v1023
        %v1025 = vpop.f32.mrb[0].mxu0
        %1026 = vmatprep.mubr.f32.mxu0 0.0
        %1027 = vmatmul.mubr.f32.gmra.mrb[0].mxu0 %v762
        %v1028 = vpop.f32.mrb[0].mxu0
        %v1029 = vadd.f32 0.0, %v1028
        %v1030 = vpop.f32.mrb[0].mxu0
        %1031 = vmatprep.mubr.f32.mxu0 0.0
        %1032 = vmatmul.mubr.f32.gmra.mrb[0].mxu0 %v763
        %v1033 = vpop.f32.mrb[0].mxu0
        %v1034 = vadd.f32 0.0, %v1033
        %v1035 = vpop.f32.mrb[0].mxu0
        %1036 = vmatprep.mubr.f32.mxu0 0.0
        %1037 = vmatmul.mubr.f32.gmra.mrb[0].mxu0 %v764
        %v1038 = vpop.f32.mrb[0].mxu0
        %v1039 = vadd.f32 0.0, %v1038
        %v1040 = vpop.f32.mrb[0].mxu0
        %1041 = vdwg.mxu0
        %1042 = vmatprep.subr.mxu0 0.0
        %1043 = vmatpush1.msra.mxu0 %v781
        %1044 = vmatprep.subr.mxu0 0.0
        %1045 = vmatpush1.msra.mxu0 %v782
        %1046 = vmatprep.subr.mxu0 0.0
        %1047 = vmatpush1.msra.mxu0 %v783
        %1048 = vmatprep.subr.mxu0 0.0
        %1049 = vmatpush1.msra.mxu0 %v784
        %1050 = vmatprep.subr.mxu0 0.0
        %1051 = vmatpush1.msra.mxu0 %v785
        %1052 = vmatprep.subr.mxu0 0.0
        %1053 = vmatpush1.msra.mxu0 %v786
        %1054 = vmatprep.subr.mxu0 0.0
        %1055 = vmatpush1.msra.mxu0 %v787
        %1056 = vmatprep.subr.mxu0 0.0
        %1057 = vmatpush1.msra.mxu0 %v788
        %1058 = vmatprep.subr.mxu0 0.0
        %1059 = vmatpush1.msra.mxu0 %v789
        %1060 = vmatprep.subr.mxu0 0.0
        %1061 = vmatpush1.msra.mxu0 %v790
        %1062 = vmatprep.subr.mxu0 0.0
        %1063 = vmatpush1.msra.mxu0 %v791
        %1064 = vmatprep.subr.mxu0 0.0
        %1065 = vmatpush1.msra.mxu0 %v792
        %1066 = vmatprep.subr.mxu0 0.0
        %1067 = vmatpush1.msra.mxu0 %v793
        %1068 = vmatprep.subr.mxu0 0.0
        %1069 = vmatpush1.msra.mxu0 %v794
        %1070 = vmatprep.subr.mxu0 0.0
        %1071 = vmatpush1.msra.mxu0 %v795
        %1072 = vmatprep.subr.mxu0 0.0
        %1073 = vmatpush1.msra.mxu0 %v796
        %1074 = vmatprep.subr.mxu0 0.0
        %1075 = vmatpush1.msra.mxu0 0.0
        %1076 = vmatprep.subr.mxu0 0.0
        %1077 = vmatpush1.msra.mxu0 0.0
        %1078 = vmatprep.subr.mxu0 0.0
        %1079 = vmatpush1.msra.mxu0 0.0
        %1080 = vmatprep.subr.mxu0 0.0
        %1081 = vmatpush1.msra.mxu0 0.0
        %1082 = vmatprep.subr.mxu0 0.0
        %1083 = vmatpush1.msra.mxu0 0.0
        %1084 = vmatprep.subr.mxu0 0.0
        %1085 = vmatpush1.msra.mxu0 0.0
        %1086 = vmatprep.subr.mxu0 0.0
        %1087 = vmatpush1.msra.mxu0 0.0
        %1088 = vmatprep.subr.mxu0 0.0
        %1089 = vmatpush1.msra.mxu0 0.0
        %1090 = vmatprep.subr.mxu0 0.0
        %1091 = vmatpush1.msra.mxu0 0.0
        %1092 = vmatprep.subr.mxu0 0.0
        %1093 = vmatpush1.msra.mxu0 0.0
        %1094 = vmatprep.subr.mxu0 0.0
        %1095 = vmatpush1.msra.mxu0 0.0
        %1096 = vmatprep.subr.mxu0 0.0
        %1097 = vmatpush1.msra.mxu0 0.0
        %1098 = vmatprep.subr.mxu0 0.0
        %1099 = vmatpush1.msra.mxu0 0.0
        %1100 = vmatprep.subr.mxu0 0.0
        %1101 = vmatpush1.msra.mxu0 0.0
        %1102 = vmatprep.subr.mxu0 0.0
        %1103 = vmatpush1.msra.mxu0 0.0
        %1104 = vmatprep.subr.mxu0 0.0
        %1105 = vmatpush1.msra.mxu0 0.0
        %1106 = vmatprep.mubr.f32.mxu0 0.0
        %1107 = vmatmul.mubr.f32.gmra.mrb[0].mxu0 %v761
        %v1108 = vpop.f32.mrb[0].mxu0
        %v1109 = vadd.f32 0.0, %v1108
        %v1110 = vpop.f32.mrb[0].mxu0
        %1111 = vmatprep.mubr.f32.mxu0 0.0
        %1112 = vmatmul.mubr.f32.gmra.mrb[0].mxu0 %v762
        %v1113 = vpop.f32.mrb[0].mxu0
        %v1114 = vadd.f32 0.0, %v1113
        %v1115 = vpop.f32.mrb[0].mxu0
        %1116 = vmatprep.mubr.f32.mxu0 0.0
        %1117 = vmatmul.mubr.f32.gmra.mrb[0].mxu0 %v763
        %v1118 = vpop.f32.mrb[0].mxu0
        %v1119 = vadd.f32 0.0, %v1118
        %v1120 = vpop.f32.mrb[0].mxu0
        %1121 = vmatprep.mubr.f32.mxu0 0.0
        %1122 = vmatmul.mubr.f32.gmra.mrb[0].mxu0 %v764
        %v1123 = vpop.f32.mrb[0].mxu0
        %v1124 = vadd.f32 0.0, %v1123
        %v1125 = vpop.f32.mrb[0].mxu0
        %1126 = vdwg.mxu0
        %1127 = vmatprep.subr.mxu0 0.0
        %1128 = vmatpush1.msra.mxu0 %v797
        %1129 = vmatprep.subr.mxu0 0.0
        %1130 = vmatpush1.msra.mxu0 %v798
        %1131 = vmatprep.subr.mxu0 0.0
        %1132 = vmatpush1.msra.mxu0 %v799
        %1133 = vmatprep.subr.mxu0 0.0
        %1134 = vmatpush1.msra.mxu0 %v800
        %1135 = vmatprep.subr.mxu0 0.0
        %1136 = vmatpush1.msra.mxu0 %v801
        %1137 = vmatprep.subr.mxu0 0.0
        %1138 = vmatpush1.msra.mxu0 %v802
        %1139 = vmatprep.subr.mxu0 0.0
        %1140 = vmatpush1.msra.mxu0 %v803
        %1141 = vmatprep.subr.mxu0 0.0
        %1142 = vmatpush1.msra.mxu0 %v804
        %1143 = vmatprep.subr.mxu0 0.0
        %1144 = vmatpush1.msra.mxu0 %v805
        %1145 = vmatprep.subr.mxu0 0.0
        %1146 = vmatpush1.msra.mxu0 %v806
        %1147 = vmatprep.subr.mxu0 0.0
        %1148 = vmatpush1.msra.mxu0 %v807
        %1149 = vmatprep.subr.mxu0 0.0
        %1150 = vmatpush1.msra.mxu0 %v808
        %1151 = vmatprep.subr.mxu0 0.0
        %1152 = vmatpush1.msra.mxu0 %v809
        %1153 = vmatprep.subr.mxu0 0.0
        %1154 = vmatpush1.msra.mxu0 %v810
        %1155 = vmatprep.subr.mxu0 0.0
        %1156 = vmatpush1.msra.mxu0 %v811
        %1157 = vmatprep.subr.mxu0 0.0
        %1158 = vmatpush1.msra.mxu0 %v812
        %1159 = vmatprep.subr.mxu0 0.0
        %1160 = vmatpush1.msra.mxu0 0.0
        %1161 = vmatprep.subr.mxu0 0.0
        %1162 = vmatpush1.msra.mxu0 0.0
        %1163 = vmatprep.subr.mxu0 0.0
        %1164 = vmatpush1.msra.mxu0 0.0
        %1165 = vmatprep.subr.mxu0 0.0
        %1166 = vmatpush1.msra.mxu0 0.0
        %1167 = vmatprep.subr.mxu0 0.0
        %1168 = vmatpush1.msra.mxu0 0.0
        %1169 = vmatprep.subr.mxu0 0.0
        %1170 = vmatpush1.msra.mxu0 0.0
        %1171 = vmatprep.subr.mxu0 0.0
        %1172 = vmatpush1.msra.mxu0 0.0
        %1173 = vmatprep.subr.mxu0 0.0
        %1174 = vmatpush1.msra.mxu0 0.0
        %1175 = vmatprep.subr.mxu0 0.0
        %1176 = vmatpush1.msra.mxu0 0.0
        %1177 = vmatprep.subr.mxu0 0.0
        %1178 = vmatpush1.msra.mxu0 0.0
        %1179 = vmatprep.subr.mxu0 0.0
        %1180 = vmatpush1.msra.mxu0 0.0
        %1181 = vmatprep.subr.mxu0 0.0
        %1182 = vmatpush1.msra.mxu0 0.0
        %1183 = vmatprep.subr.mxu0 0.0
        %1184 = vmatpush1.msra.mxu0 0.0
        %1185 = vmatprep.subr.mxu0 0.0
        %1186 = vmatpush1.msra.mxu0 0.0
        %1187 = vmatprep.subr.mxu0 0.0
        %1188 = vmatpush1.msra.mxu0 0.0
        %1189 = vmatprep.subr.mxu0 0.0
        %1190 = vmatpush1.msra.mxu0 0.0
        %1191 = vmatprep.mubr.f32.mxu0 0.0
        %1192 = vmatmul.mubr.f32.gmra.mrb[0].mxu0 %v761
        %v1193 = vpop.f32.mrb[0].mxu0
        %v1194 = vadd.f32 0.0, %v1193
        %v1195 = vpop.f32.mrb[0].mxu0
        %1196 = vmatprep.mubr.f32.mxu0 0.0
        %1197 = vmatmul.mubr.f32.gmra.mrb[0].mxu0 %v762
        %v1198 = vpop.f32.mrb[0].mxu0
        %v1199 = vadd.f32 0.0, %v1198
        %v1200 = vpop.f32.mrb[0].mxu0
        %1201 = vmatprep.mubr.f32.mxu0 0.0
        %1202 = vmatmul.mubr.f32.gmra.mrb[0].mxu0 %v763
        %v1203 = vpop.f32.mrb[0].mxu0
        %v1204 = vadd.f32 0.0, %v1203
        %v1205 = vpop.f32.mrb[0].mxu0
        %1206 = vmatprep.mubr.f32.mxu0 0.0
        %1207 = vmatmul.mubr.f32.gmra.mrb[0].mxu0 %v764
        %v1208 = vpop.f32.mrb[0].mxu0
        %v1209 = vadd.f32 0.0, %v1208
        %v1210 = vpop.f32.mrb[0].mxu0
        %1211 = vdwg.mxu0
        %1212 = vmatprep.subr.mxu0 0.0
        %1213 = vmatpush1.msra.mxu0 %v813
        %1214 = vmatprep.subr.mxu0 0.0
        %1215 = vmatpush1.msra.mxu0 %v814
        %1216 = vmatprep.subr.mxu0 0.0
        %1217 = vmatpush1.msra.mxu0 %v815
        %1218 = vmatprep.subr.mxu0 0.0
        %1219 = vmatpush1.msra.mxu0 %v816
        %1220 = vmatprep.subr.mxu0 0.0
        %1221 = vmatpush1.msra.mxu0 %v817
        %1222 = vmatprep.subr.mxu0 0.0
        %1223 = vmatpush1.msra.mxu0 %v818
        %1224 = vmatprep.subr.mxu0 0.0
        %1225 = vmatpush1.msra.mxu0 %v819
        %1226 = vmatprep.subr.mxu0 0.0
        %1227 = vmatpush1.msra.mxu0 %v820
        %1228 = vmatprep.subr.mxu0 0.0
        %1229 = vmatpush1.msra.mxu0 %v821
        %1230 = vmatprep.subr.mxu0 0.0
        %1231 = vmatpush1.msra.mxu0 %v822
        %1232 = vmatprep.subr.mxu0 0.0
        %1233 = vmatpush1.msra.mxu0 %v823
        %1234 = vmatprep.subr.mxu0 0.0
        %1235 = vmatpush1.msra.mxu0 %v824
        %1236 = vmatprep.subr.mxu0 0.0
        %1237 = vmatpush1.msra.mxu0 %v825
        %1238 = vmatprep.subr.mxu0 0.0
        %1239 = vmatpush1.msra.mxu0 %v826
        %1240 = vmatprep.subr.mxu0 0.0
        %1241 = vmatpush1.msra.mxu0 %v827
        %1242 = vmatprep.subr.mxu0 0.0
        %1243 = vmatpush1.msra.mxu0 %v828
        %1244 = vmatprep.subr.mxu0 0.0
        %1245 = vmatpush1.msra.mxu0 0.0
        %1246 = vmatprep.subr.mxu0 0.0
        %1247 = vmatpush1.msra.mxu0 0.0
        %1248 = vmatprep.subr.mxu0 0.0
        %1249 = vmatpush1.msra.mxu0 0.0
        %1250 = vmatprep.subr.mxu0 0.0
        %1251 = vmatpush1.msra.mxu0 0.0
        %1252 = vmatprep.subr.mxu0 0.0
        %1253 = vmatpush1.msra.mxu0 0.0
        %1254 = vmatprep.subr.mxu0 0.0
        %1255 = vmatpush1.msra.mxu0 0.0
        %1256 = vmatprep.subr.mxu0 0.0
        %1257 = vmatpush1.msra.mxu0 0.0
        %1258 = vmatprep.subr.mxu0 0.0
        %1259 = vmatpush1.msra.mxu0 0.0
        %1260 = vmatprep.subr.mxu0 0.0
        %1261 = vmatpush1.msra.mxu0 0.0
        %1262 = vmatprep.subr.mxu0 0.0
        %1263 = vmatpush1.msra.mxu0 0.0
        %1264 = vmatprep.subr.mxu0 0.0
        %1265 = vmatpush1.msra.mxu0 0.0
        %1266 = vmatprep.subr.mxu0 0.0
        %1267 = vmatpush1.msra.mxu0 0.0
        %1268 = vmatprep.subr.mxu0 0.0
        %1269 = vmatpush1.msra.mxu0 0.0
        %1270 = vmatprep.subr.mxu0 0.0
        %1271 = vmatpush1.msra.mxu0 0.0
        %1272 = vmatprep.subr.mxu0 0.0
        %1273 = vmatpush1.msra.mxu0 0.0
        %1274 = vmatprep.subr.mxu0 0.0
        %1275 = vmatpush1.msra.mxu0 0.0
        %1276 = vmatprep.mubr.f32.mxu0 0.0
        %1277 = vmatmul.mubr.f32.gmra.mrb[0].mxu0 %v761
        %v1278 = vpop.f32.mrb[0].mxu0
        %v1279 = vadd.f32 0.0, %v1278
        %v1280 = vpop.f32.mrb[0].mxu0
        %1281 = vmatprep.mubr.f32.mxu0 0.0
        %1282 = vmatmul.mubr.f32.gmra.mrb[0].mxu0 %v762
        %v1283 = vpop.f32.mrb[0].mxu0
        %v1284 = vadd.f32 0.0, %v1283
        %v1285 = vpop.f32.mrb[0].mxu0
        %1286 = vmatprep.mubr.f32.mxu0 0.0
        %1287 = vmatmul.mubr.f32.gmra.mrb[0].mxu0 %v763
        %v1288 = vpop.f32.mrb[0].mxu0
        %v1289 = vadd.f32 0.0, %v1288
        %v1290 = vpop.f32.mrb[0].mxu0
        %1291 = vmatprep.mubr.f32.mxu0 0.0
        %1292 = vmatmul.mubr.f32.gmra.mrb[0].mxu0 %v764
        %v1293 = vpop.f32.mrb[0].mxu0
        %v1294 = vadd.f32 0.0, %v1293
        %v1295 = vpop.f32.mrb[0].mxu0
        %1296 = vdwg.mxu0
        %1297 = vmatprep.subr.mxu0 0.0
        %1298 = vmatpush1.msra.mxu0 %v829
        %1299 = vmatprep.subr.mxu0 0.0
        %1300 = vmatpush1.msra.mxu0 %v830
        %1301 = vmatprep.subr.mxu0 0.0
        %1302 = vmatpush1.msra.mxu0 %v831
        %1303 = vmatprep.subr.mxu0 0.0
        %1304 = vmatpush1.msra.mxu0 %v832
        %1305 = vmatprep.subr.mxu0 0.0
        %1306 = vmatpush1.msra.mxu0 %v833
        %1307 = vmatprep.subr.mxu0 0.0
        %1308 = vmatpush1.msra.mxu0 %v834
        %1309 = vmatprep.subr.mxu0 0.0
        %1310 = vmatpush1.msra.mxu0 %v835
        %1311 = vmatprep.subr.mxu0 0.0
        %1312 = vmatpush1.msra.mxu0 %v836
        %1313 = vmatprep.subr.mxu0 0.0
        %1314 = vmatpush1.msra.mxu0 %v837
        %1315 = vmatprep.subr.mxu0 0.0
        %1316 = vmatpush1.msra.mxu0 %v838
        %1317 = vmatprep.subr.mxu0 0.0
        %1318 = vmatpush1.msra.mxu0 %v839
        %1319 = vmatprep.subr.mxu0 0.0
        %1320 = vmatpush1.msra.mxu0 %v840
        %1321 = vmatprep.subr.mxu0 0.0
        %1322 = vmatpush1.msra.mxu0 %v841
        %1323 = vmatprep.subr.mxu0 0.0
        %1324 = vmatpush1.msra.mxu0 %v842
        %1325 = vmatprep.subr.mxu0 0.0
        %1326 = vmatpush1.msra.mxu0 %v843
        %1327 = vmatprep.subr.mxu0 0.0
        %1328 = vmatpush1.msra.mxu0 %v844
        %1329 = vmatprep.subr.mxu0 0.0
        %1330 = vmatpush1.msra.mxu0 0.0
        %1331 = vmatprep.subr.mxu0 0.0
        %1332 = vmatpush1.msra.mxu0 0.0
        %1333 = vmatprep.subr.mxu0 0.0
        %1334 = vmatpush1.msra.mxu0 0.0
        %1335 = vmatprep.subr.mxu0 0.0
        %1336 = vmatpush1.msra.mxu0 0.0
        %1337 = vmatprep.subr.mxu0 0.0
        %1338 = vmatpush1.msra.mxu0 0.0
        %1339 = vmatprep.subr.mxu0 0.0
        %1340 = vmatpush1.msra.mxu0 0.0
        %1341 = vmatprep.subr.mxu0 0.0
        %1342 = vmatpush1.msra.mxu0 0.0
        %1343 = vmatprep.subr.mxu0 0.0
        %1344 = vmatpush1.msra.mxu0 0.0
        %1345 = vmatprep.subr.mxu0 0.0
        %1346 = vmatpush1.msra.mxu0 0.0
        %1347 = vmatprep.subr.mxu0 0.0
        %1348 = vmatpush1.msra.mxu0 0.0
        %1349 = vmatprep.subr.mxu0 0.0
        %1350 = vmatpush1.msra.mxu0 0.0
        %1351 = vmatprep.subr.mxu0 0.0
        %1352 = vmatpush1.msra.mxu0 0.0
        %1353 = vmatprep.subr.mxu0 0.0
        %1354 = vmatpush1.msra.mxu0 0.0
        %1355 = vmatprep.subr.mxu0 0.0
        %1356 = vmatpush1.msra.mxu0 0.0
        %1357 = vmatprep.subr.mxu0 0.0
        %1358 = vmatpush1.msra.mxu0 0.0
        %1359 = vmatprep.subr.mxu0 0.0
        %1360 = vmatpush1.msra.mxu0 0.0
        %1361 = vmatprep.mubr.f32.mxu0 0.0
        %1362 = vmatmul.mubr.f32.gmra.mrb[0].mxu0 %v761
        %v1363 = vpop.f32.mrb[0].mxu0
        %v1364 = vadd.f32 0.0, %v1363
        %v1365 = vpop.f32.mrb[0].mxu0
        %1366 = vmatprep.mubr.f32.mxu0 0.0
        %1367 = vmatmul.mubr.f32.gmra.mrb[0].mxu0 %v762
        %v1368 = vpop.f32.mrb[0].mxu0
        %v1369 = vadd.f32 0.0, %v1368
        %v1370 = vpop.f32.mrb[0].mxu0
        %1371 = vmatprep.mubr.f32.mxu0 0.0
        %1372 = vmatmul.mubr.f32.gmra.mrb[0].mxu0 %v763
        %v1373 = vpop.f32.mrb[0].mxu0
        %v1374 = vadd.f32 0.0, %v1373
        %v1375 = vpop.f32.mrb[0].mxu0
        %1376 = vmatprep.mubr.f32.mxu0 0.0
        %1377 = vmatmul.mubr.f32.gmra.mrb[0].mxu0 %v764
        %v1378 = vpop.f32.mrb[0].mxu0
        %v1379 = vadd.f32 0.0, %v1378
        %v1380 = vpop.f32.mrb[0].mxu0
        %1381 = vdwg.mxu0
        %1382 = vmatprep.subr.mxu0 0.0
        %1383 = vmatpush1.msra.mxu0 %v845
        %1384 = vmatprep.subr.mxu0 0.0
        %1385 = vmatpush1.msra.mxu0 %v846
        %1386 = vmatprep.subr.mxu0 0.0
        %1387 = vmatpush1.msra.mxu0 %v847
        %1388 = vmatprep.subr.mxu0 0.0
        %1389 = vmatpush1.msra.mxu0 %v848
        %1390 = vmatprep.subr.mxu0 0.0
        %1391 = vmatpush1.msra.mxu0 %v849
        %1392 = vmatprep.subr.mxu0 0.0
        %1393 = vmatpush1.msra.mxu0 %v850
        %1394 = vmatprep.subr.mxu0 0.0
        %1395 = vmatpush1.msra.mxu0 %v851
        %1396 = vmatprep.subr.mxu0 0.0
        %1397 = vmatpush1.msra.mxu0 %v852
        %1398 = vmatprep.subr.mxu0 0.0
        %1399 = vmatpush1.msra.mxu0 %v853
        %1400 = vmatprep.subr.mxu0 0.0
        %1401 = vmatpush1.msra.mxu0 %v854
        %1402 = vmatprep.subr.mxu0 0.0
        %1403 = vmatpush1.msra.mxu0 %v855
        %1404 = vmatprep.subr.mxu0 0.0
        %1405 = vmatpush1.msra.mxu0 %v856
        %1406 = vmatprep.subr.mxu0 0.0
        %1407 = vmatpush1.msra.mxu0 %v857
        %1408 = vmatprep.subr.mxu0 0.0
        %1409 = vmatpush1.msra.mxu0 %v858
        %1410 = vmatprep.subr.mxu0 0.0
        %1411 = vmatpush1.msra.mxu0 %v859
        %1412 = vmatprep.subr.mxu0 0.0
        %1413 = vmatpush1.msra.mxu0 %v860
        %1414 = vmatprep.subr.mxu0 0.0
        %1415 = vmatpush1.msra.mxu0 0.0
        %1416 = vmatprep.subr.mxu0 0.0
        %1417 = vmatpush1.msra.mxu0 0.0
        %1418 = vmatprep.subr.mxu0 0.0
        %1419 = vmatpush1.msra.mxu0 0.0
        %1420 = vmatprep.subr.mxu0 0.0
        %1421 = vmatpush1.msra.mxu0 0.0
        %1422 = vmatprep.subr.mxu0 0.0
        %1423 = vmatpush1.msra.mxu0 0.0
        %1424 = vmatprep.subr.mxu0 0.0
        %1425 = vmatpush1.msra.mxu0 0.0
        %1426 = vmatprep.subr.mxu0 0.0
        %1427 = vmatpush1.msra.mxu0 0.0
        %1428 = vmatprep.subr.mxu0 0.0
        %1429 = vmatpush1.msra.mxu0 0.0
        %1430 = vmatprep.subr.mxu0 0.0
        %1431 = vmatpush1.msra.mxu0 0.0
        %1432 = vmatprep.subr.mxu0 0.0
        %1433 = vmatpush1.msra.mxu0 0.0
        %1434 = vmatprep.subr.mxu0 0.0
        %1435 = vmatpush1.msra.mxu0 0.0
        %1436 = vmatprep.subr.mxu0 0.0
        %1437 = vmatpush1.msra.mxu0 0.0
        %1438 = vmatprep.subr.mxu0 0.0
        %1439 = vmatpush1.msra.mxu0 0.0
        %1440 = vmatprep.subr.mxu0 0.0
        %1441 = vmatpush1.msra.mxu0 0.0
        %1442 = vmatprep.subr.mxu0 0.0
        %1443 = vmatpush1.msra.mxu0 0.0
        %1444 = vmatprep.subr.mxu0 0.0
        %1445 = vmatpush1.msra.mxu0 0.0
        %1446 = vmatprep.mubr.f32.mxu0 0.0
        %1447 = vmatmul.mubr.f32.gmra.mrb[0].mxu0 %v761
        %v1448 = vpop.f32.mrb[0].mxu0
        %v1449 = vadd.f32 0.0, %v1448
        %v1450 = vpop.f32.mrb[0].mxu0
        %1451 = vmatprep.mubr.f32.mxu0 0.0
        %1452 = vmatmul.mubr.f32.gmra.mrb[0].mxu0 %v762
        %v1453 = vpop.f32.mrb[0].mxu0
        %v1454 = vadd.f32 0.0, %v1453
        %v1455 = vpop.f32.mrb[0].mxu0
        %1456 = vmatprep.mubr.f32.mxu0 0.0
        %1457 = vmatmul.mubr.f32.gmra.mrb[0].mxu0 %v763
        %v1458 = vpop.f32.mrb[0].mxu0
        %v1459 = vadd.f32 0.0, %v1458
        %v1460 = vpop.f32.mrb[0].mxu0
        %1461 = vmatprep.mubr.f32.mxu0 0.0
        %1462 = vmatmul.mubr.f32.gmra.mrb[0].mxu0 %v764
        %v1463 = vpop.f32.mrb[0].mxu0
        %v1464 = vadd.f32 0.0, %v1463
        %v1465 = vpop.f32.mrb[0].mxu0
        %1466 = vdwg.mxu0
        %1467 = vmatprep.subr.mxu0 0.0
        %1468 = vmatpush1.msra.mxu0 %v861
        %1469 = vmatprep.subr.mxu0 0.0
        %1470 = vmatpush1.msra.mxu0 %v862
        %1471 = vmatprep.subr.mxu0 0.0
        %1472 = vmatpush1.msra.mxu0 %v863
        %1473 = vmatprep.subr.mxu0 0.0
        %1474 = vmatpush1.msra.mxu0 %v864
        %1475 = vmatprep.subr.mxu0 0.0
        %1476 = vmatpush1.msra.mxu0 %v865
        %1477 = vmatprep.subr.mxu0 0.0
        %1478 = vmatpush1.msra.mxu0 %v866
        %1479 = vmatprep.subr.mxu0 0.0
        %1480 = vmatpush1.msra.mxu0 %v867
        %1481 = vmatprep.subr.mxu0 0.0
        %1482 = vmatpush1.msra.mxu0 %v868
        %1483 = vmatprep.subr.mxu0 0.0
        %1484 = vmatpush1.msra.mxu0 %v869
        %1485 = vmatprep.subr.mxu0 0.0
        %1486 = vmatpush1.msra.mxu0 %v870
        %1487 = vmatprep.subr.mxu0 0.0
        %1488 = vmatpush1.msra.mxu0 %v871
        %1489 = vmatprep.subr.mxu0 0.0
        %1490 = vmatpush1.msra.mxu0 %v872
        %1491 = vmatprep.subr.mxu0 0.0
        %1492 = vmatpush1.msra.mxu0 %v873
        %1493 = vmatprep.subr.mxu0 0.0
        %1494 = vmatpush1.msra.mxu0 %v874
        %1495 = vmatprep.subr.mxu0 0.0
        %1496 = vmatpush1.msra.mxu0 %v875
        %1497 = vmatprep.subr.mxu0 0.0
        %1498 = vmatpush1.msra.mxu0 %v876
        %1499 = vmatprep.subr.mxu0 0.0
        %1500 = vmatpush1.msra.mxu0 0.0
        %1501 = vmatprep.subr.mxu0 0.0
        %1502 = vmatpush1.msra.mxu0 0.0
        %1503 = vmatprep.subr.mxu0 0.0
        %1504 = vmatpush1.msra.mxu0 0.0
        %1505 = vmatprep.subr.mxu0 0.0
        %1506 = vmatpush1.msra.mxu0 0.0
        %1507 = vmatprep.subr.mxu0 0.0
        %1508 = vmatpush1.msra.mxu0 0.0
        %1509 = vmatprep.subr.mxu0 0.0
        %1510 = vmatpush1.msra.mxu0 0.0
        %1511 = vmatprep.subr.mxu0 0.0
        %1512 = vmatpush1.msra.mxu0 0.0
        %1513 = vmatprep.subr.mxu0 0.0
        %1514 = vmatpush1.msra.mxu0 0.0
        %1515 = vmatprep.subr.mxu0 0.0
        %1516 = vmatpush1.msra.mxu0 0.0
        %1517 = vmatprep.subr.mxu0 0.0
        %1518 = vmatpush1.msra.mxu0 0.0
        %1519 = vmatprep.subr.mxu0 0.0
        %1520 = vmatpush1.msra.mxu0 0.0
        %1521 = vmatprep.subr.mxu0 0.0
        %1522 = vmatpush1.msra.mxu0 0.0
        %1523 = vmatprep.subr.mxu0 0.0
        %1524 = vmatpush1.msra.mxu0 0.0
        %1525 = vmatprep.subr.mxu0 0.0
        %1526 = vmatpush1.msra.mxu0 0.0
        %1527 = vmatprep.subr.mxu0 0.0
        %1528 = vmatpush1.msra.mxu0 0.0
        %1529 = vmatprep.subr.mxu0 0.0
        %1530 = vmatpush1.msra.mxu0 0.0
        %1531 = vmatprep.mubr.f32.mxu0 0.0
        %1532 = vmatmul.mubr.f32.gmra.mrb[0].mxu0 %v761
        %v1533 = vpop.f32.mrb[0].mxu0
        %v1534 = vadd.f32 0.0, %v1533
        %v1535 = vpop.f32.mrb[0].mxu0
        %1536 = vmatprep.mubr.f32.mxu0 0.0
        %1537 = vmatmul.mubr.f32.gmra.mrb[0].mxu0 %v762
        %v1538 = vpop.f32.mrb[0].mxu0
        %v1539 = vadd.f32 0.0, %v1538
        %v1540 = vpop.f32.mrb[0].mxu0
        %1541 = vmatprep.mubr.f32.mxu0 0.0
        %1542 = vmatmul.mubr.f32.gmra.mrb[0].mxu0 %v763
        %v1543 = vpop.f32.mrb[0].mxu0
        %v1544 = vadd.f32 0.0, %v1543
        %v1545 = vpop.f32.mrb[0].mxu0
        %1546 = vmatprep.mubr.f32.mxu0 0.0
        %1547 = vmatmul.mubr.f32.gmra.mrb[0].mxu0 %v764
        %v1548 = vpop.f32.mrb[0].mxu0
        %v1549 = vadd.f32 0.0, %v1548
        %v1550 = vpop.f32.mrb[0].mxu0
        %1551 = vdwg.mxu0
        %1552 = vmatprep.subr.mxu0 0.0
        %1553 = vmatpush1.msra.mxu0 %v877
        %1554 = vmatprep.subr.mxu0 0.0
        %1555 = vmatpush1.msra.mxu0 %v878
        %1556 = vmatprep.subr.mxu0 0.0
        %1557 = vmatpush1.msra.mxu0 %v879
        %1558 = vmatprep.subr.mxu0 0.0
        %1559 = vmatpush1.msra.mxu0 %v880
        %1560 = vmatprep.subr.mxu0 0.0
        %1561 = vmatpush1.msra.mxu0 %v881
        %1562 = vmatprep.subr.mxu0 0.0
        %1563 = vmatpush1.msra.mxu0 %v882
        %1564 = vmatprep.subr.mxu0 0.0
        %1565 = vmatpush1.msra.mxu0 %v883
        %1566 = vmatprep.subr.mxu0 0.0
        %1567 = vmatpush1.msra.mxu0 %v884
        %1568 = vmatprep.subr.mxu0 0.0
        %1569 = vmatpush1.msra.mxu0 %v885
        %1570 = vmatprep.subr.mxu0 0.0
        %1571 = vmatpush1.msra.mxu0 %v886
        %1572 = vmatprep.subr.mxu0 0.0
        %1573 = vmatpush1.msra.mxu0 %v887
        %1574 = vmatprep.subr.mxu0 0.0
        %1575 = vmatpush1.msra.mxu0 %v888
        %1576 = vmatprep.subr.mxu0 0.0
        %1577 = vmatpush1.msra.mxu0 %v889
        %1578 = vmatprep.subr.mxu0 0.0
        %1579 = vmatpush1.msra.mxu0 %v890
        %1580 = vmatprep.subr.mxu0 0.0
        %1581 = vmatpush1.msra.mxu0 %v891
        %1582 = vmatprep.subr.mxu0 0.0
        %1583 = vmatpush1.msra.mxu0 %v892
        %1584 = vmatprep.subr.mxu0 0.0
        %1585 = vmatpush1.msra.mxu0 0.0
        %1586 = vmatprep.subr.mxu0 0.0
        %1587 = vmatpush1.msra.mxu0 0.0
        %1588 = vmatprep.subr.mxu0 0.0
        %1589 = vmatpush1.msra.mxu0 0.0
        %1590 = vmatprep.subr.mxu0 0.0
        %1591 = vmatpush1.msra.mxu0 0.0
        %1592 = vmatprep.subr.mxu0 0.0
        %1593 = vmatpush1.msra.mxu0 0.0
        %1594 = vmatprep.subr.mxu0 0.0
        %1595 = vmatpush1.msra.mxu0 0.0
        %1596 = vmatprep.subr.mxu0 0.0
        %1597 = vmatpush1.msra.mxu0 0.0
        %1598 = vmatprep.subr.mxu0 0.0
        %1599 = vmatpush1.msra.mxu0 0.0
        %1600 = vmatprep.subr.mxu0 0.0
        %1601 = vmatpush1.msra.mxu0 0.0
        %1602 = vmatprep.subr.mxu0 0.0
        %1603 = vmatpush1.msra.mxu0 0.0
        %1604 = vmatprep.subr.mxu0 0.0
        %1605 = vmatpush1.msra.mxu0 0.0
        %1606 = vmatprep.subr.mxu0 0.0
        %1607 = vmatpush1.msra.mxu0 0.0
        %1608 = vmatprep.subr.mxu0 0.0
        %1609 = vmatpush1.msra.mxu0 0.0
        %1610 = vmatprep.subr.mxu0 0.0
        %1611 = vmatpush1.msra.mxu0 0.0
        %1612 = vmatprep.subr.mxu0 0.0
        %1613 = vmatpush1.msra.mxu0 0.0
        %1614 = vmatprep.subr.mxu0 0.0
        %1615 = vmatpush1.msra.mxu0 0.0
        %1616 = vmatprep.mubr.f32.mxu0 0.0
        %1617 = vmatmul.mubr.f32.gmra.mrb[0].mxu0 %v761
        %v1618 = vpop.f32.mrb[0].mxu0
        %v1619 = vadd.f32 0.0, %v1618
        %v1620 = vpop.f32.mrb[0].mxu0
        %1621 = vmatprep.mubr.f32.mxu0 0.0
        %1622 = vmatmul.mubr.f32.gmra.mrb[0].mxu0 %v762
        %v1623 = vpop.f32.mrb[0].mxu0
        %v1624 = vadd.f32 0.0, %v1623
        %v1625 = vpop.f32.mrb[0].mxu0
        %1626 = vmatprep.mubr.f32.mxu0 0.0
        %1627 = vmatmul.mubr.f32.gmra.mrb[0].mxu0 %v763
        %v1628 = vpop.f32.mrb[0].mxu0
        %v1629 = vadd.f32 0.0, %v1628
        %v1630 = vpop.f32.mrb[0].mxu0
        %1631 = vmatprep.mubr.f32.mxu0 0.0
        %1632 = vmatmul.mubr.f32.gmra.mrb[0].mxu0 %v764
        %v1633 = vpop.f32.mrb[0].mxu0
        %v1634 = vadd.f32 0.0, %v1633
        %v1635 = vpop.f32.mrb[0].mxu0
        %1636 = vdwg.mxu0
        %1637 = vmatprep.subr.mxu0 0.0
        %1638 = vmatpush1.msra.mxu0 %v893
        %1639 = vmatprep.subr.mxu0 0.0
        %1640 = vmatpush1.msra.mxu0 %v894
        %1641 = vmatprep.subr.mxu0 0.0
        %1642 = vmatpush1.msra.mxu0 %v895
        %1643 = vmatprep.subr.mxu0 0.0
        %1644 = vmatpush1.msra.mxu0 %v896
        %1645 = vmatprep.subr.mxu0 0.0
        %1646 = vmatpush1.msra.mxu0 %v897
        %1647 = vmatprep.subr.mxu0 0.0
        %1648 = vmatpush1.msra.mxu0 %v898
        %1649 = vmatprep.subr.mxu0 0.0
        %1650 = vmatpush1.msra.mxu0 %v899
        %1651 = vmatprep.subr.mxu0 0.0
        %1652 = vmatpush1.msra.mxu0 %v900
        %1653 = vmatprep.subr.mxu0 0.0
        %1654 = vmatpush1.msra.mxu0 %v901
        %1655 = vmatprep.subr.mxu0 0.0
        %1656 = vmatpush1.msra.mxu0 %v902
        %1657 = vmatprep.subr.mxu0 0.0
        %1658 = vmatpush1.msra.mxu0 %v903
        %1659 = vmatprep.subr.mxu0 0.0
        %1660 = vmatpush1.msra.mxu0 %v904
        %1661 = vmatprep.subr.mxu0 0.0
        %1662 = vmatpush1.msra.mxu0 %v905
        %1663 = vmatprep.subr.mxu0 0.0
        %1664 = vmatpush1.msra.mxu0 %v906
        %1665 = vmatprep.subr.mxu0 0.0
        %1666 = vmatpush1.msra.mxu0 %v907
        %1667 = vmatprep.subr.mxu0 0.0
        %1668 = vmatpush1.msra.mxu0 %v908
        %1669 = vmatprep.subr.mxu0 0.0
        %1670 = vmatpush1.msra.mxu0 0.0
        %1671 = vmatprep.subr.mxu0 0.0
        %1672 = vmatpush1.msra.mxu0 0.0
        %1673 = vmatprep.subr.mxu0 0.0
        %1674 = vmatpush1.msra.mxu0 0.0
        %1675 = vmatprep.subr.mxu0 0.0
        %1676 = vmatpush1.msra.mxu0 0.0
        %1677 = vmatprep.subr.mxu0 0.0
        %1678 = vmatpush1.msra.mxu0 0.0
        %1679 = vmatprep.subr.mxu0 0.0
        %1680 = vmatpush1.msra.mxu0 0.0
        %1681 = vmatprep.subr.mxu0 0.0
        %1682 = vmatpush1.msra.mxu0 0.0
        %1683 = vmatprep.subr.mxu0 0.0
        %1684 = vmatpush1.msra.mxu0 0.0
        %1685 = vmatprep.subr.mxu0 0.0
        %1686 = vmatpush1.msra.mxu0 0.0
        %1687 = vmatprep.subr.mxu0 0.0
        %1688 = vmatpush1.msra.mxu0 0.0
        %1689 = vmatprep.subr.mxu0 0.0
        %1690 = vmatpush1.msra.mxu0 0.0
        %1691 = vmatprep.subr.mxu0 0.0
        %1692 = vmatpush1.msra.mxu0 0.0
        %1693 = vmatprep.subr.mxu0 0.0
        %1694 = vmatpush1.msra.mxu0 0.0
        %1695 = vmatprep.subr.mxu0 0.0
        %1696 = vmatpush1.msra.mxu0 0.0
        %1697 = vmatprep.subr.mxu0 0.0
        %1698 = vmatpush1.msra.mxu0 0.0
        %1699 = vmatprep.subr.mxu0 0.0
        %1700 = vmatpush1.msra.mxu0 0.0
        %1701 = vmatprep.mubr.f32.mxu0 0.0
        %1702 = vmatmul.mubr.f32.gmra.mrb[0].mxu0 %v761
        %v1703 = vpop.f32.mrb[0].mxu0
        %v1704 = vadd.f32 0.0, %v1703
        %v1705 = vpop.f32.mrb[0].mxu0
        %1706 = vmatprep.mubr.f32.mxu0 0.0
        %1707 = vmatmul.mubr.f32.gmra.mrb[0].mxu0 %v762
        %v1708 = vpop.f32.mrb[0].mxu0
        %v1709 = vadd.f32 0.0, %v1708
        %v1710 = vpop.f32.mrb[0].mxu0
        %1711 = vmatprep.mubr.f32.mxu0 0.0
        %1712 = vmatmul.mubr.f32.gmra.mrb[0].mxu0 %v763
        %v1713 = vpop.f32.mrb[0].mxu0
        %v1714 = vadd.f32 0.0, %v1713
        %v1715 = vpop.f32.mrb[0].mxu0
        %1716 = vmatprep.mubr.f32.mxu0 0.0
        %1717 = vmatmul.mubr.f32.gmra.mrb[0].mxu0 %v764
        %v1718 = vpop.f32.mrb[0].mxu0
        %v1719 = vadd.f32 0.0, %v1718
        %v1720 = vpop.f32.mrb[0].mxu0
        %1721 = vdwg.mxu0
        %1722 = vmatprep.subr.mxu0 0.0
        %1723 = vmatpush1.msra.mxu0 %v909
        %1724 = vmatprep.subr.mxu0 0.0
        %1725 = vmatpush1.msra.mxu0 %v910
        %1726 = vmatprep.subr.mxu0 0.0
        %1727 = vmatpush1.msra.mxu0 %v911
        %1728 = vmatprep.subr.mxu0 0.0
        %1729 = vmatpush1.msra.mxu0 %v912
        %1730 = vmatprep.subr.mxu0 0.0
        %1731 = vmatpush1.msra.mxu0 %v913
        %1732 = vmatprep.subr.mxu0 0.0
        %1733 = vmatpush1.msra.mxu0 %v914
        %1734 = vmatprep.subr.mxu0 0.0
        %1735 = vmatpush1.msra.mxu0 %v915
        %1736 = vmatprep.subr.mxu0 0.0
        %1737 = vmatpush1.msra.mxu0 %v916
        %1738 = vmatprep.subr.mxu0 0.0
        %1739 = vmatpush1.msra.mxu0 %v917
        %1740 = vmatprep.subr.mxu0 0.0
        %1741 = vmatpush1.msra.mxu0 %v918
        %1742 = vmatprep.subr.mxu0 0.0
        %1743 = vmatpush1.msra.mxu0 %v919
        %1744 = vmatprep.subr.mxu0 0.0
        %1745 = vmatpush1.msra.mxu0 %v920
        %1746 = vmatprep.subr.mxu0 0.0
        %1747 = vmatpush1.msra.mxu0 %v921
        %1748 = vmatprep.subr.mxu0 0.0
        %1749 = vmatpush1.msra.mxu0 %v922
        %1750 = vmatprep.subr.mxu0 0.0
        %1751 = vmatpush1.msra.mxu0 %v923
        %1752 = vmatprep.subr.mxu0 0.0
        %1753 = vmatpush1.msra.mxu0 %v924
        %1754 = vmatprep.subr.mxu0 0.0
        %1755 = vmatpush1.msra.mxu0 0.0
        %1756 = vmatprep.subr.mxu0 0.0
        %1757 = vmatpush1.msra.mxu0 0.0
        %1758 = vmatprep.subr.mxu0 0.0
        %1759 = vmatpush1.msra.mxu0 0.0
        %1760 = vmatprep.subr.mxu0 0.0
        %1761 = vmatpush1.msra.mxu0 0.0
        %1762 = vmatprep.subr.mxu0 0.0
        %1763 = vmatpush1.msra.mxu0 0.0
        %1764 = vmatprep.subr.mxu0 0.0
        %1765 = vmatpush1.msra.mxu0 0.0
        %1766 = vmatprep.subr.mxu0 0.0
        %1767 = vmatpush1.msra.mxu0 0.0
        %1768 = vmatprep.subr.mxu0 0.0
        %1769 = vmatpush1.msra.mxu0 0.0
        %1770 = vmatprep.subr.mxu0 0.0
        %1771 = vmatpush1.msra.mxu0 0.0
        %1772 = vmatprep.subr.mxu0 0.0
        %1773 = vmatpush1.msra.mxu0 0.0
        %1774 = vmatprep.subr.mxu0 0.0
        %1775 = vmatpush1.msra.mxu0 0.0
        %1776 = vmatprep.subr.mxu0 0.0
        %1777 = vmatpush1.msra.mxu0 0.0
        %1778 = vmatprep.subr.mxu0 0.0
        %1779 = vmatpush1.msra.mxu0 0.0
        %1780 = vmatprep.subr.mxu0 0.0
        %1781 = vmatpush1.msra.mxu0 0.0
        %1782 = vmatprep.subr.mxu0 0.0
        %1783 = vmatpush1.msra.mxu0 0.0
        %1784 = vmatprep.subr.mxu0 0.0
        %1785 = vmatpush1.msra.mxu0 0.0
        %1786 = vmatprep.mubr.f32.mxu0 0.0
        %1787 = vmatmul.mubr.f32.gmra.mrb[0].mxu0 %v761
        %v1788 = vpop.f32.mrb[0].mxu0
        %v1789 = vadd.f32 0.0, %v1788
        %v1790 = vpop.f32.mrb[0].mxu0
        %1791 = vmatprep.mubr.f32.mxu0 0.0
        %1792 = vmatmul.mubr.f32.gmra.mrb[0].mxu0 %v762
        %v1793 = vpop.f32.mrb[0].mxu0
        %v1794 = vadd.f32 0.0, %v1793
        %v1795 = vpop.f32.mrb[0].mxu0
        %1796 = vmatprep.mubr.f32.mxu0 0.0
        %1797 = vmatmul.mubr.f32.gmra.mrb[0].mxu0 %v763
        %v1798 = vpop.f32.mrb[0].mxu0
        %v1799 = vadd.f32 0.0, %v1798
        %v1800 = vpop.f32.mrb[0].mxu0
        %1801 = vmatprep.mubr.f32.mxu0 0.0
        %1802 = vmatmul.mubr.f32.gmra.mrb[0].mxu0 %v764
        %v1803 = vpop.f32.mrb[0].mxu0
        %v1804 = vadd.f32 0.0, %v1803
        %v1805 = vpop.f32.mrb[0].mxu0
        %1806 = vdwg.mxu0
        %1807 = vmatprep.subr.mxu0 0.0
        %1808 = vmatpush1.msra.mxu0 %v925
        %1809 = vmatprep.subr.mxu0 0.0
        %1810 = vmatpush1.msra.mxu0 %v926
        %1811 = vmatprep.subr.mxu0 0.0
        %1812 = vmatpush1.msra.mxu0 %v927
        %1813 = vmatprep.subr.mxu0 0.0
        %1814 = vmatpush1.msra.mxu0 %v928
        %1815 = vmatprep.subr.mxu0 0.0
        %1816 = vmatpush1.msra.mxu0 %v929
        %1817 = vmatprep.subr.mxu0 0.0
        %1818 = vmatpush1.msra.mxu0 %v930
        %1819 = vmatprep.subr.mxu0 0.0
        %1820 = vmatpush1.msra.mxu0 %v931
        %1821 = vmatprep.subr.mxu0 0.0
        %1822 = vmatpush1.msra.mxu0 %v932
        %1823 = vmatprep.subr.mxu0 0.0
        %1824 = vmatpush1.msra.mxu0 %v933
        %1825 = vmatprep.subr.mxu0 0.0
        %1826 = vmatpush1.msra.mxu0 %v934
        %1827 = vmatprep.subr.mxu0 0.0
        %1828 = vmatpush1.msra.mxu0 %v935
        %1829 = vmatprep.subr.mxu0 0.0
        %1830 = vmatpush1.msra.mxu0 %v936
        %1831 = vmatprep.subr.mxu0 0.0
        %1832 = vmatpush1.msra.mxu0 %v937
        %1833 = vmatprep.subr.mxu0 0.0
        %1834 = vmatpush1.msra.mxu0 %v938
        %1835 = vmatprep.subr.mxu0 0.0
        %1836 = vmatpush1.msra.mxu0 %v939
        %1837 = vmatprep.subr.mxu0 0.0
        %1838 = vmatpush1.msra.mxu0 %v940
        %1839 = vmatprep.subr.mxu0 0.0
        %1840 = vmatpush1.msra.mxu0 0.0
        %1841 = vmatprep.subr.mxu0 0.0
        %1842 = vmatpush1.msra.mxu0 0.0
        %1843 = vmatprep.subr.mxu0 0.0
        %1844 = vmatpush1.msra.mxu0 0.0
        %1845 = vmatprep.subr.mxu0 0.0
        %1846 = vmatpush1.msra.mxu0 0.0
        %1847 = vmatprep.subr.mxu0 0.0
        %1848 = vmatpush1.msra.mxu0 0.0
        %1849 = vmatprep.subr.mxu0 0.0
        %1850 = vmatpush1.msra.mxu0 0.0
        %1851 = vmatprep.subr.mxu0 0.0
        %1852 = vmatpush1.msra.mxu0 0.0
        %1853 = vmatprep.subr.mxu0 0.0
        %1854 = vmatpush1.msra.mxu0 0.0
        %1855 = vmatprep.subr.mxu0 0.0
        %1856 = vmatpush1.msra.mxu0 0.0
        %1857 = vmatprep.subr.mxu0 0.0
        %1858 = vmatpush1.msra.mxu0 0.0
        %1859 = vmatprep.subr.mxu0 0.0
        %1860 = vmatpush1.msra.mxu0 0.0
        %1861 = vmatprep.subr.mxu0 0.0
        %1862 = vmatpush1.msra.mxu0 0.0
        %1863 = vmatprep.subr.mxu0 0.0
        %1864 = vmatpush1.msra.mxu0 0.0
        %1865 = vmatprep.subr.mxu0 0.0
        %1866 = vmatpush1.msra.mxu0 0.0
        %1867 = vmatprep.subr.mxu0 0.0
        %1868 = vmatpush1.msra.mxu0 0.0
        %1869 = vmatprep.subr.mxu0 0.0
        %1870 = vmatpush1.msra.mxu0 0.0
        %1871 = vmatprep.mubr.f32.mxu0 0.0
        %1872 = vmatmul.mubr.f32.gmra.mrb[0].mxu0 %v761
        %v1873 = vpop.f32.mrb[0].mxu0
        %v1874 = vadd.f32 0.0, %v1873
        %v1875 = vpop.f32.mrb[0].mxu0
        %1876 = vmatprep.mubr.f32.mxu0 0.0
        %1877 = vmatmul.mubr.f32.gmra.mrb[0].mxu0 %v762
        %v1878 = vpop.f32.mrb[0].mxu0
        %v1879 = vadd.f32 0.0, %v1878
        %v1880 = vpop.f32.mrb[0].mxu0
        %1881 = vmatprep.mubr.f32.mxu0 0.0
        %1882 = vmatmul.mubr.f32.gmra.mrb[0].mxu0 %v763
        %v1883 = vpop.f32.mrb[0].mxu0
        %v1884 = vadd.f32 0.0, %v1883
        %v1885 = vpop.f32.mrb[0].mxu0
        %1886 = vmatprep.mubr.f32.mxu0 0.0
        %1887 = vmatmul.mubr.f32.gmra.mrb[0].mxu0 %v764
        %v1888 = vpop.f32.mrb[0].mxu0
        %v1889 = vadd.f32 0.0, %v1888
        %v1890 = vpop.f32.mrb[0].mxu0
        %1891 = vdwg.mxu0
        %1892 = vmatprep.subr.mxu0 0.0
        %1893 = vmatpush1.msra.mxu0 %v941
        %1894 = vmatprep.subr.mxu0 0.0
        %1895 = vmatpush1.msra.mxu0 %v942
        %1896 = vmatprep.subr.mxu0 0.0
        %1897 = vmatpush1.msra.mxu0 %v943
        %1898 = vmatprep.subr.mxu0 0.0
        %1899 = vmatpush1.msra.mxu0 %v944
        %1900 = vmatprep.subr.mxu0 0.0
        %1901 = vmatpush1.msra.mxu0 %v945
        %1902 = vmatprep.subr.mxu0 0.0
        %1903 = vmatpush1.msra.mxu0 %v946
        %1904 = vmatprep.subr.mxu0 0.0
        %1905 = vmatpush1.msra.mxu0 %v947
        %1906 = vmatprep.subr.mxu0 0.0
        %1907 = vmatpush1.msra.mxu0 %v948
        %1908 = vmatprep.subr.mxu0 0.0
        %1909 = vmatpush1.msra.mxu0 %v949
        %1910 = vmatprep.subr.mxu0 0.0
        %1911 = vmatpush1.msra.mxu0 %v950
        %1912 = vmatprep.subr.mxu0 0.0
        %1913 = vmatpush1.msra.mxu0 %v951
        %1914 = vmatprep.subr.mxu0 0.0
        %1915 = vmatpush1.msra.mxu0 %v952
        %1916 = vmatprep.subr.mxu0 0.0
        %1917 = vmatpush1.msra.mxu0 %v953
        %1918 = vmatprep.subr.mxu0 0.0
        %1919 = vmatpush1.msra.mxu0 %v954
        %1920 = vmatprep.subr.mxu0 0.0
        %1921 = vmatpush1.msra.mxu0 %v955
        %1922 = vmatprep.subr.mxu0 0.0
        %1923 = vmatpush1.msra.mxu0 %v956
        %1924 = vmatprep.subr.mxu0 0.0
        %1925 = vmatpush1.msra.mxu0 0.0
        %1926 = vmatprep.subr.mxu0 0.0
        %1927 = vmatpush1.msra.mxu0 0.0
        %1928 = vmatprep.subr.mxu0 0.0
        %1929 = vmatpush1.msra.mxu0 0.0
        %1930 = vmatprep.subr.mxu0 0.0
        %1931 = vmatpush1.msra.mxu0 0.0
        %1932 = vmatprep.subr.mxu0 0.0
        %1933 = vmatpush1.msra.mxu0 0.0
        %1934 = vmatprep.subr.mxu0 0.0
        %1935 = vmatpush1.msra.mxu0 0.0
        %1936 = vmatprep.subr.mxu0 0.0
        %1937 = vmatpush1.msra.mxu0 0.0
        %1938 = vmatprep.subr.mxu0 0.0
        %1939 = vmatpush1.msra.mxu0 0.0
        %1940 = vmatprep.subr.mxu0 0.0
        %1941 = vmatpush1.msra.mxu0 0.0
        %1942 = vmatprep.subr.mxu0 0.0
        %1943 = vmatpush1.msra.mxu0 0.0
        %1944 = vmatprep.subr.mxu0 0.0
        %1945 = vmatpush1.msra.mxu0 0.0
        %1946 = vmatprep.subr.mxu0 0.0
        %1947 = vmatpush1.msra.mxu0 0.0
        %1948 = vmatprep.subr.mxu0 0.0
        %1949 = vmatpush1.msra.mxu0 0.0
        %1950 = vmatprep.subr.mxu0 0.0
        %1951 = vmatpush1.msra.mxu0 0.0
        %1952 = vmatprep.subr.mxu0 0.0
        %1953 = vmatpush1.msra.mxu0 0.0
        %1954 = vmatprep.subr.mxu0 0.0
        %1955 = vmatpush1.msra.mxu0 0.0
        %1956 = vmatprep.mubr.f32.mxu0 0.0
        %1957 = vmatmul.mubr.f32.gmra.mrb[0].mxu0 %v761
        %v1958 = vpop.f32.mrb[0].mxu0
        %v1959 = vadd.f32 0.0, %v1958
        %v1960 = vpop.f32.mrb[0].mxu0
        %1961 = vmatprep.mubr.f32.mxu0 0.0
        %1962 = vmatmul.mubr.f32.gmra.mrb[0].mxu0 %v762
        %v1963 = vpop.f32.mrb[0].mxu0
        %v1964 = vadd.f32 0.0, %v1963
        %v1965 = vpop.f32.mrb[0].mxu0
        %1966 = vmatprep.mubr.f32.mxu0 0.0
        %1967 = vmatmul.mubr.f32.gmra.mrb[0].mxu0 %v763
        %v1968 = vpop.f32.mrb[0].mxu0
        %v1969 = vadd.f32 0.0, %v1968
        %v1970 = vpop.f32.mrb[0].mxu0
        %1971 = vmatprep.mubr.f32.mxu0 0.0
        %1972 = vmatmul.mubr.f32.gmra.mrb[0].mxu0 %v764
        %v1973 = vpop.f32.mrb[0].mxu0
        %v1974 = vadd.f32 0.0, %v1973
        %v1975 = vpop.f32.mrb[0].mxu0
        %1976 = vdwg.mxu0
        %vm1977 = vcmask 261120
        %v1979 = vsel %vm1977, %v1024, 0
        %v1982 = vsel %vm1977, %v1029, 0
        %v1985 = vsel %vm1977, %v1034, 0
        %v1988 = vsel %vm1977, %v1039, 0
        %v1991 = vsel %vm1977, %v1364, 0
        %v1994 = vsel %vm1977, %v1369, 0
        %v1997 = vsel %vm1977, %v1374, 0
        %v2000 = vsel %vm1977, %v1379, 0
        %2002 = vmatprep.subr.mxu0 0.0
        %2003 = vmatpush1.xpose.msra.mxu0 %v1991
        %2004 = vmatprep.subr.mxu0 0.0
        %2005 = vmatpush1.xpose.msra.mxu0 %v1994
        %2006 = vmatprep.subr.mxu0 0.0
        %2007 = vmatpush1.xpose.msra.mxu0 %v1997
        %2008 = vmatprep.subr.mxu0 0.0
        %2009 = vmatpush1.xpose.msra.mxu0 %v2000
        %2010 = vmatprep.subr.mxu0 0.0
        %2011 = vmatpush1.xpose.msra.mxu0 0.0
        %2012 = vmatprep.subr.mxu0 0.0
        %2013 = vmatpush1.xpose.msra.mxu0 0.0
        %2014 = vmatprep.subr.mxu0 0.0
        %2015 = vmatpush1.xpose.msra.mxu0 0.0
        %2016 = vmatprep.subr.mxu0 0.0
        %2017 = vmatpush1.xpose.msra.mxu0 0.0
        %2018 = vmatprep.subr.mxu0 0.0
        %2019 = vmatpush1.xpose.msra.mxu0 0.0
        %2020 = vmatprep.subr.mxu0 0.0
        %2021 = vmatpush1.xpose.msra.mxu0 0.0
        %2022 = vmatprep.subr.mxu0 0.0
        %2023 = vmatpush1.xpose.msra.mxu0 0.0
        %2024 = vmatprep.subr.mxu0 0.0
        %2025 = vmatpush1.xpose.msra.mxu0 0.0
        %2026 = vmatprep.subr.mxu0 0.0
        %2027 = vmatpush1.xpose.msra.mxu0 0.0
        %2028 = vmatprep.subr.mxu0 0.0
        %2029 = vmatpush1.xpose.msra.mxu0 0.0
        %2030 = vmatprep.subr.mxu0 0.0
        %2031 = vmatpush1.xpose.msra.mxu0 0.0
        %2032 = vmatprep.subr.mxu0 0.0
        %2033 = vmatpush1.xpose.msra.mxu0 0.0
        %2034 = vmatprep.subr.mxu0 0.0
        %2035 = vmatpush1.xpose.msra.mxu0 0.0
        %2036 = vmatprep.subr.mxu0 0.0
        %2037 = vmatpush1.xpose.msra.mxu0 0.0
        %2038 = vmatprep.subr.mxu0 0.0
        %2039 = vmatpush1.xpose.msra.mxu0 0.0
        %2040 = vmatprep.subr.mxu0 0.0
        %2041 = vmatpush1.xpose.msra.mxu0 0.0
        %2042 = vmatprep.subr.mxu0 0.0
        %2043 = vmatpush1.xpose.msra.mxu0 0.0
        %2044 = vmatprep.subr.mxu0 0.0
        %2045 = vmatpush1.xpose.msra.mxu0 0.0
        %2046 = vmatprep.subr.mxu0 0.0
        %2047 = vmatpush1.xpose.msra.mxu0 0.0
        %2048 = vmatprep.subr.mxu0 0.0
        %2049 = vmatpush1.xpose.msra.mxu0 0.0
        %2050 = vmatprep.subr.mxu0 0.0
        %2051 = vmatpush1.xpose.msra.mxu0 0.0
        %2052 = vmatprep.subr.mxu0 0.0
        %2053 = vmatpush1.xpose.msra.mxu0 0.0
        %2054 = vmatprep.subr.mxu0 0.0
        %2055 = vmatpush1.xpose.msra.mxu0 0.0
        %2056 = vmatprep.subr.mxu0 0.0
        %2057 = vmatpush1.xpose.msra.mxu0 0.0
        %2058 = vmatprep.subr.mxu0 0.0
        %2059 = vmatpush1.xpose.msra.mxu0 0.0
        %2060 = vmatprep.subr.mxu0 0.0
        %2061 = vmatpush1.xpose.msra.mxu0 0.0
        %2062 = vmatprep.subr.mxu0 0.0
        %2063 = vmatpush1.xpose.msra.mxu0 0.0
        %2064 = vmatprep.subr.mxu0 0.0
        %2065 = vmatpush1.xpose.msra.mxu0 0.0
        %2066 = vmatprep.mubr.f32.mxu0 0.0
        %2067 = vmatmul.mubr.f32.gmra.mrb[0].mxu0 %v1979
        %v2068 = vpop.f32.mrb[0].mxu0
        %v2069 = vadd.f32 0.0, %v2068
        %v2070 = vpop.f32.mrb[0].mxu0
        %2071 = vmatprep.mubr.f32.mxu0 0.0
        %2072 = vmatmul.mubr.f32.gmra.mrb[0].mxu0 %v1982
        %v2073 = vpop.f32.mrb[0].mxu0
        %v2074 = vadd.f32 0.0, %v2073
        %v2075 = vpop.f32.mrb[0].mxu0
        %2076 = vmatprep.mubr.f32.mxu0 0.0
        %2077 = vmatmul.mubr.f32.gmra.mrb[0].mxu0 %v1985
        %v2078 = vpop.f32.mrb[0].mxu0
        %v2079 = vadd.f32 0.0, %v2078
        %v2080 = vpop.f32.mrb[0].mxu0
        %2081 = vmatprep.mubr.f32.mxu0 0.0
        %2082 = vmatmul.mubr.f32.gmra.mrb[0].mxu0 %v1988
        %v2083 = vpop.f32.mrb[0].mxu0
        %v2084 = vadd.f32 0.0, %v2083
        %v2085 = vpop.f32.mrb[0].mxu0
        %2086 = vdwg.mxu0
        %v2088 = vsel %vm1977, %v1109, 0
        %v2091 = vsel %vm1977, %v1114, 0
        %v2094 = vsel %vm1977, %v1119, 0
        %v2097 = vsel %vm1977, %v1124, 0
        %v2100 = vsel %vm1977, %v1449, 0
        %v2103 = vsel %vm1977, %v1454, 0
        %v2106 = vsel %vm1977, %v1459, 0
        %v2109 = vsel %vm1977, %v1464, 0
        %2111 = vmatprep.subr.mxu0 0.0
        %2112 = vmatpush1.xpose.msra.mxu0 %v2100
        %2113 = vmatprep.subr.mxu0 0.0
        %2114 = vmatpush1.xpose.msra.mxu0 %v2103
        %2115 = vmatprep.subr.mxu0 0.0
        %2116 = vmatpush1.xpose.msra.mxu0 %v2106
        %2117 = vmatprep.subr.mxu0 0.0
        %2118 = vmatpush1.xpose.msra.mxu0 %v2109
        %2119 = vmatprep.subr.mxu0 0.0
        %2120 = vmatpush1.xpose.msra.mxu0 0.0
        %2121 = vmatprep.subr.mxu0 0.0
        %2122 = vmatpush1.xpose.msra.mxu0 0.0
        %2123 = vmatprep.subr.mxu0 0.0
        %2124 = vmatpush1.xpose.msra.mxu0 0.0
        %2125 = vmatprep.subr.mxu0 0.0
        %2126 = vmatpush1.xpose.msra.mxu0 0.0
        %2127 = vmatprep.subr.mxu0 0.0
        %2128 = vmatpush1.xpose.msra.mxu0 0.0
        %2129 = vmatprep.subr.mxu0 0.0
        %2130 = vmatpush1.xpose.msra.mxu0 0.0
        %2131 = vmatprep.subr.mxu0 0.0
        %2132 = vmatpush1.xpose.msra.mxu0 0.0
        %2133 = vmatprep.subr.mxu0 0.0
        %2134 = vmatpush1.xpose.msra.mxu0 0.0
        %2135 = vmatprep.subr.mxu0 0.0
        %2136 = vmatpush1.xpose.msra.mxu0 0.0
        %2137 = vmatprep.subr.mxu0 0.0
        %2138 = vmatpush1.xpose.msra.mxu0 0.0
        %2139 = vmatprep.subr.mxu0 0.0
        %2140 = vmatpush1.xpose.msra.mxu0 0.0
        %2141 = vmatprep.subr.mxu0 0.0
        %2142 = vmatpush1.xpose.msra.mxu0 0.0
        %2143 = vmatprep.subr.mxu0 0.0
        %2144 = vmatpush1.xpose.msra.mxu0 0.0
        %2145 = vmatprep.subr.mxu0 0.0
        %2146 = vmatpush1.xpose.msra.mxu0 0.0
        %2147 = vmatprep.subr.mxu0 0.0
        %2148 = vmatpush1.xpose.msra.mxu0 0.0
        %2149 = vmatprep.subr.mxu0 0.0
        %2150 = vmatpush1.xpose.msra.mxu0 0.0
        %2151 = vmatprep.subr.mxu0 0.0
        %2152 = vmatpush1.xpose.msra.mxu0 0.0
        %2153 = vmatprep.subr.mxu0 0.0
        %2154 = vmatpush1.xpose.msra.mxu0 0.0
        %2155 = vmatprep.subr.mxu0 0.0
        %2156 = vmatpush1.xpose.msra.mxu0 0.0
        %2157 = vmatprep.subr.mxu0 0.0
        %2158 = vmatpush1.xpose.msra.mxu0 0.0
        %2159 = vmatprep.subr.mxu0 0.0
        %2160 = vmatpush1.xpose.msra.mxu0 0.0
        %2161 = vmatprep.subr.mxu0 0.0
        %2162 = vmatpush1.xpose.msra.mxu0 0.0
        %2163 = vmatprep.subr.mxu0 0.0
        %2164 = vmatpush1.xpose.msra.mxu0 0.0
        %2165 = vmatprep.subr.mxu0 0.0
        %2166 = vmatpush1.xpose.msra.mxu0 0.0
        %2167 = vmatprep.subr.mxu0 0.0
        %2168 = vmatpush1.xpose.msra.mxu0 0.0
        %2169 = vmatprep.subr.mxu0 0.0
        %2170 = vmatpush1.xpose.msra.mxu0 0.0
        %2171 = vmatprep.subr.mxu0 0.0
        %2172 = vmatpush1.xpose.msra.mxu0 0.0
        %2173 = vmatprep.subr.mxu0 0.0
        %2174 = vmatpush1.xpose.msra.mxu0 0.0
        %2175 = vmatprep.mubr.f32.mxu0 0.0
        %2176 = vmatmul.mubr.f32.gmra.mrb[0].mxu0 %v2088
        %v2177 = vpop.f32.mrb[0].mxu0
        %v2178 = vadd.f32 0.0, %v2177
        %v2179 = vpop.f32.mrb[0].mxu0
        %2180 = vmatprep.mubr.f32.mxu0 0.0
        %2181 = vmatmul.mubr.f32.gmra.mrb[0].mxu0 %v2091
        %v2182 = vpop.f32.mrb[0].mxu0
        %v2183 = vadd.f32 0.0, %v2182
        %v2184 = vpop.f32.mrb[0].mxu0
        %2185 = vmatprep.mubr.f32.mxu0 0.0
        %2186 = vmatmul.mubr.f32.gmra.mrb[0].mxu0 %v2094
        %v2187 = vpop.f32.mrb[0].mxu0
        %v2188 = vadd.f32 0.0, %v2187
        %v2189 = vpop.f32.mrb[0].mxu0
        %2190 = vmatprep.mubr.f32.mxu0 0.0
        %2191 = vmatmul.mubr.f32.gmra.mrb[0].mxu0 %v2097
        %v2192 = vpop.f32.mrb[0].mxu0
        %v2193 = vadd.f32 0.0, %v2192
        %v2194 = vpop.f32.mrb[0].mxu0
        %2195 = vdwg.mxu0
        %v2197 = vsel %vm1977, %v1194, 0
        %v2200 = vsel %vm1977, %v1199, 0
        %v2203 = vsel %vm1977, %v1204, 0
        %v2206 = vsel %vm1977, %v1209, 0
        %v2209 = vsel %vm1977, %v1534, 0
        %v2212 = vsel %vm1977, %v1539, 0
        %v2215 = vsel %vm1977, %v1544, 0
        %v2218 = vsel %vm1977, %v1549, 0
        %2220 = vmatprep.subr.mxu0 0.0
        %2221 = vmatpush1.xpose.msra.mxu0 %v2209
        %2222 = vmatprep.subr.mxu0 0.0
        %2223 = vmatpush1.xpose.msra.mxu0 %v2212
        %2224 = vmatprep.subr.mxu0 0.0
        %2225 = vmatpush1.xpose.msra.mxu0 %v2215
        %2226 = vmatprep.subr.mxu0 0.0
        %2227 = vmatpush1.xpose.msra.mxu0 %v2218
        %2228 = vmatprep.subr.mxu0 0.0
        %2229 = vmatpush1.xpose.msra.mxu0 0.0
        %2230 = vmatprep.subr.mxu0 0.0
        %2231 = vmatpush1.xpose.msra.mxu0 0.0
        %2232 = vmatprep.subr.mxu0 0.0
        %2233 = vmatpush1.xpose.msra.mxu0 0.0
        %2234 = vmatprep.subr.mxu0 0.0
        %2235 = vmatpush1.xpose.msra.mxu0 0.0
        %2236 = vmatprep.subr.mxu0 0.0
        %2237 = vmatpush1.xpose.msra.mxu0 0.0
        %2238 = vmatprep.subr.mxu0 0.0
        %2239 = vmatpush1.xpose.msra.mxu0 0.0
        %2240 = vmatprep.subr.mxu0 0.0
        %2241 = vmatpush1.xpose.msra.mxu0 0.0
        %2242 = vmatprep.subr.mxu0 0.0
        %2243 = vmatpush1.xpose.msra.mxu0 0.0
        %2244 = vmatprep.subr.mxu0 0.0
        %2245 = vmatpush1.xpose.msra.mxu0 0.0
        %2246 = vmatprep.subr.mxu0 0.0
        %2247 = vmatpush1.xpose.msra.mxu0 0.0
        %2248 = vmatprep.subr.mxu0 0.0
        %2249 = vmatpush1.xpose.msra.mxu0 0.0
        %2250 = vmatprep.subr.mxu0 0.0
        %2251 = vmatpush1.xpose.msra.mxu0 0.0
        %2252 = vmatprep.subr.mxu0 0.0
        %2253 = vmatpush1.xpose.msra.mxu0 0.0
        %2254 = vmatprep.subr.mxu0 0.0
        %2255 = vmatpush1.xpose.msra.mxu0 0.0
        %2256 = vmatprep.subr.mxu0 0.0
        %2257 = vmatpush1.xpose.msra.mxu0 0.0
        %2258 = vmatprep.subr.mxu0 0.0
        %2259 = vmatpush1.xpose.msra.mxu0 0.0
        %2260 = vmatprep.subr.mxu0 0.0
        %2261 = vmatpush1.xpose.msra.mxu0 0.0
        %2262 = vmatprep.subr.mxu0 0.0
        %2263 = vmatpush1.xpose.msra.mxu0 0.0
        %2264 = vmatprep.subr.mxu0 0.0
        %2265 = vmatpush1.xpose.msra.mxu0 0.0
        %2266 = vmatprep.subr.mxu0 0.0
        %2267 = vmatpush1.xpose.msra.mxu0 0.0
        %2268 = vmatprep.subr.mxu0 0.0
        %2269 = vmatpush1.xpose.msra.mxu0 0.0
        %2270 = vmatprep.subr.mxu0 0.0
        %2271 = vmatpush1.xpose.msra.mxu0 0.0
        %2272 = vmatprep.subr.mxu0 0.0
        %2273 = vmatpush1.xpose.msra.mxu0 0.0
        %2274 = vmatprep.subr.mxu0 0.0
        %2275 = vmatpush1.xpose.msra.mxu0 0.0
        %2276 = vmatprep.subr.mxu0 0.0
        %2277 = vmatpush1.xpose.msra.mxu0 0.0
        %2278 = vmatprep.subr.mxu0 0.0
        %2279 = vmatpush1.xpose.msra.mxu0 0.0
        %2280 = vmatprep.subr.mxu0 0.0
        %2281 = vmatpush1.xpose.msra.mxu0 0.0
        %2282 = vmatprep.subr.mxu0 0.0
        %2283 = vmatpush1.xpose.msra.mxu0 0.0
        %2284 = vmatprep.mubr.f32.mxu0 0.0
        %2285 = vmatmul.mubr.f32.gmra.mrb[0].mxu0 %v2197
        %v2286 = vpop.f32.mrb[0].mxu0
        %v2287 = vadd.f32 0.0, %v2286
        %v2288 = vpop.f32.mrb[0].mxu0
        %2289 = vmatprep.mubr.f32.mxu0 0.0
        %2290 = vmatmul.mubr.f32.gmra.mrb[0].mxu0 %v2200
        %v2291 = vpop.f32.mrb[0].mxu0
        %v2292 = vadd.f32 0.0, %v2291
        %v2293 = vpop.f32.mrb[0].mxu0
        %2294 = vmatprep.mubr.f32.mxu0 0.0
        %2295 = vmatmul.mubr.f32.gmra.mrb[0].mxu0 %v2203
        %v2296 = vpop.f32.mrb[0].mxu0
        %v2297 = vadd.f32 0.0, %v2296
        %v2298 = vpop.f32.mrb[0].mxu0
        %2299 = vmatprep.mubr.f32.mxu0 0.0
        %2300 = vmatmul.mubr.f32.gmra.mrb[0].mxu0 %v2206
        %v2301 = vpop.f32.mrb[0].mxu0
        %v2302 = vadd.f32 0.0, %v2301
        %v2303 = vpop.f32.mrb[0].mxu0
        %2304 = vdwg.mxu0
        %v2306 = vsel %vm1977, %v1279, 0
        %v2309 = vsel %vm1977, %v1284, 0
        %v2312 = vsel %vm1977, %v1289, 0
        %v2315 = vsel %vm1977, %v1294, 0
        %v2318 = vsel %vm1977, %v1619, 0
        %v2321 = vsel %vm1977, %v1624, 0
        %v2324 = vsel %vm1977, %v1629, 0
        %v2327 = vsel %vm1977, %v1634, 0
        %2329 = vmatprep.subr.mxu0 0.0
        %2330 = vmatpush1.xpose.msra.mxu0 %v2318
        %2331 = vmatprep.subr.mxu0 0.0
        %2332 = vmatpush1.xpose.msra.mxu0 %v2321
        %2333 = vmatprep.subr.mxu0 0.0
        %2334 = vmatpush1.xpose.msra.mxu0 %v2324
        %2335 = vmatprep.subr.mxu0 0.0
        %2336 = vmatpush1.xpose.msra.mxu0 %v2327
        %2337 = vmatprep.subr.mxu0 0.0
        %2338 = vmatpush1.xpose.msra.mxu0 0.0
        %2339 = vmatprep.subr.mxu0 0.0
        %2340 = vmatpush1.xpose.msra.mxu0 0.0
        %2341 = vmatprep.subr.mxu0 0.0
        %2342 = vmatpush1.xpose.msra.mxu0 0.0
        %2343 = vmatprep.subr.mxu0 0.0
        %2344 = vmatpush1.xpose.msra.mxu0 0.0
        %2345 = vmatprep.subr.mxu0 0.0
        %2346 = vmatpush1.xpose.msra.mxu0 0.0
        %2347 = vmatprep.subr.mxu0 0.0
        %2348 = vmatpush1.xpose.msra.mxu0 0.0
        %2349 = vmatprep.subr.mxu0 0.0
        %2350 = vmatpush1.xpose.msra.mxu0 0.0
        %2351 = vmatprep.subr.mxu0 0.0
        %2352 = vmatpush1.xpose.msra.mxu0 0.0
        %2353 = vmatprep.subr.mxu0 0.0
        %2354 = vmatpush1.xpose.msra.mxu0 0.0
        %2355 = vmatprep.subr.mxu0 0.0
        %2356 = vmatpush1.xpose.msra.mxu0 0.0
        %2357 = vmatprep.subr.mxu0 0.0
        %2358 = vmatpush1.xpose.msra.mxu0 0.0
        %2359 = vmatprep.subr.mxu0 0.0
        %2360 = vmatpush1.xpose.msra.mxu0 0.0
        %2361 = vmatprep.subr.mxu0 0.0
        %2362 = vmatpush1.xpose.msra.mxu0 0.0
        %2363 = vmatprep.subr.mxu0 0.0
        %2364 = vmatpush1.xpose.msra.mxu0 0.0
        %2365 = vmatprep.subr.mxu0 0.0
        %2366 = vmatpush1.xpose.msra.mxu0 0.0
        %2367 = vmatprep.subr.mxu0 0.0
        %2368 = vmatpush1.xpose.msra.mxu0 0.0
        %2369 = vmatprep.subr.mxu0 0.0
        %2370 = vmatpush1.xpose.msra.mxu0 0.0
        %2371 = vmatprep.subr.mxu0 0.0
        %2372 = vmatpush1.xpose.msra.mxu0 0.0
        %2373 = vmatprep.subr.mxu0 0.0
        %2374 = vmatpush1.xpose.msra.mxu0 0.0
        %2375 = vmatprep.subr.mxu0 0.0
        %2376 = vmatpush1.xpose.msra.mxu0 0.0
        %2377 = vmatprep.subr.mxu0 0.0
        %2378 = vmatpush1.xpose.msra.mxu0 0.0
        %2379 = vmatprep.subr.mxu0 0.0
        %2380 = vmatpush1.xpose.msra.mxu0 0.0
        %2381 = vmatprep.subr.mxu0 0.0
        %2382 = vmatpush1.xpose.msra.mxu0 0.0
        %2383 = vmatprep.subr.mxu0 0.0
        %2384 = vmatpush1.xpose.msra.mxu0 0.0
        %2385 = vmatprep.subr.mxu0 0.0
        %2386 = vmatpush1.xpose.msra.mxu0 0.0
        %2387 = vmatprep.subr.mxu0 0.0
        %2388 = vmatpush1.xpose.msra.mxu0 0.0
        %2389 = vmatprep.subr.mxu0 0.0
        %2390 = vmatpush1.xpose.msra.mxu0 0.0
        %2391 = vmatprep.subr.mxu0 0.0
        %2392 = vmatpush1.xpose.msra.mxu0 0.0
        %2393 = vmatprep.mubr.f32.mxu0 0.0
        %2394 = vmatmul.mubr.f32.gmra.mrb[0].mxu0 %v2306
        %v2395 = vpop.f32.mrb[0].mxu0
        %v2396 = vadd.f32 0.0, %v2395
        %v2397 = vpop.f32.mrb[0].mxu0
        %2398 = vmatprep.mubr.f32.mxu0 0.0
        %2399 = vmatmul.mubr.f32.gmra.mrb[0].mxu0 %v2309
        %v2400 = vpop.f32.mrb[0].mxu0
        %v2401 = vadd.f32 0.0, %v2400
        %v2402 = vpop.f32.mrb[0].mxu0
        %2403 = vmatprep.mubr.f32.mxu0 0.0
        %2404 = vmatmul.mubr.f32.gmra.mrb[0].mxu0 %v2312
        %v2405 = vpop.f32.mrb[0].mxu0
        %v2406 = vadd.f32 0.0, %v2405
        %v2407 = vpop.f32.mrb[0].mxu0
        %2408 = vmatprep.mubr.f32.mxu0 0.0
        %2409 = vmatmul.mubr.f32.gmra.mrb[0].mxu0 %v2315
        %v2410 = vpop.f32.mrb[0].mxu0
        %v2411 = vadd.f32 0.0, %v2410
        %v2412 = vpop.f32.mrb[0].mxu0
        %2413 = vdwg.mxu0
        %v2414 = vsel %vm1977, %v2069, -inf
        %2415 = vmax.xlane.f32.xlu0 %v2414
        %v2416 = vpop.xlane.xlu0 %2415
        %v2417 = vsel %vm1977, %v2074, -inf
        %2418 = vmax.xlane.f32.xlu0 %v2417
        %v2419 = vpop.xlane.xlu0 %2418
        %v2420 = vsel %vm1977, %v2079, -inf
        %2421 = vmax.xlane.f32.xlu0 %v2420
        %v2422 = vpop.xlane.xlu0 %2421
        %v2423 = vsel %vm1977, %v2084, -inf
        %2424 = vmax.xlane.f32.xlu0 %v2423
        %v2425 = vpop.xlane.xlu0 %2424
        %v2426 = vsel %vm1977, %v2178, -inf
        %2427 = vmax.xlane.f32.xlu0 %v2426
        %v2428 = vpop.xlane.xlu0 %2427
        %v2429 = vsel %vm1977, %v2183, -inf
        %2430 = vmax.xlane.f32.xlu0 %v2429
        %v2431 = vpop.xlane.xlu0 %2430
        %v2432 = vsel %vm1977, %v2188, -inf
        %2433 = vmax.xlane.f32.xlu0 %v2432
        %v2434 = vpop.xlane.xlu0 %2433
        %v2435 = vsel %vm1977, %v2193, -inf
        %2436 = vmax.xlane.f32.xlu0 %v2435
        %v2437 = vpop.xlane.xlu0 %2436
        %v2438 = vsel %vm1977, %v2287, -inf
        %2439 = vmax.xlane.f32.xlu0 %v2438
        %v2440 = vpop.xlane.xlu0 %2439
        %v2441 = vsel %vm1977, %v2292, -inf
        %2442 = vmax.xlane.f32.xlu0 %v2441
        %v2443 = vpop.xlane.xlu0 %2442
        %v2444 = vsel %vm1977, %v2297, -inf
        %2445 = vmax.xlane.f32.xlu0 %v2444
        %v2446 = vpop.xlane.xlu0 %2445
        %v2447 = vsel %vm1977, %v2302, -inf
        %2448 = vmax.xlane.f32.xlu0 %v2447
        %v2449 = vpop.xlane.xlu0 %2448
        %v2450 = vsel %vm1977, %v2396, -inf
        %2451 = vmax.xlane.f32.xlu0 %v2450
        %v2452 = vpop.xlane.xlu0 %2451
        %v2453 = vsel %vm1977, %v2401, -inf
        %2454 = vmax.xlane.f32.xlu0 %v2453
        %v2455 = vpop.xlane.xlu0 %2454
        %v2456 = vsel %vm1977, %v2406, -inf
        %2457 = vmax.xlane.f32.xlu0 %v2456
        %v2458 = vpop.xlane.xlu0 %2457
        %v2459 = vsel %vm1977, %v2411, -inf
        %2460 = vmax.xlane.f32.xlu0 %v2459
        %v2461 = vpop.xlane.xlu0 %2460
        %v2462 = vsub.f32 %v2069, %v2416
        %v2463 = vsub.f32 %v2074, %v2419
        %v2464 = vsub.f32 %v2079, %v2422
        %v2465 = vsub.f32 %v2084, %v2425
        %v2466 = vsub.f32 %v2178, %v2428
        %v2467 = vsub.f32 %v2183, %v2431
        %v2468 = vsub.f32 %v2188, %v2434
        %v2469 = vsub.f32 %v2193, %v2437
        %v2470 = vsub.f32 %v2287, %v2440
        %v2471 = vsub.f32 %v2292, %v2443
        %v2472 = vsub.f32 %v2297, %v2446
        %v2473 = vsub.f32 %v2302, %v2449
        %v2474 = vsub.f32 %v2396, %v2452
        %v2475 = vsub.f32 %v2401, %v2455
        %v2476 = vsub.f32 %v2406, %v2458
        %v2477 = vsub.f32 %v2411, %v2461
        %v2478 = vmul.f32 %v2462, 1.442695
        %v2479 = vpow.pop %v2478
        %v2480 = vmul.f32 %v2463, 1.442695
        %v2481 = vpow.pop %v2480
        %v2482 = vmul.f32 %v2464, 1.442695
        %v2483 = vpow.pop %v2482
        %v2484 = vmul.f32 %v2465, 1.442695
        %v2485 = vpow.pop %v2484
        %v2486 = vmul.f32 %v2466, 1.442695
        %v2487 = vpow.pop %v2486
        %v2488 = vmul.f32 %v2467, 1.442695
        %v2489 = vpow.pop %v2488
        %v2490 = vmul.f32 %v2468, 1.442695
        %v2491 = vpow.pop %v2490
        %v2492 = vmul.f32 %v2469, 1.442695
        %v2493 = vpow.pop %v2492
        %v2494 = vmul.f32 %v2470, 1.442695
        %v2495 = vpow.pop %v2494
        %v2496 = vmul.f32 %v2471, 1.442695
        %v2497 = vpow.pop %v2496
        %v2498 = vmul.f32 %v2472, 1.442695
        %v2499 = vpow.pop %v2498
        %v2500 = vmul.f32 %v2473, 1.442695
        %v2501 = vpow.pop %v2500
        %v2502 = vmul.f32 %v2474, 1.442695
        %v2503 = vpow.pop %v2502
        %v2504 = vmul.f32 %v2475, 1.442695
        %v2505 = vpow.pop %v2504
        %v2506 = vmul.f32 %v2476, 1.442695
        %v2507 = vpow.pop %v2506
        %v2508 = vmul.f32 %v2477, 1.442695
        %v2509 = vpow.pop %v2508
        %v2510 = vsel %vm1977, %v2479, 0.0
        %2511 = vadd.xlane.f32.xlu0 %v2510
        %v2512 = vpop.xlane.xlu0 %2511
        %v2513 = vsel %vm1977, %v2481, 0.0
        %2514 = vadd.xlane.f32.xlu0 %v2513
        %v2515 = vpop.xlane.xlu0 %2514
        %v2516 = vsel %vm1977, %v2483, 0.0
        %2517 = vadd.xlane.f32.xlu0 %v2516
        %v2518 = vpop.xlane.xlu0 %2517
        %v2519 = vsel %vm1977, %v2485, 0.0
        %2520 = vadd.xlane.f32.xlu0 %v2519
        %v2521 = vpop.xlane.xlu0 %2520
        %v2522 = vsel %vm1977, %v2487, 0.0
        %2523 = vadd.xlane.f32.xlu0 %v2522
        %v2524 = vpop.xlane.xlu0 %2523
        %v2525 = vsel %vm1977, %v2489, 0.0
        %2526 = vadd.xlane.f32.xlu0 %v2525
        %v2527 = vpop.xlane.xlu0 %2526
        %v2528 = vsel %vm1977, %v2491, 0.0
        %2529 = vadd.xlane.f32.xlu0 %v2528
        %v2530 = vpop.xlane.xlu0 %2529
        %v2531 = vsel %vm1977, %v2493, 0.0
        %2532 = vadd.xlane.f32.xlu0 %v2531
        %v2533 = vpop.xlane.xlu0 %2532
        %v2534 = vsel %vm1977, %v2495, 0.0
        %2535 = vadd.xlane.f32.xlu0 %v2534
        %v2536 = vpop.xlane.xlu0 %2535
        %v2537 = vsel %vm1977, %v2497, 0.0
        %2538 = vadd.xlane.f32.xlu0 %v2537
        %v2539 = vpop.xlane.xlu0 %2538
        %v2540 = vsel %vm1977, %v2499, 0.0
        %2541 = vadd.xlane.f32.xlu0 %v2540
        %v2542 = vpop.xlane.xlu0 %2541
        %v2543 = vsel %vm1977, %v2501, 0.0
        %2544 = vadd.xlane.f32.xlu0 %v2543
        %v2545 = vpop.xlane.xlu0 %2544
        %v2546 = vsel %vm1977, %v2503, 0.0
        %2547 = vadd.xlane.f32.xlu0 %v2546
        %v2548 = vpop.xlane.xlu0 %2547
        %v2549 = vsel %vm1977, %v2505, 0.0
        %2550 = vadd.xlane.f32.xlu0 %v2549
        %v2551 = vpop.xlane.xlu0 %2550
        %v2552 = vsel %vm1977, %v2507, 0.0
        %2553 = vadd.xlane.f32.xlu0 %v2552
        %v2554 = vpop.xlane.xlu0 %2553
        %v2555 = vsel %vm1977, %v2509, 0.0
        %2556 = vadd.xlane.f32.xlu0 %v2555
        %v2557 = vpop.xlane.xlu0 %2556
        %v2558 = vrcp.pop %v2512
        %v2559 = vmul.f32 %v2479, %v2558
        %v2560 = vrcp.pop %v2515
        %v2561 = vmul.f32 %v2481, %v2560
        %v2562 = vrcp.pop %v2518
        %v2563 = vmul.f32 %v2483, %v2562
        %v2564 = vrcp.pop %v2521
        %v2565 = vmul.f32 %v2485, %v2564
        %v2566 = vrcp.pop %v2524
        %v2567 = vmul.f32 %v2487, %v2566
        %v2568 = vrcp.pop %v2527
        %v2569 = vmul.f32 %v2489, %v2568
        %v2570 = vrcp.pop %v2530
        %v2571 = vmul.f32 %v2491, %v2570
        %v2572 = vrcp.pop %v2533
        %v2573 = vmul.f32 %v2493, %v2572
        %v2574 = vrcp.pop %v2536
        %v2575 = vmul.f32 %v2495, %v2574
        %v2576 = vrcp.pop %v2539
        %v2577 = vmul.f32 %v2497, %v2576
        %v2578 = vrcp.pop %v2542
        %v2579 = vmul.f32 %v2499, %v2578
        %v2580 = vrcp.pop %v2545
        %v2581 = vmul.f32 %v2501, %v2580
        %v2582 = vrcp.pop %v2548
        %v2583 = vmul.f32 %v2503, %v2582
        %v2584 = vrcp.pop %v2551
        %v2585 = vmul.f32 %v2505, %v2584
        %v2586 = vrcp.pop %v2554
        %v2587 = vmul.f32 %v2507, %v2586
        %v2588 = vrcp.pop %v2557
        %v2589 = vmul.f32 %v2509, %v2588
        %v2591 = vsel %vm1977, %v2559, 0
        %v2594 = vsel %vm1977, %v2561, 0
        %v2597 = vsel %vm1977, %v2563, 0
        %v2600 = vsel %vm1977, %v2565, 0
        %2602 = vmatprep.subr.mxu0 0.0
        %2603 = vmatpush1.msra.mxu0 %v1704
        %2604 = vmatprep.subr.mxu0 0.0
        %2605 = vmatpush1.msra.mxu0 %v1709
        %2606 = vmatprep.subr.mxu0 0.0
        %2607 = vmatpush1.msra.mxu0 %v1714
        %2608 = vmatprep.subr.mxu0 0.0
        %2609 = vmatpush1.msra.mxu0 %v1719
        %2610 = vmatprep.subr.mxu0 0.0
        %2611 = vmatpush1.msra.mxu0 0.0
        %2612 = vmatprep.subr.mxu0 0.0
        %2613 = vmatpush1.msra.mxu0 0.0
        %2614 = vmatprep.subr.mxu0 0.0
        %2615 = vmatpush1.msra.mxu0 0.0
        %2616 = vmatprep.subr.mxu0 0.0
        %2617 = vmatpush1.msra.mxu0 0.0
        %2618 = vmatprep.subr.mxu0 0.0
        %2619 = vmatpush1.msra.mxu0 0.0
        %2620 = vmatprep.subr.mxu0 0.0
        %2621 = vmatpush1.msra.mxu0 0.0
        %2622 = vmatprep.subr.mxu0 0.0
        %2623 = vmatpush1.msra.mxu0 0.0
        %2624 = vmatprep.subr.mxu0 0.0
        %2625 = vmatpush1.msra.mxu0 0.0
        %2626 = vmatprep.subr.mxu0 0.0
        %2627 = vmatpush1.msra.mxu0 0.0
        %2628 = vmatprep.subr.mxu0 0.0
        %2629 = vmatpush1.msra.mxu0 0.0
        %2630 = vmatprep.subr.mxu0 0.0
        %2631 = vmatpush1.msra.mxu0 0.0
        %2632 = vmatprep.subr.mxu0 0.0
        %2633 = vmatpush1.msra.mxu0 0.0
        %2634 = vmatprep.subr.mxu0 0.0
        %2635 = vmatpush1.msra.mxu0 0.0
        %2636 = vmatprep.subr.mxu0 0.0
        %2637 = vmatpush1.msra.mxu0 0.0
        %2638 = vmatprep.subr.mxu0 0.0
        %2639 = vmatpush1.msra.mxu0 0.0
        %2640 = vmatprep.subr.mxu0 0.0
        %2641 = vmatpush1.msra.mxu0 0.0
        %2642 = vmatprep.subr.mxu0 0.0
        %2643 = vmatpush1.msra.mxu0 0.0
        %2644 = vmatprep.subr.mxu0 0.0
        %2645 = vmatpush1.msra.mxu0 0.0
        %2646 = vmatprep.subr.mxu0 0.0
        %2647 = vmatpush1.msra.mxu0 0.0
        %2648 = vmatprep.subr.mxu0 0.0
        %2649 = vmatpush1.msra.mxu0 0.0
        %2650 = vmatprep.subr.mxu0 0.0
        %2651 = vmatpush1.msra.mxu0 0.0
        %2652 = vmatprep.subr.mxu0 0.0
        %2653 = vmatpush1.msra.mxu0 0.0
        %2654 = vmatprep.subr.mxu0 0.0
        %2655 = vmatpush1.msra.mxu0 0.0
        %2656 = vmatprep.subr.mxu0 0.0
        %2657 = vmatpush1.msra.mxu0 0.0
        %2658 = vmatprep.subr.mxu0 0.0
        %2659 = vmatpush1.msra.mxu0 0.0
        %2660 = vmatprep.subr.mxu0 0.0
        %2661 = vmatpush1.msra.mxu0 0.0
        %2662 = vmatprep.subr.mxu0 0.0
        %2663 = vmatpush1.msra.mxu0 0.0
        %2664 = vmatprep.subr.mxu0 0.0
        %2665 = vmatpush1.msra.mxu0 0.0
        %2666 = vmatprep.mubr.f32.mxu0 0.0
        %2667 = vmatmul.mubr.f32.gmra.mrb[0].mxu0 %v2591
        %v2668 = vpop.f32.mrb[0].mxu0
        %v2669 = vadd.f32 0.0, %v2668
        %v2670 = vpop.f32.mrb[0].mxu0
        %2671 = vmatprep.mubr.f32.mxu0 0.0
        %2672 = vmatmul.mubr.f32.gmra.mrb[0].mxu0 %v2594
        %v2673 = vpop.f32.mrb[0].mxu0
        %v2674 = vadd.f32 0.0, %v2673
        %v2675 = vpop.f32.mrb[0].mxu0
        %2676 = vmatprep.mubr.f32.mxu0 0.0
        %2677 = vmatmul.mubr.f32.gmra.mrb[0].mxu0 %v2597
        %v2678 = vpop.f32.mrb[0].mxu0
        %v2679 = vadd.f32 0.0, %v2678
        %v2680 = vpop.f32.mrb[0].mxu0
        %2681 = vmatprep.mubr.f32.mxu0 0.0
        %2682 = vmatmul.mubr.f32.gmra.mrb[0].mxu0 %v2600
        %v2683 = vpop.f32.mrb[0].mxu0
        %v2684 = vadd.f32 0.0, %v2683
        %v2685 = vpop.f32.mrb[0].mxu0
        %2686 = vdwg.mxu0
        %v2688 = vsel %vm1977, %v2567, 0
        %v2691 = vsel %vm1977, %v2569, 0
        %v2694 = vsel %vm1977, %v2571, 0
        %v2697 = vsel %vm1977, %v2573, 0
        %2699 = vmatprep.subr.mxu0 0.0
        %2700 = vmatpush1.msra.mxu0 %v1789
        %2701 = vmatprep.subr.mxu0 0.0
        %2702 = vmatpush1.msra.mxu0 %v1794
        %2703 = vmatprep.subr.mxu0 0.0
        %2704 = vmatpush1.msra.mxu0 %v1799
        %2705 = vmatprep.subr.mxu0 0.0
        %2706 = vmatpush1.msra.mxu0 %v1804
        %2707 = vmatprep.subr.mxu0 0.0
        %2708 = vmatpush1.msra.mxu0 0.0
        %2709 = vmatprep.subr.mxu0 0.0
        %2710 = vmatpush1.msra.mxu0 0.0
        %2711 = vmatprep.subr.mxu0 0.0
        %2712 = vmatpush1.msra.mxu0 0.0
        %2713 = vmatprep.subr.mxu0 0.0
        %2714 = vmatpush1.msra.mxu0 0.0
        %2715 = vmatprep.subr.mxu0 0.0
        %2716 = vmatpush1.msra.mxu0 0.0
        %2717 = vmatprep.subr.mxu0 0.0
        %2718 = vmatpush1.msra.mxu0 0.0
        %2719 = vmatprep.subr.mxu0 0.0
        %2720 = vmatpush1.msra.mxu0 0.0
        %2721 = vmatprep.subr.mxu0 0.0
        %2722 = vmatpush1.msra.mxu0 0.0
        %2723 = vmatprep.subr.mxu0 0.0
        %2724 = vmatpush1.msra.mxu0 0.0
        %2725 = vmatprep.subr.mxu0 0.0
        %2726 = vmatpush1.msra.mxu0 0.0
        %2727 = vmatprep.subr.mxu0 0.0
        %2728 = vmatpush1.msra.mxu0 0.0
        %2729 = vmatprep.subr.mxu0 0.0
        %2730 = vmatpush1.msra.mxu0 0.0
        %2731 = vmatprep.subr.mxu0 0.0
        %2732 = vmatpush1.msra.mxu0 0.0
        %2733 = vmatprep.subr.mxu0 0.0
        %2734 = vmatpush1.msra.mxu0 0.0
        %2735 = vmatprep.subr.mxu0 0.0
        %2736 = vmatpush1.msra.mxu0 0.0
        %2737 = vmatprep.subr.mxu0 0.0
        %2738 = vmatpush1.msra.mxu0 0.0
        %2739 = vmatprep.subr.mxu0 0.0
        %2740 = vmatpush1.msra.mxu0 0.0
        %2741 = vmatprep.subr.mxu0 0.0
        %2742 = vmatpush1.msra.mxu0 0.0
        %2743 = vmatprep.subr.mxu0 0.0
        %2744 = vmatpush1.msra.mxu0 0.0
        %2745 = vmatprep.subr.mxu0 0.0
        %2746 = vmatpush1.msra.mxu0 0.0
        %2747 = vmatprep.subr.mxu0 0.0
        %2748 = vmatpush1.msra.mxu0 0.0
        %2749 = vmatprep.subr.mxu0 0.0
        %2750 = vmatpush1.msra.mxu0 0.0
        %2751 = vmatprep.subr.mxu0 0.0
        %2752 = vmatpush1.msra.mxu0 0.0
        %2753 = vmatprep.subr.mxu0 0.0
        %2754 = vmatpush1.msra.mxu0 0.0
        %2755 = vmatprep.subr.mxu0 0.0
        %2756 = vmatpush1.msra.mxu0 0.0
        %2757 = vmatprep.subr.mxu0 0.0
        %2758 = vmatpush1.msra.mxu0 0.0
        %2759 = vmatprep.subr.mxu0 0.0
        %2760 = vmatpush1.msra.mxu0 0.0
        %2761 = vmatprep.subr.mxu0 0.0
        %2762 = vmatpush1.msra.mxu0 0.0
        %2763 = vmatprep.mubr.f32.mxu0 0.0
        %2764 = vmatmul.mubr.f32.gmra.mrb[0].mxu0 %v2688
        %v2765 = vpop.f32.mrb[0].mxu0
        %v2766 = vadd.f32 0.0, %v2765
        %v2767 = vpop.f32.mrb[0].mxu0
        %2768 = vmatprep.mubr.f32.mxu0 0.0
        %2769 = vmatmul.mubr.f32.gmra.mrb[0].mxu0 %v2691
        %v2770 = vpop.f32.mrb[0].mxu0
        %v2771 = vadd.f32 0.0, %v2770
        %v2772 = vpop.f32.mrb[0].mxu0
        %2773 = vmatprep.mubr.f32.mxu0 0.0
        %2774 = vmatmul.mubr.f32.gmra.mrb[0].mxu0 %v2694
        %v2775 = vpop.f32.mrb[0].mxu0
        %v2776 = vadd.f32 0.0, %v2775
        %v2777 = vpop.f32.mrb[0].mxu0
        %2778 = vmatprep.mubr.f32.mxu0 0.0
        %2779 = vmatmul.mubr.f32.gmra.mrb[0].mxu0 %v2697
        %v2780 = vpop.f32.mrb[0].mxu0
        %v2781 = vadd.f32 0.0, %v2780
        %v2782 = vpop.f32.mrb[0].mxu0
        %2783 = vdwg.mxu0
        %v2785 = vsel %vm1977, %v2575, 0
        %v2788 = vsel %vm1977, %v2577, 0
        %v2791 = vsel %vm1977, %v2579, 0
        %v2794 = vsel %vm1977, %v2581, 0
        %2796 = vmatprep.subr.mxu0 0.0
        %2797 = vmatpush1.msra.mxu0 %v1874
        %2798 = vmatprep.subr.mxu0 0.0
        %2799 = vmatpush1.msra.mxu0 %v1879
        %2800 = vmatprep.subr.mxu0 0.0
        %2801 = vmatpush1.msra.mxu0 %v1884
        %2802 = vmatprep.subr.mxu0 0.0
        %2803 = vmatpush1.msra.mxu0 %v1889
        %2804 = vmatprep.subr.mxu0 0.0
        %2805 = vmatpush1.msra.mxu0 0.0
        %2806 = vmatprep.subr.mxu0 0.0
        %2807 = vmatpush1.msra.mxu0 0.0
        %2808 = vmatprep.subr.mxu0 0.0
        %2809 = vmatpush1.msra.mxu0 0.0
        %2810 = vmatprep.subr.mxu0 0.0
        %2811 = vmatpush1.msra.mxu0 0.0
        %2812 = vmatprep.subr.mxu0 0.0
        %2813 = vmatpush1.msra.mxu0 0.0
        %2814 = vmatprep.subr.mxu0 0.0
        %2815 = vmatpush1.msra.mxu0 0.0
        %2816 = vmatprep.subr.mxu0 0.0
        %2817 = vmatpush1.msra.mxu0 0.0
        %2818 = vmatprep.subr.mxu0 0.0
        %2819 = vmatpush1.msra.mxu0 0.0
        %2820 = vmatprep.subr.mxu0 0.0
        %2821 = vmatpush1.msra.mxu0 0.0
        %2822 = vmatprep.subr.mxu0 0.0
        %2823 = vmatpush1.msra.mxu0 0.0
        %2824 = vmatprep.subr.mxu0 0.0
        %2825 = vmatpush1.msra.mxu0 0.0
        %2826 = vmatprep.subr.mxu0 0.0
        %2827 = vmatpush1.msra.mxu0 0.0
        %2828 = vmatprep.subr.mxu0 0.0
        %2829 = vmatpush1.msra.mxu0 0.0
        %2830 = vmatprep.subr.mxu0 0.0
        %2831 = vmatpush1.msra.mxu0 0.0
        %2832 = vmatprep.subr.mxu0 0.0
        %2833 = vmatpush1.msra.mxu0 0.0
        %2834 = vmatprep.subr.mxu0 0.0
        %2835 = vmatpush1.msra.mxu0 0.0
        %2836 = vmatprep.subr.mxu0 0.0
        %2837 = vmatpush1.msra.mxu0 0.0
        %2838 = vmatprep.subr.mxu0 0.0
        %2839 = vmatpush1.msra.mxu0 0.0
        %2840 = vmatprep.subr.mxu0 0.0
        %2841 = vmatpush1.msra.mxu0 0.0
        %2842 = vmatprep.subr.mxu0 0.0
        %2843 = vmatpush1.msra.mxu0 0.0
        %2844 = vmatprep.subr.mxu0 0.0
        %2845 = vmatpush1.msra.mxu0 0.0
        %2846 = vmatprep.subr.mxu0 0.0
        %2847 = vmatpush1.msra.mxu0 0.0
        %2848 = vmatprep.subr.mxu0 0.0
        %2849 = vmatpush1.msra.mxu0 0.0
        %2850 = vmatprep.subr.mxu0 0.0
        %2851 = vmatpush1.msra.mxu0 0.0
        %2852 = vmatprep.subr.mxu0 0.0
        %2853 = vmatpush1.msra.mxu0 0.0
        %2854 = vmatprep.subr.mxu0 0.0
        %2855 = vmatpush1.msra.mxu0 0.0
        %2856 = vmatprep.subr.mxu0 0.0
        %2857 = vmatpush1.msra.mxu0 0.0
        %2858 = vmatprep.subr.mxu0 0.0
        %2859 = vmatpush1.msra.mxu0 0.0
        %2860 = vmatprep.mubr.f32.mxu0 0.0
        %2861 = vmatmul.mubr.f32.gmra.mrb[0].mxu0 %v2785
        %v2862 = vpop.f32.mrb[0].mxu0
        %v2863 = vadd.f32 0.0, %v2862
        %v2864 = vpop.f32.mrb[0].mxu0
        %2865 = vmatprep.mubr.f32.mxu0 0.0
        %2866 = vmatmul.mubr.f32.gmra.mrb[0].mxu0 %v2788
        %v2867 = vpop.f32.mrb[0].mxu0
        %v2868 = vadd.f32 0.0, %v2867
        %v2869 = vpop.f32.mrb[0].mxu0
        %2870 = vmatprep.mubr.f32.mxu0 0.0
        %2871 = vmatmul.mubr.f32.gmra.mrb[0].mxu0 %v2791
        %v2872 = vpop.f32.mrb[0].mxu0
        %v2873 = vadd.f32 0.0, %v2872
        %v2874 = vpop.f32.mrb[0].mxu0
        %2875 = vmatprep.mubr.f32.mxu0 0.0
        %2876 = vmatmul.mubr.f32.gmra.mrb[0].mxu0 %v2794
        %v2877 = vpop.f32.mrb[0].mxu0
        %v2878 = vadd.f32 0.0, %v2877
        %v2879 = vpop.f32.mrb[0].mxu0
        %2880 = vdwg.mxu0
        %v2882 = vsel %vm1977, %v2583, 0
        %v2885 = vsel %vm1977, %v2585, 0
        %v2888 = vsel %vm1977, %v2587, 0
        %v2891 = vsel %vm1977, %v2589, 0
        %2893 = vmatprep.subr.mxu0 0.0
        %2894 = vmatpush1.msra.mxu0 %v1959
        %2895 = vmatprep.subr.mxu0 0.0
        %2896 = vmatpush1.msra.mxu0 %v1964
        %2897 = vmatprep.subr.mxu0 0.0
        %2898 = vmatpush1.msra.mxu0 %v1969
        %2899 = vmatprep.subr.mxu0 0.0
        %2900 = vmatpush1.msra.mxu0 %v1974
        %2901 = vmatprep.subr.mxu0 0.0
        %2902 = vmatpush1.msra.mxu0 0.0
        %2903 = vmatprep.subr.mxu0 0.0
        %2904 = vmatpush1.msra.mxu0 0.0
        %2905 = vmatprep.subr.mxu0 0.0
        %2906 = vmatpush1.msra.mxu0 0.0
        %2907 = vmatprep.subr.mxu0 0.0
        %2908 = vmatpush1.msra.mxu0 0.0
        %2909 = vmatprep.subr.mxu0 0.0
        %2910 = vmatpush1.msra.mxu0 0.0
        %2911 = vmatprep.subr.mxu0 0.0
        %2912 = vmatpush1.msra.mxu0 0.0
        %2913 = vmatprep.subr.mxu0 0.0
        %2914 = vmatpush1.msra.mxu0 0.0
        %2915 = vmatprep.subr.mxu0 0.0
        %2916 = vmatpush1.msra.mxu0 0.0
        %2917 = vmatprep.subr.mxu0 0.0
        %2918 = vmatpush1.msra.mxu0 0.0
        %2919 = vmatprep.subr.mxu0 0.0
        %2920 = vmatpush1.msra.mxu0 0.0
        %2921 = vmatprep.subr.mxu0 0.0
        %2922 = vmatpush1.msra.mxu0 0.0
        %2923 = vmatprep.subr.mxu0 0.0
        %2924 = vmatpush1.msra.mxu0 0.0
        %2925 = vmatprep.subr.mxu0 0.0
        %2926 = vmatpush1.msra.mxu0 0.0
        %2927 = vmatprep.subr.mxu0 0.0
        %2928 = vmatpush1.msra.mxu0 0.0
        %2929 = vmatprep.subr.mxu0 0.0
        %2930 = vmatpush1.msra.mxu0 0.0
        %2931 = vmatprep.subr.mxu0 0.0
        %2932 = vmatpush1.msra.mxu0 0.0
        %2933 = vmatprep.subr.mxu0 0.0
        %2934 = vmatpush1.msra.mxu0 0.0
        %2935 = vmatprep.subr.mxu0 0.0
        %2936 = vmatpush1.msra.mxu0 0.0
        %2937 = vmatprep.subr.mxu0 0.0
        %2938 = vmatpush1.msra.mxu0 0.0
        %2939 = vmatprep.subr.mxu0 0.0
        %2940 = vmatpush1.msra.mxu0 0.0
        %2941 = vmatprep.subr.mxu0 0.0
        %2942 = vmatpush1.msra.mxu0 0.0
        %2943 = vmatprep.subr.mxu0 0.0
        %2944 = vmatpush1.msra.mxu0 0.0
        %2945 = vmatprep.subr.mxu0 0.0
        %2946 = vmatpush1.msra.mxu0 0.0
        %2947 = vmatprep.subr.mxu0 0.0
        %2948 = vmatpush1.msra.mxu0 0.0
        %2949 = vmatprep.subr.mxu0 0.0
        %2950 = vmatpush1.msra.mxu0 0.0
        %2951 = vmatprep.subr.mxu0 0.0
        %2952 = vmatpush1.msra.mxu0 0.0
        %2953 = vmatprep.subr.mxu0 0.0
        %2954 = vmatpush1.msra.mxu0 0.0
        %2955 = vmatprep.subr.mxu0 0.0
        %2956 = vmatpush1.msra.mxu0 0.0
        %2957 = vmatprep.mubr.f32.mxu0 0.0
        %2958 = vmatmul.mubr.f32.gmra.mrb[0].mxu0 %v2882
        %v2959 = vpop.f32.mrb[0].mxu0
        %v2960 = vadd.f32 0.0, %v2959
        %v2961 = vpop.f32.mrb[0].mxu0
        %2962 = vmatprep.mubr.f32.mxu0 0.0
        %2963 = vmatmul.mubr.f32.gmra.mrb[0].mxu0 %v2885
        %v2964 = vpop.f32.mrb[0].mxu0
        %v2965 = vadd.f32 0.0, %v2964
        %v2966 = vpop.f32.mrb[0].mxu0
        %2967 = vmatprep.mubr.f32.mxu0 0.0
        %2968 = vmatmul.mubr.f32.gmra.mrb[0].mxu0 %v2888
        %v2969 = vpop.f32.mrb[0].mxu0
        %v2970 = vadd.f32 0.0, %v2969
        %v2971 = vpop.f32.mrb[0].mxu0
        %2972 = vmatprep.mubr.f32.mxu0 0.0
        %2973 = vmatmul.mubr.f32.gmra.mrb[0].mxu0 %v2891
        %v2974 = vpop.f32.mrb[0].mxu0
        %v2975 = vadd.f32 0.0, %v2974
        %v2976 = vpop.f32.mrb[0].mxu0
        %2977 = vdwg.mxu0
        %v2978 = vld [vmem:[%s710] sm:$0xff]
        %v2979 = vld [vmem:[%s710 + $0x8] sm:$0xff]
        %v2980 = vld [vmem:[%s710 + $0x10] sm:$0xff]
        %v2981 = vld [vmem:[%s710 + $0x18] sm:$0xff]
        %v2982 = vld [vmem:[%s710 + $0x20] sm:$0xff]
        %v2983 = vld [vmem:[%s710 + $0x28] sm:$0xff]
        %v2984 = vld [vmem:[%s710 + $0x30] sm:$0xff]
        %v2985 = vld [vmem:[%s710 + $0x38] sm:$0xff]
        %v2986 = vld [vmem:[%s710 + $0x40] sm:$0xff]
        %v2987 = vld [vmem:[%s710 + $0x48] sm:$0xff]
        %v2988 = vld [vmem:[%s710 + $0x50] sm:$0xff]
        %v2989 = vld [vmem:[%s710 + $0x58] sm:$0xff]
        %v2990 = vld [vmem:[%s710 + $0x60] sm:$0xff]
        %v2991 = vld [vmem:[%s710 + $0x68] sm:$0xff]
        %v2992 = vld [vmem:[%s710 + $0x70] sm:$0xff]
        %v2993 = vld [vmem:[%s710 + $0x78] sm:$0xff]
        %v2995 = vsel %vm1977, %v2669, 0
        %v2998 = vsel %vm1977, %v2674, 0
        %v3001 = vsel %vm1977, %v2679, 0
        %v3004 = vsel %vm1977, %v2684, 0
        %3006 = vmatprep.subr.mxu0 0.0
        %3007 = vmatpush1.msra.mxu0 %v2978
        %3008 = vmatprep.subr.mxu0 0.0
        %3009 = vmatpush1.msra.mxu0 %v2979
        %3010 = vmatprep.subr.mxu0 0.0
        %3011 = vmatpush1.msra.mxu0 %v2980
        %3012 = vmatprep.subr.mxu0 0.0
        %3013 = vmatpush1.msra.mxu0 %v2981
        %3014 = vmatprep.subr.mxu0 0.0
        %3015 = vmatpush1.msra.mxu0 0.0
        %3016 = vmatprep.subr.mxu0 0.0
        %3017 = vmatpush1.msra.mxu0 0.0
        %3018 = vmatprep.subr.mxu0 0.0
        %3019 = vmatpush1.msra.mxu0 0.0
        %3020 = vmatprep.subr.mxu0 0.0
        %3021 = vmatpush1.msra.mxu0 0.0
        %3022 = vmatprep.subr.mxu0 0.0
        %3023 = vmatpush1.msra.mxu0 0.0
        %3024 = vmatprep.subr.mxu0 0.0
        %3025 = vmatpush1.msra.mxu0 0.0
        %3026 = vmatprep.subr.mxu0 0.0
        %3027 = vmatpush1.msra.mxu0 0.0
        %3028 = vmatprep.subr.mxu0 0.0
        %3029 = vmatpush1.msra.mxu0 0.0
        %3030 = vmatprep.subr.mxu0 0.0
        %3031 = vmatpush1.msra.mxu0 0.0
        %3032 = vmatprep.subr.mxu0 0.0
        %3033 = vmatpush1.msra.mxu0 0.0
        %3034 = vmatprep.subr.mxu0 0.0
        %3035 = vmatpush1.msra.mxu0 0.0
        %3036 = vmatprep.subr.mxu0 0.0
        %3037 = vmatpush1.msra.mxu0 0.0
        %3038 = vmatprep.subr.mxu0 0.0
        %3039 = vmatpush1.msra.mxu0 0.0
        %3040 = vmatprep.subr.mxu0 0.0
        %3041 = vmatpush1.msra.mxu0 0.0
        %3042 = vmatprep.subr.mxu0 0.0
        %3043 = vmatpush1.msra.mxu0 0.0
        %3044 = vmatprep.subr.mxu0 0.0
        %3045 = vmatpush1.msra.mxu0 0.0
        %3046 = vmatprep.subr.mxu0 0.0
        %3047 = vmatpush1.msra.mxu0 0.0
        %3048 = vmatprep.subr.mxu0 0.0
        %3049 = vmatpush1.msra.mxu0 0.0
        %3050 = vmatprep.subr.mxu0 0.0
        %3051 = vmatpush1.msra.mxu0 0.0
        %3052 = vmatprep.subr.mxu0 0.0
        %3053 = vmatpush1.msra.mxu0 0.0
        %3054 = vmatprep.subr.mxu0 0.0
        %3055 = vmatpush1.msra.mxu0 0.0
        %3056 = vmatprep.subr.mxu0 0.0
        %3057 = vmatpush1.msra.mxu0 0.0
        %3058 = vmatprep.subr.mxu0 0.0
        %3059 = vmatpush1.msra.mxu0 0.0
        %3060 = vmatprep.subr.mxu0 0.0
        %3061 = vmatpush1.msra.mxu0 0.0
        %3062 = vmatprep.subr.mxu0 0.0
        %3063 = vmatpush1.msra.mxu0 0.0
        %3064 = vmatprep.subr.mxu0 0.0
        %3065 = vmatpush1.msra.mxu0 0.0
        %3066 = vmatprep.subr.mxu0 0.0
        %3067 = vmatpush1.msra.mxu0 0.0
        %3068 = vmatprep.subr.mxu0 0.0
        %3069 = vmatpush1.msra.mxu0 0.0
        %3070 = vmatprep.mubr.f32.mxu0 0.0
        %3071 = vmatmul.mubr.f32.gmra.mrb[0].mxu0 %v2995
        %v3072 = vpop.f32.mrb[0].mxu0
        %v3073 = vadd.f32 0.0, %v3072
        %v3074 = vpop.f32.mrb[0].mxu0
        %3075 = vmatprep.mubr.f32.mxu0 0.0
        %3076 = vmatmul.mubr.f32.gmra.mrb[0].mxu0 %v2998
        %v3077 = vpop.f32.mrb[0].mxu0
        %v3078 = vadd.f32 0.0, %v3077
        %v3079 = vpop.f32.mrb[0].mxu0
        %3080 = vmatprep.mubr.f32.mxu0 0.0
        %3081 = vmatmul.mubr.f32.gmra.mrb[0].mxu0 %v3001
        %v3082 = vpop.f32.mrb[0].mxu0
        %v3083 = vadd.f32 0.0, %v3082
        %v3084 = vpop.f32.mrb[0].mxu0
        %3085 = vmatprep.mubr.f32.mxu0 0.0
        %3086 = vmatmul.mubr.f32.gmra.mrb[0].mxu0 %v3004
        %v3087 = vpop.f32.mrb[0].mxu0
        %v3088 = vadd.f32 0.0, %v3087
        %v3089 = vpop.f32.mrb[0].mxu0
        %3090 = vdwg.mxu0
        %v3092 = vsel %vm1977, %v2766, 0
        %v3095 = vsel %vm1977, %v2771, 0
        %v3098 = vsel %vm1977, %v2776, 0
        %v3101 = vsel %vm1977, %v2781, 0
        %3103 = vmatprep.subr.mxu0 0.0
        %3104 = vmatpush1.msra.mxu0 %v2982
        %3105 = vmatprep.subr.mxu0 0.0
        %3106 = vmatpush1.msra.mxu0 %v2983
        %3107 = vmatprep.subr.mxu0 0.0
        %3108 = vmatpush1.msra.mxu0 %v2984
        %3109 = vmatprep.subr.mxu0 0.0
        %3110 = vmatpush1.msra.mxu0 %v2985
        %3111 = vmatprep.subr.mxu0 0.0
        %3112 = vmatpush1.msra.mxu0 0.0
        %3113 = vmatprep.subr.mxu0 0.0
        %3114 = vmatpush1.msra.mxu0 0.0
        %3115 = vmatprep.subr.mxu0 0.0
        %3116 = vmatpush1.msra.mxu0 0.0
        %3117 = vmatprep.subr.mxu0 0.0
        %3118 = vmatpush1.msra.mxu0 0.0
        %3119 = vmatprep.subr.mxu0 0.0
        %3120 = vmatpush1.msra.mxu0 0.0
        %3121 = vmatprep.subr.mxu0 0.0
        %3122 = vmatpush1.msra.mxu0 0.0
        %3123 = vmatprep.subr.mxu0 0.0
        %3124 = vmatpush1.msra.mxu0 0.0
        %3125 = vmatprep.subr.mxu0 0.0
        %3126 = vmatpush1.msra.mxu0 0.0
        %3127 = vmatprep.subr.mxu0 0.0
        %3128 = vmatpush1.msra.mxu0 0.0
        %3129 = vmatprep.subr.mxu0 0.0
        %3130 = vmatpush1.msra.mxu0 0.0
        %3131 = vmatprep.subr.mxu0 0.0
        %3132 = vmatpush1.msra.mxu0 0.0
        %3133 = vmatprep.subr.mxu0 0.0
        %3134 = vmatpush1.msra.mxu0 0.0
        %3135 = vmatprep.subr.mxu0 0.0
        %3136 = vmatpush1.msra.mxu0 0.0
        %3137 = vmatprep.subr.mxu0 0.0
        %3138 = vmatpush1.msra.mxu0 0.0
        %3139 = vmatprep.subr.mxu0 0.0
        %3140 = vmatpush1.msra.mxu0 0.0
        %3141 = vmatprep.subr.mxu0 0.0
        %3142 = vmatpush1.msra.mxu0 0.0
        %3143 = vmatprep.subr.mxu0 0.0
        %3144 = vmatpush1.msra.mxu0 0.0
        %3145 = vmatprep.subr.mxu0 0.0
        %3146 = vmatpush1.msra.mxu0 0.0
        %3147 = vmatprep.subr.mxu0 0.0
        %3148 = vmatpush1.msra.mxu0 0.0
        %3149 = vmatprep.subr.mxu0 0.0
        %3150 = vmatpush1.msra.mxu0 0.0
        %3151 = vmatprep.subr.mxu0 0.0
        %3152 = vmatpush1.msra.mxu0 0.0
        %3153 = vmatprep.subr.mxu0 0.0
        %3154 = vmatpush1.msra.mxu0 0.0
        %3155 = vmatprep.subr.mxu0 0.0
        %3156 = vmatpush1.msra.mxu0 0.0
        %3157 = vmatprep.subr.mxu0 0.0
        %3158 = vmatpush1.msra.mxu0 0.0
        %3159 = vmatprep.subr.mxu0 0.0
        %3160 = vmatpush1.msra.mxu0 0.0
        %3161 = vmatprep.subr.mxu0 0.0
        %3162 = vmatpush1.msra.mxu0 0.0
        %3163 = vmatprep.subr.mxu0 0.0
        %3164 = vmatpush1.msra.mxu0 0.0
        %3165 = vmatprep.subr.mxu0 0.0
        %3166 = vmatpush1.msra.mxu0 0.0
        %3167 = vmatprep.mubr.f32.mxu0 0.0
        %3168 = vmatmul.mubr.f32.gmra.mrb[0].mxu0 %v3092
        %v3169 = vpop.f32.mrb[0].mxu0
        %v3170 = vadd.f32 0.0, %v3169
        %v3171 = vpop.f32.mrb[0].mxu0
        %3172 = vmatprep.mubr.f32.mxu0 0.0
        %3173 = vmatmul.mubr.f32.gmra.mrb[0].mxu0 %v3095
        %v3174 = vpop.f32.mrb[0].mxu0
        %v3175 = vadd.f32 0.0, %v3174
        %v3176 = vpop.f32.mrb[0].mxu0
        %3177 = vmatprep.mubr.f32.mxu0 0.0
        %3178 = vmatmul.mubr.f32.gmra.mrb[0].mxu0 %v3098
        %v3179 = vpop.f32.mrb[0].mxu0
        %v3180 = vadd.f32 0.0, %v3179
        %v3181 = vpop.f32.mrb[0].mxu0
        %3182 = vmatprep.mubr.f32.mxu0 0.0
        %3183 = vmatmul.mubr.f32.gmra.mrb[0].mxu0 %v3101
        %v3184 = vpop.f32.mrb[0].mxu0
        %v3185 = vadd.f32 0.0, %v3184
        %v3186 = vpop.f32.mrb[0].mxu0
        %3187 = vdwg.mxu0
        %v3189 = vsel %vm1977, %v2863, 0
        %v3192 = vsel %vm1977, %v2868, 0
        %v3195 = vsel %vm1977, %v2873, 0
        %v3198 = vsel %vm1977, %v2878, 0
        %3200 = vmatprep.subr.mxu0 0.0
        %3201 = vmatpush1.msra.mxu0 %v2986
        %3202 = vmatprep.subr.mxu0 0.0
        %3203 = vmatpush1.msra.mxu0 %v2987
        %3204 = vmatprep.subr.mxu0 0.0
        %3205 = vmatpush1.msra.mxu0 %v2988
        %3206 = vmatprep.subr.mxu0 0.0
        %3207 = vmatpush1.msra.mxu0 %v2989
        %3208 = vmatprep.subr.mxu0 0.0
        %3209 = vmatpush1.msra.mxu0 0.0
        %3210 = vmatprep.subr.mxu0 0.0
        %3211 = vmatpush1.msra.mxu0 0.0
        %3212 = vmatprep.subr.mxu0 0.0
        %3213 = vmatpush1.msra.mxu0 0.0
        %3214 = vmatprep.subr.mxu0 0.0
        %3215 = vmatpush1.msra.mxu0 0.0
        %3216 = vmatprep.subr.mxu0 0.0
        %3217 = vmatpush1.msra.mxu0 0.0
        %3218 = vmatprep.subr.mxu0 0.0
        %3219 = vmatpush1.msra.mxu0 0.0
        %3220 = vmatprep.subr.mxu0 0.0
        %3221 = vmatpush1.msra.mxu0 0.0
        %3222 = vmatprep.subr.mxu0 0.0
        %3223 = vmatpush1.msra.mxu0 0.0
        %3224 = vmatprep.subr.mxu0 0.0
        %3225 = vmatpush1.msra.mxu0 0.0
        %3226 = vmatprep.subr.mxu0 0.0
        %3227 = vmatpush1.msra.mxu0 0.0
        %3228 = vmatprep.subr.mxu0 0.0
        %3229 = vmatpush1.msra.mxu0 0.0
        %3230 = vmatprep.subr.mxu0 0.0
        %3231 = vmatpush1.msra.mxu0 0.0
        %3232 = vmatprep.subr.mxu0 0.0
        %3233 = vmatpush1.msra.mxu0 0.0
        %3234 = vmatprep.subr.mxu0 0.0
        %3235 = vmatpush1.msra.mxu0 0.0
        %3236 = vmatprep.subr.mxu0 0.0
        %3237 = vmatpush1.msra.mxu0 0.0
        %3238 = vmatprep.subr.mxu0 0.0
        %3239 = vmatpush1.msra.mxu0 0.0
        %3240 = vmatprep.subr.mxu0 0.0
        %3241 = vmatpush1.msra.mxu0 0.0
        %3242 = vmatprep.subr.mxu0 0.0
        %3243 = vmatpush1.msra.mxu0 0.0
        %3244 = vmatprep.subr.mxu0 0.0
        %3245 = vmatpush1.msra.mxu0 0.0
        %3246 = vmatprep.subr.mxu0 0.0
        %3247 = vmatpush1.msra.mxu0 0.0
        %3248 = vmatprep.subr.mxu0 0.0
        %3249 = vmatpush1.msra.mxu0 0.0
        %3250 = vmatprep.subr.mxu0 0.0
        %3251 = vmatpush1.msra.mxu0 0.0
        %3252 = vmatprep.subr.mxu0 0.0
        %3253 = vmatpush1.msra.mxu0 0.0
        %3254 = vmatprep.subr.mxu0 0.0
        %3255 = vmatpush1.msra.mxu0 0.0
        %3256 = vmatprep.subr.mxu0 0.0
        %3257 = vmatpush1.msra.mxu0 0.0
        %3258 = vmatprep.subr.mxu0 0.0
        %3259 = vmatpush1.msra.mxu0 0.0
        %3260 = vmatprep.subr.mxu0 0.0
        %3261 = vmatpush1.msra.mxu0 0.0
        %3262 = vmatprep.subr.mxu0 0.0
        %3263 = vmatpush1.msra.mxu0 0.0
        %3264 = vmatprep.mubr.f32.mxu0 0.0
        %3265 = vmatmul.mubr.f32.gmra.mrb[0].mxu0 %v3189
        %v3266 = vpop.f32.mrb[0].mxu0
        %v3267 = vadd.f32 0.0, %v3266
        %v3268 = vpop.f32.mrb[0].mxu0
        %3269 = vmatprep.mubr.f32.mxu0 0.0
        %3270 = vmatmul.mubr.f32.gmra.mrb[0].mxu0 %v3192
        %v3271 = vpop.f32.mrb[0].mxu0
        %v3272 = vadd.f32 0.0, %v3271
        %v3273 = vpop.f32.mrb[0].mxu0
        %3274 = vmatprep.mubr.f32.mxu0 0.0
        %3275 = vmatmul.mubr.f32.gmra.mrb[0].mxu0 %v3195
        %v3276 = vpop.f32.mrb[0].mxu0
        %v3277 = vadd.f32 0.0, %v3276
        %v3278 = vpop.f32.mrb[0].mxu0
        %3279 = vmatprep.mubr.f32.mxu0 0.0
        %3280 = vmatmul.mubr.f32.gmra.mrb[0].mxu0 %v3198
        %v3281 = vpop.f32.mrb[0].mxu0
        %v3282 = vadd.f32 0.0, %v3281
        %v3283 = vpop.f32.mrb[0].mxu0
        %3284 = vdwg.mxu0
        %v3286 = vsel %vm1977, %v2960, 0
        %v3289 = vsel %vm1977, %v2965, 0
        %v3292 = vsel %vm1977, %v2970, 0
        %v3295 = vsel %vm1977, %v2975, 0
        %3297 = vmatprep.subr.mxu0 0.0
        %3298 = vmatpush1.msra.mxu0 %v2990
        %3299 = vmatprep.subr.mxu0 0.0
        %3300 = vmatpush1.msra.mxu0 %v2991
        %3301 = vmatprep.subr.mxu0 0.0
        %3302 = vmatpush1.msra.mxu0 %v2992
        %3303 = vmatprep.subr.mxu0 0.0
        %3304 = vmatpush1.msra.mxu0 %v2993
        %3305 = vmatprep.subr.mxu0 0.0
        %3306 = vmatpush1.msra.mxu0 0.0
        %3307 = vmatprep.subr.mxu0 0.0
        %3308 = vmatpush1.msra.mxu0 0.0
        %3309 = vmatprep.subr.mxu0 0.0
        %3310 = vmatpush1.msra.mxu0 0.0
        %3311 = vmatprep.subr.mxu0 0.0
        %3312 = vmatpush1.msra.mxu0 0.0
        %3313 = vmatprep.subr.mxu0 0.0
        %3314 = vmatpush1.msra.mxu0 0.0
        %3315 = vmatprep.subr.mxu0 0.0
        %3316 = vmatpush1.msra.mxu0 0.0
        %3317 = vmatprep.subr.mxu0 0.0
        %3318 = vmatpush1.msra.mxu0 0.0
        %3319 = vmatprep.subr.mxu0 0.0
        %3320 = vmatpush1.msra.mxu0 0.0
        %3321 = vmatprep.subr.mxu0 0.0
        %3322 = vmatpush1.msra.mxu0 0.0
        %3323 = vmatprep.subr.mxu0 0.0
        %3324 = vmatpush1.msra.mxu0 0.0
        %3325 = vmatprep.subr.mxu0 0.0
        %3326 = vmatpush1.msra.mxu0 0.0
        %3327 = vmatprep.subr.mxu0 0.0
        %3328 = vmatpush1.msra.mxu0 0.0
        %3329 = vmatprep.subr.mxu0 0.0
        %3330 = vmatpush1.msra.mxu0 0.0
        %3331 = vmatprep.subr.mxu0 0.0
        %3332 = vmatpush1.msra.mxu0 0.0
        %3333 = vmatprep.subr.mxu0 0.0
        %3334 = vmatpush1.msra.mxu0 0.0
        %3335 = vmatprep.subr.mxu0 0.0
        %3336 = vmatpush1.msra.mxu0 0.0
        %3337 = vmatprep.subr.mxu0 0.0
        %3338 = vmatpush1.msra.mxu0 0.0
        %3339 = vmatprep.subr.mxu0 0.0
        %3340 = vmatpush1.msra.mxu0 0.0
        %3341 = vmatprep.subr.mxu0 0.0
        %3342 = vmatpush1.msra.mxu0 0.0
        %3343 = vmatprep.subr.mxu0 0.0
        %3344 = vmatpush1.msra.mxu0 0.0
        %3345 = vmatprep.subr.mxu0 0.0
        %3346 = vmatpush1.msra.mxu0 0.0
        %3347 = vmatprep.subr.mxu0 0.0
        %3348 = vmatpush1.msra.mxu0 0.0
        %3349 = vmatprep.subr.mxu0 0.0
        %3350 = vmatpush1.msra.mxu0 0.0
        %3351 = vmatprep.subr.mxu0 0.0
        %3352 = vmatpush1.msra.mxu0 0.0
        %3353 = vmatprep.subr.mxu0 0.0
        %3354 = vmatpush1.msra.mxu0 0.0
        %3355 = vmatprep.subr.mxu0 0.0
        %3356 = vmatpush1.msra.mxu0 0.0
        %3357 = vmatprep.subr.mxu0 0.0
        %3358 = vmatpush1.msra.mxu0 0.0
        %3359 = vmatprep.subr.mxu0 0.0
        %3360 = vmatpush1.msra.mxu0 0.0
        %3361 = vmatprep.mubr.f32.mxu0 0.0
        %3362 = vmatmul.mubr.f32.gmra.mrb[0].mxu0 %v3286
        %v3363 = vpop.f32.mrb[0].mxu0
        %v3364 = vadd.f32 0.0, %v3363
        %v3365 = vpop.f32.mrb[0].mxu0
        %3366 = vmatprep.mubr.f32.mxu0 0.0
        %3367 = vmatmul.mubr.f32.gmra.mrb[0].mxu0 %v3289
        %v3368 = vpop.f32.mrb[0].mxu0
        %v3369 = vadd.f32 0.0, %v3368
        %v3370 = vpop.f32.mrb[0].mxu0
        %3371 = vmatprep.mubr.f32.mxu0 0.0
        %3372 = vmatmul.mubr.f32.gmra.mrb[0].mxu0 %v3292
        %v3373 = vpop.f32.mrb[0].mxu0
        %v3374 = vadd.f32 0.0, %v3373
        %v3375 = vpop.f32.mrb[0].mxu0
        %3376 = vmatprep.mubr.f32.mxu0 0.0
        %3377 = vmatmul.mubr.f32.gmra.mrb[0].mxu0 %v3295
        %v3378 = vpop.f32.mrb[0].mxu0
        %v3379 = vadd.f32 0.0, %v3378
        %v3380 = vpop.f32.mrb[0].mxu0
        %3381 = vdwg.mxu0
        %v3382 = vadd.f32 %v3073, %v3170
        %v3383 = vadd.f32 %v3382, %v3267
        %v3384 = vadd.f32 %v3383, %v3364
        %v3385 = vadd.f32 %v3078, %v3175
        %v3386 = vadd.f32 %v3385, %v3272
        %v3387 = vadd.f32 %v3386, %v3369
        %v3388 = vadd.f32 %v3083, %v3180
        %v3389 = vadd.f32 %v3388, %v3277
        %v3390 = vadd.f32 %v3389, %v3374
        %v3391 = vadd.f32 %v3088, %v3185
        %v3392 = vadd.f32 %v3391, %v3282
        %v3393 = vadd.f32 %v3392, %v3379
        %v3394 = vmax.f32 %v3384, 0.0
        %v3395 = vmax.f32 %v3387, 0.0
        %v3396 = vmax.f32 %v3390, 0.0
        %v3397 = vmax.f32 %v3393, 0.0
        %v3398 = vadd.f32 %v3394, %v761
        %v3399 = vadd.f32 %v3395, %v762
        %v3400 = vadd.f32 %v3396, %v763
        %v3401 = vadd.f32 %v3397, %v764
        %v3402 = vld [vmem:[%s713] sm:$0x1]
        %v3403 = vld [vmem:[%s716] sm:$0x1]
        %3404 = vadd.xlane.f32.xlu0 %v3398
        %v3405 = vpop.xlane.xlu0 %3404
        %3406 = vadd.xlane.f32.xlu0 %v3399
        %v3407 = vpop.xlane.xlu0 %3406
        %3408 = vadd.xlane.f32.xlu0 %v3400
        %v3409 = vpop.xlane.xlu0 %3408
        %3410 = vadd.xlane.f32.xlu0 %v3401
        %v3411 = vpop.xlane.xlu0 %3410
        %v3412 = vrcp.pop 128.0
        %v3413 = vmul.f32 %v3405, %v3412
        %v3414 = vmul.f32 %v3407, %v3412
        %v3415 = vmul.f32 %v3409, %v3412
        %v3416 = vmul.f32 %v3411, %v3412
        %v3417 = vsub.f32 %v3398, %v3413
        %v3418 = vsub.f32 %v3399, %v3414
        %v3419 = vsub.f32 %v3400, %v3415
        %v3420 = vsub.f32 %v3401, %v3416
        %v3421 = vmul.f32 %v3417, %v3417
        %v3422 = vmul.f32 %v3418, %v3418
        %v3423 = vmul.f32 %v3419, %v3419
        %v3424 = vmul.f32 %v3420, %v3420
        %3425 = vadd.xlane.f32.xlu0 %v3421
        %v3426 = vpop.xlane.xlu0 %3425
        %3427 = vadd.xlane.f32.xlu0 %v3422
        %v3428 = vpop.xlane.xlu0 %3427
        %3429 = vadd.xlane.f32.xlu0 %v3423
        %v3430 = vpop.xlane.xlu0 %3429
        %3431 = vadd.xlane.f32.xlu0 %v3424
        %v3432 = vpop.xlane.xlu0 %3431
        %v3433 = vmul.f32 %v3426, %v3412
        %v3434 = vmul.f32 %v3428, %v3412
        %v3435 = vmul.f32 %v3430, %v3412
        %v3436 = vmul.f32 %v3432, %v3412
        %v3437 = vadd.f32 %v3433, 1e-06
        %v3438 = vadd.f32 %v3434, 1e-06
        %v3439 = vadd.f32 %v3435, 1e-06
        %v3440 = vadd.f32 %v3436, 1e-06
        %v3441 = vrsqrt.pop %v3437
        %v3442 = vrsqrt.pop %v3438
        %v3443 = vrsqrt.pop %v3439
        %v3444 = vrsqrt.pop %v3440
        %v3445 = vmul.f32 %v3417, %v3441
        %v3446 = vmul.f32 %v3418, %v3442
        %v3447 = vmul.f32 %v3419, %v3443
        %v3448 = vmul.f32 %v3420, %v3444
        %v3450 = vlaneseq
        %v3451 = vshrl.u32 %v3450, 7
        %v3452 = vsub.s32 0, %v3451
        %v3453 = vrot.slane %v3402, %v3452
        %v3455 = vmul.f32 %v3445, %v3453
        %v3456 = vmul.f32 %v3446, %v3453
        %v3457 = vmul.f32 %v3447, %v3453
        %v3458 = vmul.f32 %v3448, %v3453
        %v3460 = vlaneseq
        %v3461 = vshrl.u32 %v3460, 7
        %v3462 = vsub.s32 0, %v3461
        %v3463 = vrot.slane %v3403, %v3462
        %v3465 = vadd.f32 %v3455, %v3463
        %v3466 = vadd.f32 %v3456, %v3463
        %v3467 = vadd.f32 %v3457, %v3463
        %v3468 = vadd.f32 %v3458, %v3463
        %v3469 = vld [vmem:[%s721] sm:$0xff]
        %v3470 = vld [vmem:[%s721 + $0x8] sm:$0xff]
        %v3471 = vld [vmem:[%s721 + $0x10] sm:$0xff]
        %v3472 = vld [vmem:[%s721 + $0x18] sm:$0xff]
        %v3473 = vld [vmem:[%s721 + $0x20] sm:$0xff]
        %v3474 = vld [vmem:[%s721 + $0x28] sm:$0xff]
        %v3475 = vld [vmem:[%s721 + $0x30] sm:$0xff]
        %v3476 = vld [vmem:[%s721 + $0x38] sm:$0xff]
        %v3477 = vld [vmem:[%s721 + $0x40] sm:$0xff]
        %v3478 = vld [vmem:[%s721 + $0x48] sm:$0xff]
        %v3479 = vld [vmem:[%s721 + $0x50] sm:$0xff]
        %v3480 = vld [vmem:[%s721 + $0x58] sm:$0xff]
        %v3481 = vld [vmem:[%s721 + $0x60] sm:$0xff]
        %v3482 = vld [vmem:[%s721 + $0x68] sm:$0xff]
        %v3483 = vld [vmem:[%s721 + $0x70] sm:$0xff]
        %v3484 = vld [vmem:[%s721 + $0x78] sm:$0xff]
        %v3485 = vld [vmem:[%s724] sm:$0x1]
        %v3487 = vlaneseq
        %v3488 = vshrl.u32 %v3487, 7
        %v3489 = vsub.s32 0, %v3488
        %v3490 = vrot.slane %v3485, %v3489
        %3492 = vmatprep.subr.mxu0 0.0
        %3493 = vmatpush1.msra.mxu0 %v3469
        %3494 = vmatprep.subr.mxu0 0.0
        %3495 = vmatpush1.msra.mxu0 %v3470
        %3496 = vmatprep.subr.mxu0 0.0
        %3497 = vmatpush1.msra.mxu0 %v3471
        %3498 = vmatprep.subr.mxu0 0.0
        %3499 = vmatpush1.msra.mxu0 %v3472
        %3500 = vmatprep.subr.mxu0 0.0
        %3501 = vmatpush1.msra.mxu0 %v3473
        %3502 = vmatprep.subr.mxu0 0.0
        %3503 = vmatpush1.msra.mxu0 %v3474
        %3504 = vmatprep.subr.mxu0 0.0
        %3505 = vmatpush1.msra.mxu0 %v3475
        %3506 = vmatprep.subr.mxu0 0.0
        %3507 = vmatpush1.msra.mxu0 %v3476
        %3508 = vmatprep.subr.mxu0 0.0
        %3509 = vmatpush1.msra.mxu0 %v3477
        %3510 = vmatprep.subr.mxu0 0.0
        %3511 = vmatpush1.msra.mxu0 %v3478
        %3512 = vmatprep.subr.mxu0 0.0
        %3513 = vmatpush1.msra.mxu0 %v3479
        %3514 = vmatprep.subr.mxu0 0.0
        %3515 = vmatpush1.msra.mxu0 %v3480
        %3516 = vmatprep.subr.mxu0 0.0
        %3517 = vmatpush1.msra.mxu0 %v3481
        %3518 = vmatprep.subr.mxu0 0.0
        %3519 = vmatpush1.msra.mxu0 %v3482
        %3520 = vmatprep.subr.mxu0 0.0
        %3521 = vmatpush1.msra.mxu0 %v3483
        %3522 = vmatprep.subr.mxu0 0.0
        %3523 = vmatpush1.msra.mxu0 %v3484
        %3524 = vmatprep.subr.mxu0 0.0
        %3525 = vmatpush1.msra.mxu0 0.0
        %3526 = vmatprep.subr.mxu0 0.0
        %3527 = vmatpush1.msra.mxu0 0.0
        %3528 = vmatprep.subr.mxu0 0.0
        %3529 = vmatpush1.msra.mxu0 0.0
        %3530 = vmatprep.subr.mxu0 0.0
        %3531 = vmatpush1.msra.mxu0 0.0
        %3532 = vmatprep.subr.mxu0 0.0
        %3533 = vmatpush1.msra.mxu0 0.0
        %3534 = vmatprep.subr.mxu0 0.0
        %3535 = vmatpush1.msra.mxu0 0.0
        %3536 = vmatprep.subr.mxu0 0.0
        %3537 = vmatpush1.msra.mxu0 0.0
        %3538 = vmatprep.subr.mxu0 0.0
        %3539 = vmatpush1.msra.mxu0 0.0
        %3540 = vmatprep.subr.mxu0 0.0
        %3541 = vmatpush1.msra.mxu0 0.0
        %3542 = vmatprep.subr.mxu0 0.0
        %3543 = vmatpush1.msra.mxu0 0.0
        %3544 = vmatprep.subr.mxu0 0.0
        %3545 = vmatpush1.msra.mxu0 0.0
        %3546 = vmatprep.subr.mxu0 0.0
        %3547 = vmatpush1.msra.mxu0 0.0
        %3548 = vmatprep.subr.mxu0 0.0
        %3549 = vmatpush1.msra.mxu0 0.0
        %3550 = vmatprep.subr.mxu0 0.0
        %3551 = vmatpush1.msra.mxu0 0.0
        %3552 = vmatprep.subr.mxu0 0.0
        %3553 = vmatpush1.msra.mxu0 0.0
        %3554 = vmatprep.subr.mxu0 0.0
        %3555 = vmatpush1.msra.mxu0 0.0
        %3556 = vmatprep.mubr.f32.mxu0 0.0
        %3557 = vmatmul.mubr.f32.gmra.mrb[0].mxu0 %v3465
        %v3558 = vpop.f32.mrb[0].mxu0
        %v3559 = vadd.f32 %v3490, %v3558
        %v3560 = vpop.f32.mrb[0].mxu0
        %3561 = vmatprep.mubr.f32.mxu0 0.0
        %3562 = vmatmul.mubr.f32.gmra.mrb[0].mxu0 %v3466
        %v3563 = vpop.f32.mrb[0].mxu0
        %v3564 = vadd.f32 %v3490, %v3563
        %v3565 = vpop.f32.mrb[0].mxu0
        %3566 = vmatprep.mubr.f32.mxu0 0.0
        %3567 = vmatmul.mubr.f32.gmra.mrb[0].mxu0 %v3467
        %v3568 = vpop.f32.mrb[0].mxu0
        %v3569 = vadd.f32 %v3490, %v3568
        %v3570 = vpop.f32.mrb[0].mxu0
        %3571 = vmatprep.mubr.f32.mxu0 0.0
        %3572 = vmatmul.mubr.f32.gmra.mrb[0].mxu0 %v3468
        %v3573 = vpop.f32.mrb[0].mxu0
        %v3574 = vadd.f32 %v3490, %v3573
        %v3575 = vpop.f32.mrb[0].mxu0
        %3576 = vdwg.mxu0
        %v3577 = vld [vmem:[%s729] sm:$0xff]
        %v3578 = vld [vmem:[%s729 + $0x8] sm:$0xff]
        %v3579 = vld [vmem:[%s729 + $0x10] sm:$0xff]
        %v3580 = vld [vmem:[%s729 + $0x18] sm:$0xff]
        %v3581 = vld [vmem:[%s734] sm:$0xff]
        %v3582 = vld [vmem:[%s734 + $0x8] sm:$0xff]
        %v3583 = vld [vmem:[%s734 + $0x10] sm:$0xff]
        %v3584 = vld [vmem:[%s734 + $0x18] sm:$0xff]
        %3585 = vadd.xlane.f32.xlu0 %v3559
        %v3586 = vpop.xlane.xlu0 %3585
        %3587 = vadd.xlane.f32.xlu0 %v3564
        %v3588 = vpop.xlane.xlu0 %3587
        %3589 = vadd.xlane.f32.xlu0 %v3569
        %v3590 = vpop.xlane.xlu0 %3589
        %3591 = vadd.xlane.f32.xlu0 %v3574
        %v3592 = vpop.xlane.xlu0 %3591
        %v3593 = vmul.f32 %v3586, %v3412
        %v3594 = vmul.f32 %v3588, %v3412
        %v3595 = vmul.f32 %v3590, %v3412
        %v3596 = vmul.f32 %v3592, %v3412
        %v3597 = vsub.f32 %v3559, %v3593
        %v3598 = vsub.f32 %v3564, %v3594
        %v3599 = vsub.f32 %v3569, %v3595
        %v3600 = vsub.f32 %v3574, %v3596
        %v3601 = vmul.f32 %v3597, %v3597
        %v3602 = vmul.f32 %v3598, %v3598
        %v3603 = vmul.f32 %v3599, %v3599
        %v3604 = vmul.f32 %v3600, %v3600
        %3605 = vadd.xlane.f32.xlu0 %v3601
        %v3606 = vpop.xlane.xlu0 %3605
        %3607 = vadd.xlane.f32.xlu0 %v3602
        %v3608 = vpop.xlane.xlu0 %3607
        %3609 = vadd.xlane.f32.xlu0 %v3603
        %v3610 = vpop.xlane.xlu0 %3609
        %3611 = vadd.xlane.f32.xlu0 %v3604
        %v3612 = vpop.xlane.xlu0 %3611
        %v3613 = vmul.f32 %v3606, %v3412
        %v3614 = vmul.f32 %v3608, %v3412
        %v3615 = vmul.f32 %v3610, %v3412
        %v3616 = vmul.f32 %v3612, %v3412
        %v3617 = vadd.f32 %v3613, 1e-06
        %v3618 = vadd.f32 %v3614, 1e-06
        %v3619 = vadd.f32 %v3615, 1e-06
        %v3620 = vadd.f32 %v3616, 1e-06
        %v3621 = vrsqrt.pop %v3617
        %v3622 = vrsqrt.pop %v3618
        %v3623 = vrsqrt.pop %v3619
        %v3624 = vrsqrt.pop %v3620
        %v3625 = vmul.f32 %v3597, %v3621
        %v3626 = vmul.f32 %v3598, %v3622
        %v3627 = vmul.f32 %v3599, %v3623
        %v3628 = vmul.f32 %v3600, %v3624
        %v3629 = vmul.f32 %v3625, %v3577
        %v3630 = vmul.f32 %v3626, %v3578
        %v3631 = vmul.f32 %v3627, %v3579
        %v3632 = vmul.f32 %v3628, %v3580
        %v3633 = vadd.f32 %v3629, %v3581
        %v3634 = vadd.f32 %v3630, %v3582
        %v3635 = vadd.f32 %v3631, %v3583
        %v3636 = vadd.f32 %v3632, %v3584
        %v3637 = vmax.f32 %v3633, 0.0
        %v3638 = vmax.f32 %v3634, 0.0
        %v3639 = vmax.f32 %v3635, 0.0
        %v3640 = vmax.f32 %v3636, 0.0
        %v3641 = vld [vmem:[%s739] sm:$0xff]
        %v3642 = vld [vmem:[%s739 + $0x8] sm:$0xff]
        %v3643 = vld [vmem:[%s739 + $0x10] sm:$0xff]
        %v3644 = vld [vmem:[%s739 + $0x18] sm:$0xff]
        %v3645 = vld [vmem:[%s739 + $0x20] sm:$0xff]
        %v3646 = vld [vmem:[%s739 + $0x28] sm:$0xff]
        %v3647 = vld [vmem:[%s739 + $0x30] sm:$0xff]
        %v3648 = vld [vmem:[%s739 + $0x38] sm:$0xff]
        %v3649 = vld [vmem:[%s739 + $0x40] sm:$0xff]
        %v3650 = vld [vmem:[%s739 + $0x48] sm:$0xff]
        %v3651 = vld [vmem:[%s739 + $0x50] sm:$0xff]
        %v3652 = vld [vmem:[%s739 + $0x58] sm:$0xff]
        %v3653 = vld [vmem:[%s739 + $0x60] sm:$0xff]
        %v3654 = vld [vmem:[%s739 + $0x68] sm:$0xff]
        %v3655 = vld [vmem:[%s739 + $0x70] sm:$0xff]
        %v3656 = vld [vmem:[%s739 + $0x78] sm:$0xff]
        %v3657 = vld [vmem:[%s742] sm:$0x1]
        %v3659 = vlaneseq
        %v3660 = vshrl.u32 %v3659, 7
        %v3661 = vsub.s32 0, %v3660
        %v3662 = vrot.slane %v3657, %v3661
        %3664 = vmatprep.subr.mxu0 0.0
        %3665 = vmatpush1.msra.mxu0 %v3641
        %3666 = vmatprep.subr.mxu0 0.0
        %3667 = vmatpush1.msra.mxu0 %v3642
        %3668 = vmatprep.subr.mxu0 0.0
        %3669 = vmatpush1.msra.mxu0 %v3643
        %3670 = vmatprep.subr.mxu0 0.0
        %3671 = vmatpush1.msra.mxu0 %v3644
        %3672 = vmatprep.subr.mxu0 0.0
        %3673 = vmatpush1.msra.mxu0 %v3645
        %3674 = vmatprep.subr.mxu0 0.0
        %3675 = vmatpush1.msra.mxu0 %v3646
        %3676 = vmatprep.subr.mxu0 0.0
        %3677 = vmatpush1.msra.mxu0 %v3647
        %3678 = vmatprep.subr.mxu0 0.0
        %3679 = vmatpush1.msra.mxu0 %v3648
        %3680 = vmatprep.subr.mxu0 0.0
        %3681 = vmatpush1.msra.mxu0 %v3649
        %3682 = vmatprep.subr.mxu0 0.0
        %3683 = vmatpush1.msra.mxu0 %v3650
        %3684 = vmatprep.subr.mxu0 0.0
        %3685 = vmatpush1.msra.mxu0 %v3651
        %3686 = vmatprep.subr.mxu0 0.0
        %3687 = vmatpush1.msra.mxu0 %v3652
        %3688 = vmatprep.subr.mxu0 0.0
        %3689 = vmatpush1.msra.mxu0 %v3653
        %3690 = vmatprep.subr.mxu0 0.0
        %3691 = vmatpush1.msra.mxu0 %v3654
        %3692 = vmatprep.subr.mxu0 0.0
        %3693 = vmatpush1.msra.mxu0 %v3655
        %3694 = vmatprep.subr.mxu0 0.0
        %3695 = vmatpush1.msra.mxu0 %v3656
        %3696 = vmatprep.subr.mxu0 0.0
        %3697 = vmatpush1.msra.mxu0 0.0
        %3698 = vmatprep.subr.mxu0 0.0
        %3699 = vmatpush1.msra.mxu0 0.0
        %3700 = vmatprep.subr.mxu0 0.0
        %3701 = vmatpush1.msra.mxu0 0.0
        %3702 = vmatprep.subr.mxu0 0.0
        %3703 = vmatpush1.msra.mxu0 0.0
        %3704 = vmatprep.subr.mxu0 0.0
        %3705 = vmatpush1.msra.mxu0 0.0
        %3706 = vmatprep.subr.mxu0 0.0
        %3707 = vmatpush1.msra.mxu0 0.0
        %3708 = vmatprep.subr.mxu0 0.0
        %3709 = vmatpush1.msra.mxu0 0.0
        %3710 = vmatprep.subr.mxu0 0.0
        %3711 = vmatpush1.msra.mxu0 0.0
        %3712 = vmatprep.subr.mxu0 0.0
        %3713 = vmatpush1.msra.mxu0 0.0
        %3714 = vmatprep.subr.mxu0 0.0
        %3715 = vmatpush1.msra.mxu0 0.0
        %3716 = vmatprep.subr.mxu0 0.0
        %3717 = vmatpush1.msra.mxu0 0.0
        %3718 = vmatprep.subr.mxu0 0.0
        %3719 = vmatpush1.msra.mxu0 0.0
        %3720 = vmatprep.subr.mxu0 0.0
        %3721 = vmatpush1.msra.mxu0 0.0
        %3722 = vmatprep.subr.mxu0 0.0
        %3723 = vmatpush1.msra.mxu0 0.0
        %3724 = vmatprep.subr.mxu0 0.0
        %3725 = vmatpush1.msra.mxu0 0.0
        %3726 = vmatprep.subr.mxu0 0.0
        %3727 = vmatpush1.msra.mxu0 0.0
        %3728 = vmatprep.mubr.f32.mxu0 0.0
        %3729 = vmatmul.mubr.f32.gmra.mrb[0].mxu0 %v3637
        %v3730 = vpop.f32.mrb[0].mxu0
        %v3731 = vadd.f32 %v3662, %v3730
        %v3732 = vpop.f32.mrb[0].mxu0
        %3733 = vmatprep.mubr.f32.mxu0 0.0
        %3734 = vmatmul.mubr.f32.gmra.mrb[0].mxu0 %v3638
        %v3735 = vpop.f32.mrb[0].mxu0
        %v3736 = vadd.f32 %v3662, %v3735
        %v3737 = vpop.f32.mrb[0].mxu0
        %3738 = vmatprep.mubr.f32.mxu0 0.0
        %3739 = vmatmul.mubr.f32.gmra.mrb[0].mxu0 %v3639
        %v3740 = vpop.f32.mrb[0].mxu0
        %v3741 = vadd.f32 %v3662, %v3740
        %v3742 = vpop.f32.mrb[0].mxu0
        %3743 = vmatprep.mubr.f32.mxu0 0.0
        %3744 = vmatmul.mubr.f32.gmra.mrb[0].mxu0 %v3640
        %v3745 = vpop.f32.mrb[0].mxu0
        %v3746 = vadd.f32 %v3662, %v3745
        %v3747 = vpop.f32.mrb[0].mxu0
        %3748 = vdwg.mxu0
        %v3749 = vadd.f32 %v3731, %v3465
        %v3750 = vadd.f32 %v3736, %v3466
        %v3751 = vadd.f32 %v3741, %v3467
        %v3752 = vadd.f32 %v3746, %v3468
        %v3753 = vld [vmem:[%s745] sm:$0x1]
        %v3754 = vld [vmem:[%s748] sm:$0x1]
        %3755 = vadd.xlane.f32.xlu0 %v3749
        %v3756 = vpop.xlane.xlu0 %3755
        %3757 = vadd.xlane.f32.xlu0 %v3750
        %v3758 = vpop.xlane.xlu0 %3757
        %3759 = vadd.xlane.f32.xlu0 %v3751
        %v3760 = vpop.xlane.xlu0 %3759
        %3761 = vadd.xlane.f32.xlu0 %v3752
        %v3762 = vpop.xlane.xlu0 %3761
        %v3763 = vmul.f32 %v3756, %v3412
        %v3764 = vmul.f32 %v3758, %v3412
        %v3765 = vmul.f32 %v3760, %v3412
        %v3766 = vmul.f32 %v3762, %v3412
        %v3767 = vsub.f32 %v3749, %v3763
        %v3768 = vsub.f32 %v3750, %v3764
        %v3769 = vsub.f32 %v3751, %v3765
        %v3770 = vsub.f32 %v3752, %v3766
        %v3771 = vmul.f32 %v3767, %v3767
        %v3772 = vmul.f32 %v3768, %v3768
        %v3773 = vmul.f32 %v3769, %v3769
        %v3774 = vmul.f32 %v3770, %v3770
        %3775 = vadd.xlane.f32.xlu0 %v3771
        %v3776 = vpop.xlane.xlu0 %3775
        %3777 = vadd.xlane.f32.xlu0 %v3772
        %v3778 = vpop.xlane.xlu0 %3777
        %3779 = vadd.xlane.f32.xlu0 %v3773
        %v3780 = vpop.xlane.xlu0 %3779
        %3781 = vadd.xlane.f32.xlu0 %v3774
        %v3782 = vpop.xlane.xlu0 %3781
        %v3783 = vmul.f32 %v3776, %v3412
        %v3784 = vmul.f32 %v3778, %v3412
        %v3785 = vmul.f32 %v3780, %v3412
        %v3786 = vmul.f32 %v3782, %v3412
        %v3787 = vadd.f32 %v3783, 1e-06
        %v3788 = vadd.f32 %v3784, 1e-06
        %v3789 = vadd.f32 %v3785, 1e-06
        %v3790 = vadd.f32 %v3786, 1e-06
        %v3791 = vrsqrt.pop %v3787
        %v3792 = vrsqrt.pop %v3788
        %v3793 = vrsqrt.pop %v3789
        %v3794 = vrsqrt.pop %v3790
        %v3795 = vmul.f32 %v3767, %v3791
        %v3796 = vmul.f32 %v3768, %v3792
        %v3797 = vmul.f32 %v3769, %v3793
        %v3798 = vmul.f32 %v3770, %v3794
        %v3800 = vlaneseq
        %v3801 = vshrl.u32 %v3800, 7
        %v3802 = vsub.s32 0, %v3801
        %v3803 = vrot.slane %v3753, %v3802
        %v3805 = vmul.f32 %v3795, %v3803
        %v3806 = vmul.f32 %v3796, %v3803
        %v3807 = vmul.f32 %v3797, %v3803
        %v3808 = vmul.f32 %v3798, %v3803
        %v3810 = vlaneseq
        %v3811 = vshrl.u32 %v3810, 7
        %v3812 = vsub.s32 0, %v3811
        %v3813 = vrot.slane %v3754, %v3812
        %v3815 = vadd.f32 %v3805, %v3813
        %v3816 = vadd.f32 %v3806, %v3813
        %v3817 = vadd.f32 %v3807, %v3813
        %v3818 = vadd.f32 %v3808, %v3813
        %3819 = vst [vmem:[#allocation2] sm:$0xff] %v3815
        %3820 = vst [vmem:[#allocation2 + $0x8] sm:$0xff] %v3816
        %3821 = vst [vmem:[#allocation2 + $0x10] sm:$0xff] %v3817
        %3822 = vst [vmem:[#allocation2 + $0x18] sm:$0xff] %v3818
        %p3823 = scmp.eq.s32.totalorder %s34, 1
        // Predicated region
        $region85: #{encoder_forward.1} parent=79 // pred_check
          %p3824 = pneg %p3823
        $region86: #{encoder_forward.1} parent=79 // pred_check_branch
          %3826 = sbr.rel (%p3824) target = $region88
        $region87: #{encoder_forward.1} parent=79 // pred_region
          %3827 = vst [vmem:[%s685] sm:$0xff] %v3815
          %3828 = vst [vmem:[%s685 + $0x8] sm:$0xff] %v3816
          %3829 = vst [vmem:[%s685 + $0x10] sm:$0xff] %v3817
          %3830 = vst [vmem:[%s685 + $0x18] sm:$0xff] %v3818
        $region88: #{encoder_forward.1} parent=79 // pred_fallthru
          _
        %s3831 = sand.u32 %s439, 1
        %s3832 = scalar_lea.sflag [#allocation4], %s3831
        %s3833 = sand.u32 %s439, 1
        %s3834 = smul.addr %s3833, 32
        %s3835 = scalar_lea.vmem [#allocation3], %s3834
        // Predicated region
        $region89: #{encoder_forward.1} parent=79 // pred_check
          %p3836 = pneg %p449
        $region90: #{encoder_forward.1} parent=79 // pred_check_branch
          %3838 = sbr.rel (%p3836) target = $region92
        $region91: #{encoder_forward.1} parent=79 // pred_region
          %s3840 = ssub.s32 512, 512
          %3841 = vsyncadd %s3832, %s3840
          %s3842 = smul.addr %s33, 4
          %s3843 = smul.addr %s3842, 128
          %s3844 = scalar_lea.hbm %s15, %s3843
          %s3845 = sshll.u32 %s3835, 4
          %s3846 = int_to_ptr.vmem [resolvable:$true] %s3845
          %3851 = dma.vmem_to_hbm [thread:$0]  %s3846, 512, %s3844, %s3832, 128, 128, 8
        $region92: #{encoder_forward.1} parent=79 // pred_fallthru
          _
      $region80: #{encoder_forward.1} parent=5 // pred_fallthru
        _
      %p3852 = scmp.le.s32.totalorder 2, %s24
      // Predicated region
      $region93: #{encoder_forward.1} parent=5 // pred_check
        %p3853 = pneg %p3852
      $region94: #{encoder_forward.1} parent=5 // pred_check_branch
        %3855 = sbr.rel (%p3853) target = $region96
      $region95: #{encoder_forward.1} parent=5 // pred_region
        %s3856 = ssub.s32 %s24, 2
        // Predicated region
        $region97: #{encoder_forward.1} parent=95 // pred_check
          %p3857 = pneg %p455
        $region98: #{encoder_forward.1} parent=95 // pred_check_branch
          %3859 = sbr.rel (%p3857) target = $region100
        $region99: #{encoder_forward.1} parent=95 // pred_region
          %s3860 = sand.u32 %s440, 1
          %s3861 = scalar_lea.sflag [#allocation4], %s3860
          %s3862 = sand.u32 %s440, 1
          %s3863 = smul.addr %s3862, 32
          %s3864 = scalar_lea.vmem [#allocation3], %s3863
          %3865 = dma.done %s3861, 512
        $region100: #{encoder_forward.1} parent=95 // pred_fallthru
          _
      $region96: #{encoder_forward.1} parent=5 // pred_fallthru
        _
    $region6: #{encoder_forward.1} parent=1 // loop_footer
      %s28 = sadd.s32 1, %s24
    $region7: #{encoder_forward.1} parent=1 // loop_footer_branch
      %23 = sbr.rel target = $region3
    $region8: #{encoder_forward.1} parent=1 // loop_exit
      _
    %3866 = vsyncpa [#allocation4], 1
    %s3867 = scalar_lea.sflag [#allocation4], 1
    %3868 = vsyncpa %s3867, 1

</llo_original>
